<compile_context>
chip_gen: v7x
topology: tpu7x:2x2x1
jax: 0.10.0
libtpu: 0.0.40
codegen_flags: <defaults>
</compile_context>

<pallas_src>
import jax
import jax.numpy as jnp
from jax.experimental import pallas as pl
from jax.experimental.pallas import tpu as pltpu

_OUT_PAD = 128   # lane-dense padded width of the final layer (true out dim = 3)


def _mlp_kernel(x_ref,
                w1_ref, b1_ref,
                w2_ref, b2_ref,
                w3_ref, b3_ref,
                w4_ref, b4_ref,
                w6_ref, b6_ref,
                o_ref):
    """One batch tile of the MLP: 7 MXU matmuls + bias adds + ReLUs, all in VMEM."""
    # Hoist bias loads once (b2/b4 are each used twice; JAX won't CSE the
    # re-read + broadcast, so do it a single time up front).
    b1 = b1_ref[...]
    b2 = b2_ref[...]
    b3 = b3_ref[...]
    b4 = b4_ref[...]
    b6 = b6_ref[...]

    # f32 -> bf16 cast on the VPU (essentially free; avoids a wrapper HBM pass).
    x = x_ref[...].astype(jnp.bfloat16)          # (TM, 768)

    def linear_relu(h, w_ref, b):
        acc = jnp.dot(h, w_ref[...], preferred_element_type=jnp.float32) + b
        return jnp.maximum(acc, 0.0).astype(jnp.bfloat16)

    h = linear_relu(x, w1_ref, b1)               # fc1 + relu
    h = linear_relu(h, w2_ref, b2)               # fc2 + relu
    h = linear_relu(h, w2_ref, b2)               # fc2 (again) + relu
    h = linear_relu(h, w3_ref, b3)               # fc3 + relu
    h = linear_relu(h, w4_ref, b4)               # fc4 + relu
    h = linear_relu(h, w4_ref, b4)               # fc4 (again) + relu
    # fc6 (no activation), f32 output into a lane-dense (TM, 128) block.
    o_ref[...] = jnp.dot(h, w6_ref[...], preferred_element_type=jnp.float32) + b6


def _round_up(n, m):
    return (n + m - 1) // m * m


def prepare_params(params):
    """One-time conversion of f32 params to the kernel layout.

    bf16 weights (native MXU dtype, halves weight-streaming traffic), f32 biases
    (added after f32 accumulation), and fc6 zero-padded to 128 lane-dense output
    columns.  Call ONCE and reuse the result; doing this per forward call moves
    ~6 MiB of weight data through HBM in small un-hidden XLA ops.
    """
    (w1, b1), (w2, b2), (w3, b3), (w4, b4), (w6, b6) = params
    n_out = w6.shape[1]

    w6p = jnp.zeros((w6.shape[0], _OUT_PAD), jnp.bfloat16)
    w6p = w6p.at[:, :n_out].set(w6.astype(jnp.bfloat16))
    b6p = jnp.zeros((1, _OUT_PAD), jnp.float32).at[:, :n_out].set(b6.astype(jnp.float32))

    flat = (w1.astype(jnp.bfloat16), b1.astype(jnp.float32),
            w2.astype(jnp.bfloat16), b2.astype(jnp.float32),
            w3.astype(jnp.bfloat16), b3.astype(jnp.float32),
            w4.astype(jnp.bfloat16), b4.astype(jnp.float32),
            w6p, b6p)
    return {"flat": flat, "n_out": int(n_out)}


def fully_connected_nn(x, prepared, *, tm=512):
    """x: (B, 768) float32, prepared = prepare_params(params) -> (B, 3) float32."""
    B, D = x.shape
    flat = prepared["flat"]
    n_out = prepared["n_out"]

    # Batch tile selection: multiple of 8 (f32 sublane), default 512 so the
    # per-grid-step overhead and inter-layer MXU drain are well amortized.
    tm = min(tm, _round_up(B, 8))
    # If the whole batch fits a single tile, split it into two grid steps so a
    # v7x chip can shard the batch axis across both TensorCores.
    if tm > 8 and _round_up(B, tm) == tm:
        tm = _round_up((B + 1) // 2, 8)
    b_pad = _round_up(B, tm)

    # No dtype cast here (done in-kernel); pad rows only when the grid needs it.
    x_in = x if b_pad == B else jnp.pad(x, ((0, b_pad - B), (0, 0)))
    grid = (b_pad // tm,)

    flops = 2 * b_pad * (768 * 512 + 2 * 512 * 512 + 512 * 128
                         + 2 * 128 * 128 + 128 * _OUT_PAD)
    bytes_accessed = (int(x_in.size) * 4
                      + sum(int(a.size) * a.dtype.itemsize for a in flat)
                      + b_pad * _OUT_PAD * 4)

    def build(single_buffer_weights):
        def resident(arr):
            # Whole-array block, same block index every step -> stays VMEM-resident.
            nd = arr.ndim
            kw = {"pipeline_mode": pl.Buffered(1)} if single_buffer_weights else {}
            return pl.BlockSpec(arr.shape, lambda i, _nd=nd: (0,) * _nd, **kw)

        in_specs = ([pl.BlockSpec((tm, D), lambda i: (i, 0))]    # x tile (f32)
                    + [resident(a) for a in flat])
        out_spec = pl.BlockSpec((tm, _OUT_PAD), lambda i: (i, 0))

        return pl.pallas_call(
            _mlp_kernel,
            out_shape=jax.ShapeDtypeStruct((b_pad, _OUT_PAD), jnp.float32),
            grid=grid,
            in_specs=in_specs,
            out_specs=out_spec,
            compiler_params=pltpu.CompilerParams(
                dimension_semantics=("parallel",),   # shard batch tiles across TCs (v7x)
                vmem_limit_bytes=32 << 20,           # ample for tm<=1024 on all gens
            ),
            cost_estimate=pl.CostEstimate(
                flops=flops, bytes_accessed=bytes_accessed, transcendentals=0),
        )

    try:
        out = build(single_buffer_weights=True)(x_in, *flat)
    except Exception:
        # Fallback: installed JAX doesn't lower pipeline_mode on TPU pallas_call;
        # default double-buffered resident weights still fit VMEM comfortably.
        out = build(single_buffer_weights=False)(x_in, *flat)

    return out[:B, :n_out]


def init_params(key):
    """Deterministic init mimicking PyTorch nn.Linear defaults:
    W, b ~ U(-1/sqrt(in_features), 1/sqrt(in_features)).
    Weights are stored as (in_features, out_features) so y = x @ W + b."""
    dims = [(768, 512), (512, 512), (512, 128), (128, 128), (128, 3)]
    params = []
    for (fan_in, fan_out) in dims:
        key, kw, kb = jax.random.split(key, 3)
        bound = 1.0 / jnp.sqrt(fan_in)
        w = jax.random.uniform(kw, (fan_in, fan_out), jnp.float32, -bound, bound)
        b = jax.random.uniform(kb, (1, fan_out), jnp.float32, -bound, bound)
        params.append((w, b))
    return params


def reference_forward(x, params):
    """Pure-JAX reference with the same dtype flow (bf16 operands, f32 accum)."""
    (w1, b1), (w2, b2), (w3, b3), (w4, b4), (w6, b6) = params

    def lin(h, w, b):
        return jnp.dot(h.astype(jnp.bfloat16), w.astype(jnp.bfloat16),
                       preferred_element_type=jnp.float32) + b

    h = jnp.maximum(lin(x, w1, b1), 0.0)
    h = jnp.maximum(lin(h, w2, b2), 0.0)
    h = jnp.maximum(lin(h, w2, b2), 0.0)
    h = jnp.maximum(lin(h, w3, b3), 0.0)
    h = jnp.maximum(lin(h, w4, b4), 0.0)
    h = jnp.maximum(lin(h, w4, b4), 0.0)
    return lin(h, w6, b6)


if __name__ == "__main__":
    key = jax.random.PRNGKey(0)
    key, kx = jax.random.split(key)

    B = 8  # small batch
    x = jax.random.normal(kx, (B, 768), jnp.float32)
    params = init_params(key)
    prepared = prepare_params(params)   # one-time weight prep, reused across calls

    out = jax.block_until_ready(fully_connected_nn(x, prepared))

    ref = reference_forward(x, params)
    assert out.shape == (B, 3), out.shape
    assert jnp.allclose(out, ref, atol=2e-3, rtol=2e-3), "mismatch vs reference"

    print("KERNEL_OK")
</pallas_src>

<mosaic_0001>
module attributes {stable_mosaic.version = 11 : i64} {
  func.func @_mlp_kernel(%arg0: i32, %arg1: memref<8x768xf32, #tpu.memory_space<vmem>>, %arg2: memref<768x512xbf16, #tpu.memory_space<vmem>>, %arg3: memref<1x512xf32, #tpu.memory_space<vmem>>, %arg4: memref<512x512xbf16, #tpu.memory_space<vmem>>, %arg5: memref<1x512xf32, #tpu.memory_space<vmem>>, %arg6: memref<512x128xbf16, #tpu.memory_space<vmem>>, %arg7: memref<1x128xf32, #tpu.memory_space<vmem>>, %arg8: memref<128x128xbf16, #tpu.memory_space<vmem>>, %arg9: memref<1x128xf32, #tpu.memory_space<vmem>>, %arg10: memref<128x128xbf16, #tpu.memory_space<vmem>>, %arg11: memref<1x128xf32, #tpu.memory_space<vmem>>, %arg12: memref<8x128xf32, #tpu.memory_space<vmem>>) attributes {dimension_semantics = [#tpu.dimension_semantics<parallel>], iteration_bounds = array<i64: 1>, scalar_prefetch = 0 : i64, scratch_operands = 0 : i64, tpu.core_type = #tpu.core_type<tc>, window_params = [{transform_indices = @transform_0, window_bounds = array<i64: 8, 768>}, {pipeline_mode = #tpu.pipeline_mode<synchronous>, transform_indices = @transform_1, window_bounds = array<i64: 768, 512>}, {pipeline_mode = #tpu.pipeline_mode<synchronous>, transform_indices = @transform_2, window_bounds = array<i64: 1, 512>}, {pipeline_mode = #tpu.pipeline_mode<synchronous>, transform_indices = @transform_3, window_bounds = array<i64: 512, 512>}, {pipeline_mode = #tpu.pipeline_mode<synchronous>, transform_indices = @transform_4, window_bounds = array<i64: 1, 512>}, {pipeline_mode = #tpu.pipeline_mode<synchronous>, transform_indices = @transform_5, window_bounds = array<i64: 512, 128>}, {pipeline_mode = #tpu.pipeline_mode<synchronous>, transform_indices = @transform_6, window_bounds = array<i64: 1, 128>}, {pipeline_mode = #tpu.pipeline_mode<synchronous>, transform_indices = @transform_7, window_bounds = array<i64: 128, 128>}, {pipeline_mode = #tpu.pipeline_mode<synchronous>, transform_indices = @transform_8, window_bounds = array<i64: 1, 128>}, {pipeline_mode = #tpu.pipeline_mode<synchronous>, transform_indices = @transform_9, window_bounds = array<i64: 128, 128>}, {pipeline_mode = #tpu.pipeline_mode<synchronous>, transform_indices = @transform_10, window_bounds = array<i64: 1, 128>}, {transform_indices = @transform_11, window_bounds = array<i64: 8, 128>}]} {
    %c0 = arith.constant 0 : index
    %c0_0 = arith.constant 0 : index
    %0 = vector.load %arg3[%c0, %c0_0] : memref<1x512xf32, #tpu.memory_space<vmem>>, vector<1x512xf32>
    %c0_1 = arith.constant 0 : index
    %c0_2 = arith.constant 0 : index
    %1 = vector.load %arg5[%c0_1, %c0_2] : memref<1x512xf32, #tpu.memory_space<vmem>>, vector<1x512xf32>
    %c0_3 = arith.constant 0 : index
    %c0_4 = arith.constant 0 : index
    %2 = vector.load %arg7[%c0_3, %c0_4] : memref<1x128xf32, #tpu.memory_space<vmem>>, vector<1x128xf32>
    %c0_5 = arith.constant 0 : index
    %c0_6 = arith.constant 0 : index
    %3 = vector.load %arg9[%c0_5, %c0_6] : memref<1x128xf32, #tpu.memory_space<vmem>>, vector<1x128xf32>
    %c0_7 = arith.constant 0 : index
    %c0_8 = arith.constant 0 : index
    %4 = vector.load %arg11[%c0_7, %c0_8] : memref<1x128xf32, #tpu.memory_space<vmem>>, vector<1x128xf32>
    %c0_9 = arith.constant 0 : index
    %c0_10 = arith.constant 0 : index
    %5 = vector.load %arg1[%c0_9, %c0_10] : memref<8x768xf32, #tpu.memory_space<vmem>>, vector<8x768xf32>
    %6 = arith.truncf %5 : vector<8x768xf32> to vector<8x768xbf16>
    %c0_11 = arith.constant 0 : index
    %c0_12 = arith.constant 0 : index
    %7 = vector.load %arg2[%c0_11, %c0_12] : memref<768x512xbf16, #tpu.memory_space<vmem>>, vector<768x512xbf16>
    %cst = arith.constant dense<0.000000e+00> : vector<8x512xf32>
    %8 = tpu.matmul %6, %7, %cst {dimension_numbers = #tpu.dot_dimension_numbers<[1], [0], [0], [1], [0, 0, 1, 1], [], []>} : vector<8x768xbf16>, vector<768x512xbf16>, vector<8x512xf32> -> vector<8x512xf32>
    %9 = vector.broadcast %0 : vector<1x512xf32> to vector<8x512xf32>
    %10 = arith.addf %8, %9 : vector<8x512xf32>
    %cst_13 = arith.constant 0.000000e+00 : f32
    %11 = vector.broadcast %cst_13 : f32 to vector<8x512xf32>
    %12 = arith.maximumf %10, %11 : vector<8x512xf32>
    %13 = arith.truncf %12 : vector<8x512xf32> to vector<8x512xbf16>
    %c0_14 = arith.constant 0 : index
    %c0_15 = arith.constant 0 : index
    %14 = vector.load %arg4[%c0_14, %c0_15] : memref<512x512xbf16, #tpu.memory_space<vmem>>, vector<512x512xbf16>
    %cst_16 = arith.constant dense<0.000000e+00> : vector<8x512xf32>
    %15 = tpu.matmul %13, %14, %cst_16 {dimension_numbers = #tpu.dot_dimension_numbers<[1], [0], [0], [1], [0, 0, 1, 1], [], []>} : vector<8x512xbf16>, vector<512x512xbf16>, vector<8x512xf32> -> vector<8x512xf32>
    %16 = vector.broadcast %1 : vector<1x512xf32> to vector<8x512xf32>
    %17 = arith.addf %15, %16 : vector<8x512xf32>
    %cst_17 = arith.constant 0.000000e+00 : f32
    %18 = vector.broadcast %cst_17 : f32 to vector<8x512xf32>
    %19 = arith.maximumf %17, %18 : vector<8x512xf32>
    %20 = arith.truncf %19 : vector<8x512xf32> to vector<8x512xbf16>
    %c0_18 = arith.constant 0 : index
    %c0_19 = arith.constant 0 : index
    %21 = vector.load %arg4[%c0_18, %c0_19] : memref<512x512xbf16, #tpu.memory_space<vmem>>, vector<512x512xbf16>
    %cst_20 = arith.constant dense<0.000000e+00> : vector<8x512xf32>
    %22 = tpu.matmul %20, %21, %cst_20 {dimension_numbers = #tpu.dot_dimension_numbers<[1], [0], [0], [1], [0, 0, 1, 1], [], []>} : vector<8x512xbf16>, vector<512x512xbf16>, vector<8x512xf32> -> vector<8x512xf32>
    %23 = vector.broadcast %1 : vector<1x512xf32> to vector<8x512xf32>
    %24 = arith.addf %22, %23 : vector<8x512xf32>
    %cst_21 = arith.constant 0.000000e+00 : f32
    %25 = vector.broadcast %cst_21 : f32 to vector<8x512xf32>
    %26 = arith.maximumf %24, %25 : vector<8x512xf32>
    %27 = arith.truncf %26 : vector<8x512xf32> to vector<8x512xbf16>
    %c0_22 = arith.constant 0 : index
    %c0_23 = arith.constant 0 : index
    %28 = vector.load %arg6[%c0_22, %c0_23] : memref<512x128xbf16, #tpu.memory_space<vmem>>, vector<512x128xbf16>
    %cst_24 = arith.constant dense<0.000000e+00> : vector<8x128xf32>
    %29 = tpu.matmul %27, %28, %cst_24 {dimension_numbers = #tpu.dot_dimension_numbers<[1], [0], [0], [1], [0, 0, 1, 1], [], []>} : vector<8x512xbf16>, vector<512x128xbf16>, vector<8x128xf32> -> vector<8x128xf32>
    %30 = vector.broadcast %2 : vector<1x128xf32> to vector<8x128xf32>
    %31 = arith.addf %29, %30 : vector<8x128xf32>
    %cst_25 = arith.constant 0.000000e+00 : f32
    %32 = vector.broadcast %cst_25 : f32 to vector<8x128xf32>
    %33 = arith.maximumf %31, %32 : vector<8x128xf32>
    %34 = arith.truncf %33 : vector<8x128xf32> to vector<8x128xbf16>
    %c0_26 = arith.constant 0 : index
    %c0_27 = arith.constant 0 : index
    %35 = vector.load %arg8[%c0_26, %c0_27] : memref<128x128xbf16, #tpu.memory_space<vmem>>, vector<128x128xbf16>
    %cst_28 = arith.constant dense<0.000000e+00> : vector<8x128xf32>
    %36 = tpu.matmul %34, %35, %cst_28 {dimension_numbers = #tpu.dot_dimension_numbers<[1], [0], [0], [1], [0, 0, 1, 1], [], []>} : vector<8x128xbf16>, vector<128x128xbf16>, vector<8x128xf32> -> vector<8x128xf32>
    %37 = vector.broadcast %3 : vector<1x128xf32> to vector<8x128xf32>
    %38 = arith.addf %36, %37 : vector<8x128xf32>
    %cst_29 = arith.constant 0.000000e+00 : f32
    %39 = vector.broadcast %cst_29 : f32 to vector<8x128xf32>
    %40 = arith.maximumf %38, %39 : vector<8x128xf32>
    %41 = arith.truncf %40 : vector<8x128xf32> to vector<8x128xbf16>
    %c0_30 = arith.constant 0 : index
    %c0_31 = arith.constant 0 : index
    %42 = vector.load %arg8[%c0_30, %c0_31] : memref<128x128xbf16, #tpu.memory_space<vmem>>, vector<128x128xbf16>
    %cst_32 = arith.constant dense<0.000000e+00> : vector<8x128xf32>
    %43 = tpu.matmul %41, %42, %cst_32 {dimension_numbers = #tpu.dot_dimension_numbers<[1], [0], [0], [1], [0, 0, 1, 1], [], []>} : vector<8x128xbf16>, vector<128x128xbf16>, vector<8x128xf32> -> vector<8x128xf32>
    %44 = vector.broadcast %3 : vector<1x128xf32> to vector<8x128xf32>
    %45 = arith.addf %43, %44 : vector<8x128xf32>
    %cst_33 = arith.constant 0.000000e+00 : f32
    %46 = vector.broadcast %cst_33 : f32 to vector<8x128xf32>
    %47 = arith.maximumf %45, %46 : vector<8x128xf32>
    %48 = arith.truncf %47 : vector<8x128xf32> to vector<8x128xbf16>
    %c0_34 = arith.constant 0 : index
    %c0_35 = arith.constant 0 : index
    %49 = vector.load %arg10[%c0_34, %c0_35] : memref<128x128xbf16, #tpu.memory_space<vmem>>, vector<128x128xbf16>
    %cst_36 = arith.constant dense<0.000000e+00> : vector<8x128xf32>
    %50 = tpu.matmul %48, %49, %cst_36 {dimension_numbers = #tpu.dot_dimension_numbers<[1], [0], [0], [1], [0, 0, 1, 1], [], []>} : vector<8x128xbf16>, vector<128x128xbf16>, vector<8x128xf32> -> vector<8x128xf32>
    %51 = vector.broadcast %4 : vector<1x128xf32> to vector<8x128xf32>
    %52 = arith.addf %50, %51 : vector<8x128xf32>
    %c0_37 = arith.constant 0 : index
    %c0_38 = arith.constant 0 : index
    %53 = vector.load %arg12[%c0_37, %c0_38] : memref<8x128xf32, #tpu.memory_space<vmem>>, vector<8x128xf32>
    tpu.vector_store %arg12[%c0_37, %c0_38], %52 {strides = array<i32>} : memref<8x128xf32, #tpu.memory_space<vmem>>, vector<8x128xf32>,
    return
  }
  func.func @transform_0(%arg0: i32) -> (i32, i32) {
    %c0_i32 = arith.constant 0 : i32
    %c0_i32_0 = arith.constant 0 : i32
    return %arg0, %c0_i32 : i32, i32
  }
  func.func @transform_1(%arg0: i32) -> (i32, i32) {
    %c0_i32 = arith.constant 0 : i32
    %c0_i32_0 = arith.constant 0 : i32
    %c0_i32_1 = arith.constant 0 : i32
    return %c0_i32, %c0_i32_0 : i32, i32
  }
  func.func @transform_2(%arg0: i32) -> (i32, i32) {
    %c0_i32 = arith.constant 0 : i32
    %c0_i32_0 = arith.constant 0 : i32
    %c0_i32_1 = arith.constant 0 : i32
    return %c0_i32, %c0_i32_0 : i32, i32
  }
  func.func @transform_3(%arg0: i32) -> (i32, i32) {
    %c0_i32 = arith.constant 0 : i32
    %c0_i32_0 = arith.constant 0 : i32
    %c0_i32_1 = arith.constant 0 : i32
    return %c0_i32, %c0_i32_0 : i32, i32
  }
  func.func @transform_4(%arg0: i32) -> (i32, i32) {
    %c0_i32 = arith.constant 0 : i32
    %c0_i32_0 = arith.constant 0 : i32
    %c0_i32_1 = arith.constant 0 : i32
    return %c0_i32, %c0_i32_0 : i32, i32
  }
  func.func @transform_5(%arg0: i32) -> (i32, i32) {
    %c0_i32 = arith.constant 0 : i32
    %c0_i32_0 = arith.constant 0 : i32
    %c0_i32_1 = arith.constant 0 : i32
    return %c0_i32, %c0_i32_0 : i32, i32
  }
  func.func @transform_6(%arg0: i32) -> (i32, i32) {
    %c0_i32 = arith.constant 0 : i32
    %c0_i32_0 = arith.constant 0 : i32
    %c0_i32_1 = arith.constant 0 : i32
    return %c0_i32, %c0_i32_0 : i32, i32
  }
  func.func @transform_7(%arg0: i32) -> (i32, i32) {
    %c0_i32 = arith.constant 0 : i32
    %c0_i32_0 = arith.constant 0 : i32
    %c0_i32_1 = arith.constant 0 : i32
    return %c0_i32, %c0_i32_0 : i32, i32
  }
  func.func @transform_8(%arg0: i32) -> (i32, i32) {
    %c0_i32 = arith.constant 0 : i32
    %c0_i32_0 = arith.constant 0 : i32
    %c0_i32_1 = arith.constant 0 : i32
    return %c0_i32, %c0_i32_0 : i32, i32
  }
  func.func @transform_9(%arg0: i32) -> (i32, i32) {
    %c0_i32 = arith.constant 0 : i32
    %c0_i32_0 = arith.constant 0 : i32
    %c0_i32_1 = arith.constant 0 : i32
    return %c0_i32, %c0_i32_0 : i32, i32
  }
  func.func @transform_10(%arg0: i32) -> (i32, i32) {
    %c0_i32 = arith.constant 0 : i32
    %c0_i32_0 = arith.constant 0 : i32
    %c0_i32_1 = arith.constant 0 : i32
    return %c0_i32, %c0_i32_0 : i32, i32
  }
  func.func @transform_11(%arg0: i32) -> (i32, i32) {
    %c0_i32 = arith.constant 0 : i32
    %c0_i32_0 = arith.constant 0 : i32
    return %arg0, %c0_i32 : i32, i32
  }
}

module attributes {stable_mosaic.version = 11 : i64} {
  func.func @_mlp_kernel(%arg0: i32, %arg1: memref<8x768xf32, #tpu.memory_space<vmem>>, %arg2: memref<768x512xbf16, #tpu.memory_space<vmem>>, %arg3: memref<1x512xf32, #tpu.memory_space<vmem>>, %arg4: memref<512x512xbf16, #tpu.memory_space<vmem>>, %arg5: memref<1x512xf32, #tpu.memory_space<vmem>>, %arg6: memref<512x128xbf16, #tpu.memory_space<vmem>>, %arg7: memref<1x128xf32, #tpu.memory_space<vmem>>, %arg8: memref<128x128xbf16, #tpu.memory_space<vmem>>, %arg9: memref<1x128xf32, #tpu.memory_space<vmem>>, %arg10: memref<128x128xbf16, #tpu.memory_space<vmem>>, %arg11: memref<1x128xf32, #tpu.memory_space<vmem>>, %arg12: memref<8x128xf32, #tpu.memory_space<vmem>>) attributes {dimension_semantics = [#tpu.dimension_semantics<parallel>], iteration_bounds = array<i64: 1>, scalar_prefetch = 0 : i64, scratch_operands = 0 : i64, tpu.core_type = #tpu.core_type<tc>, window_params = [{transform_indices = @transform_0, window_bounds = array<i64: 8, 768>}, {pipeline_mode = #tpu.pipeline_mode<synchronous>, transform_indices = @transform_1, window_bounds = array<i64: 768, 512>}, {pipeline_mode = #tpu.pipeline_mode<synchronous>, transform_indices = @transform_2, window_bounds = array<i64: 1, 512>}, {pipeline_mode = #tpu.pipeline_mode<synchronous>, transform_indices = @transform_3, window_bounds = array<i64: 512, 512>}, {pipeline_mode = #tpu.pipeline_mode<synchronous>, transform_indices = @transform_4, window_bounds = array<i64: 1, 512>}, {pipeline_mode = #tpu.pipeline_mode<synchronous>, transform_indices = @transform_5, window_bounds = array<i64: 512, 128>}, {pipeline_mode = #tpu.pipeline_mode<synchronous>, transform_indices = @transform_6, window_bounds = array<i64: 1, 128>}, {pipeline_mode = #tpu.pipeline_mode<synchronous>, transform_indices = @transform_7, window_bounds = array<i64: 128, 128>}, {pipeline_mode = #tpu.pipeline_mode<synchronous>, transform_indices = @transform_8, window_bounds = array<i64: 1, 128>}, {pipeline_mode = #tpu.pipeline_mode<synchronous>, transform_indices = @transform_9, window_bounds = array<i64: 128, 128>}, {pipeline_mode = #tpu.pipeline_mode<synchronous>, transform_indices = @transform_10, window_bounds = array<i64: 1, 128>}, {transform_indices = @transform_11, window_bounds = array<i64: 8, 128>}]} {
    %c0 = arith.constant 0 : index
    %c0_0 = arith.constant 0 : index
    %0 = vector.load %arg3[%c0, %c0_0] : memref<1x512xf32, #tpu.memory_space<vmem>>, vector<1x512xf32>
    %c0_1 = arith.constant 0 : index
    %c0_2 = arith.constant 0 : index
    %1 = vector.load %arg5[%c0_1, %c0_2] : memref<1x512xf32, #tpu.memory_space<vmem>>, vector<1x512xf32>
    %c0_3 = arith.constant 0 : index
    %c0_4 = arith.constant 0 : index
    %2 = vector.load %arg7[%c0_3, %c0_4] : memref<1x128xf32, #tpu.memory_space<vmem>>, vector<1x128xf32>
    %c0_5 = arith.constant 0 : index
    %c0_6 = arith.constant 0 : index
    %3 = vector.load %arg9[%c0_5, %c0_6] : memref<1x128xf32, #tpu.memory_space<vmem>>, vector<1x128xf32>
    %c0_7 = arith.constant 0 : index
    %c0_8 = arith.constant 0 : index
    %4 = vector.load %arg11[%c0_7, %c0_8] : memref<1x128xf32, #tpu.memory_space<vmem>>, vector<1x128xf32>
    %c0_9 = arith.constant 0 : index
    %c0_10 = arith.constant 0 : index
    %5 = vector.load %arg1[%c0_9, %c0_10] : memref<8x768xf32, #tpu.memory_space<vmem>>, vector<8x768xf32>
    %6 = arith.truncf %5 : vector<8x768xf32> to vector<8x768xbf16>
    %c0_11 = arith.constant 0 : index
    %c0_12 = arith.constant 0 : index
    %7 = vector.load %arg2[%c0_11, %c0_12] : memref<768x512xbf16, #tpu.memory_space<vmem>>, vector<768x512xbf16>
    %cst = arith.constant dense<0.000000e+00> : vector<8x512xf32>
    %8 = tpu.matmul %6, %7, %cst {dimension_numbers = #tpu.dot_dimension_numbers<[1], [0], [0], [1], [0, 0, 1, 1], [], []>} : vector<8x768xbf16>, vector<768x512xbf16>, vector<8x512xf32> -> vector<8x512xf32>
    %9 = vector.broadcast %0 : vector<1x512xf32> to vector<8x512xf32>
    %10 = arith.addf %8, %9 : vector<8x512xf32>
    %cst_13 = arith.constant 0.000000e+00 : f32
    %11 = vector.broadcast %cst_13 : f32 to vector<8x512xf32>
    %12 = arith.maximumf %10, %11 : vector<8x512xf32>
    %13 = arith.truncf %12 : vector<8x512xf32> to vector<8x512xbf16>
    %c0_14 = arith.constant 0 : index
    %c0_15 = arith.constant 0 : index
    %14 = vector.load %arg4[%c0_14, %c0_15] : memref<512x512xbf16, #tpu.memory_space<vmem>>, vector<512x512xbf16>
    %cst_16 = arith.constant dense<0.000000e+00> : vector<8x512xf32>
    %15 = tpu.matmul %13, %14, %cst_16 {dimension_numbers = #tpu.dot_dimension_numbers<[1], [0], [0], [1], [0, 0, 1, 1], [], []>} : vector<8x512xbf16>, vector<512x512xbf16>, vector<8x512xf32> -> vector<8x512xf32>
    %16 = vector.broadcast %1 : vector<1x512xf32> to vector<8x512xf32>
    %17 = arith.addf %15, %16 : vector<8x512xf32>
    %cst_17 = arith.constant 0.000000e+00 : f32
    %18 = vector.broadcast %cst_17 : f32 to vector<8x512xf32>
    %19 = arith.maximumf %17, %18 : vector<8x512xf32>
    %20 = arith.truncf %19 : vector<8x512xf32> to vector<8x512xbf16>
    %c0_18 = arith.constant 0 : index
    %c0_19 = arith.constant 0 : index
    %21 = vector.load %arg4[%c0_18, %c0_19] : memref<512x512xbf16, #tpu.memory_space<vmem>>, vector<512x512xbf16>
    %cst_20 = arith.constant dense<0.000000e+00> : vector<8x512xf32>
    %22 = tpu.matmul %20, %21, %cst_20 {dimension_numbers = #tpu.dot_dimension_numbers<[1], [0], [0], [1], [0, 0, 1, 1], [], []>} : vector<8x512xbf16>, vector<512x512xbf16>, vector<8x512xf32> -> vector<8x512xf32>
    %23 = vector.broadcast %1 : vector<1x512xf32> to vector<8x512xf32>
    %24 = arith.addf %22, %23 : vector<8x512xf32>
    %cst_21 = arith.constant 0.000000e+00 : f32
    %25 = vector.broadcast %cst_21 : f32 to vector<8x512xf32>
    %26 = arith.maximumf %24, %25 : vector<8x512xf32>
    %27 = arith.truncf %26 : vector<8x512xf32> to vector<8x512xbf16>
    %c0_22 = arith.constant 0 : index
    %c0_23 = arith.constant 0 : index
    %28 = vector.load %arg6[%c0_22, %c0_23] : memref<512x128xbf16, #tpu.memory_space<vmem>>, vector<512x128xbf16>
    %cst_24 = arith.constant dense<0.000000e+00> : vector<8x128xf32>
    %29 = tpu.matmul %27, %28, %cst_24 {dimension_numbers = #tpu.dot_dimension_numbers<[1], [0], [0], [1], [0, 0, 1, 1], [], []>} : vector<8x512xbf16>, vector<512x128xbf16>, vector<8x128xf32> -> vector<8x128xf32>
    %30 = vector.broadcast %2 : vector<1x128xf32> to vector<8x128xf32>
    %31 = arith.addf %29, %30 : vector<8x128xf32>
    %cst_25 = arith.constant 0.000000e+00 : f32
    %32 = vector.broadcast %cst_25 : f32 to vector<8x128xf32>
    %33 = arith.maximumf %31, %32 : vector<8x128xf32>
    %34 = arith.truncf %33 : vector<8x128xf32> to vector<8x128xbf16>
    %c0_26 = arith.constant 0 : index
    %c0_27 = arith.constant 0 : index
    %35 = vector.load %arg8[%c0_26, %c0_27] : memref<128x128xbf16, #tpu.memory_space<vmem>>, vector<128x128xbf16>
    %cst_28 = arith.constant dense<0.000000e+00> : vector<8x128xf32>
    %36 = tpu.matmul %34, %35, %cst_28 {dimension_numbers = #tpu.dot_dimension_numbers<[1], [0], [0], [1], [0, 0, 1, 1], [], []>} : vector<8x128xbf16>, vector<128x128xbf16>, vector<8x128xf32> -> vector<8x128xf32>
    %37 = vector.broadcast %3 : vector<1x128xf32> to vector<8x128xf32>
    %38 = arith.addf %36, %37 : vector<8x128xf32>
    %cst_29 = arith.constant 0.000000e+00 : f32
    %39 = vector.broadcast %cst_29 : f32 to vector<8x128xf32>
    %40 = arith.maximumf %38, %39 : vector<8x128xf32>
    %41 = arith.truncf %40 : vector<8x128xf32> to vector<8x128xbf16>
    %c0_30 = arith.constant 0 : index
    %c0_31 = arith.constant 0 : index
    %42 = vector.load %arg8[%c0_30, %c0_31] : memref<128x128xbf16, #tpu.memory_space<vmem>>, vector<128x128xbf16>
    %cst_32 = arith.constant dense<0.000000e+00> : vector<8x128xf32>
    %43 = tpu.matmul %41, %42, %cst_32 {dimension_numbers = #tpu.dot_dimension_numbers<[1], [0], [0], [1], [0, 0, 1, 1], [], []>} : vector<8x128xbf16>, vector<128x128xbf16>, vector<8x128xf32> -> vector<8x128xf32>
    %44 = vector.broadcast %3 : vector<1x128xf32> to vector<8x128xf32>
    %45 = arith.addf %43, %44 : vector<8x128xf32>
    %cst_33 = arith.constant 0.000000e+00 : f32
    %46 = vector.broadcast %cst_33 : f32 to vector<8x128xf32>
    %47 = arith.maximumf %45, %46 : vector<8x128xf32>
    %48 = arith.truncf %47 : vector<8x128xf32> to vector<8x128xbf16>
    %c0_34 = arith.constant 0 : index
    %c0_35 = arith.constant 0 : index
    %49 = vector.load %arg10[%c0_34, %c0_35] : memref<128x128xbf16, #tpu.memory_space<vmem>>, vector<128x128xbf16>
    %cst_36 = arith.constant dense<0.000000e+00> : vector<8x128xf32>
    %50 = tpu.matmul %48, %49, %cst_36 {dimension_numbers = #tpu.dot_dimension_numbers<[1], [0], [0], [1], [0, 0, 1, 1], [], []>} : vector<8x128xbf16>, vector<128x128xbf16>, vector<8x128xf32> -> vector<8x128xf32>
    %51 = vector.broadcast %4 : vector<1x128xf32> to vector<8x128xf32>
    %52 = arith.addf %50, %51 : vector<8x128xf32>
    %c0_37 = arith.constant 0 : index
    %c0_38 = arith.constant 0 : index
    %53 = vector.load %arg12[%c0_37, %c0_38] : memref<8x128xf32, #tpu.memory_space<vmem>>, vector<8x128xf32>
    tpu.vector_store %arg12[%c0_37, %c0_38], %52 {strides = array<i32>} : memref<8x128xf32, #tpu.memory_space<vmem>>, vector<8x128xf32>,
    return
  }
  func.func @transform_0(%arg0: i32) -> (i32, i32) {
    %c0_i32 = arith.constant 0 : i32
    %c0_i32_0 = arith.constant 0 : i32
    return %arg0, %c0_i32 : i32, i32
  }
  func.func @transform_1(%arg0: i32) -> (i32, i32) {
    %c0_i32 = arith.constant 0 : i32
    %c0_i32_0 = arith.constant 0 : i32
    %c0_i32_1 = arith.constant 0 : i32
    return %c0_i32, %c0_i32_0 : i32, i32
  }
  func.func @transform_2(%arg0: i32) -> (i32, i32) {
    %c0_i32 = arith.constant 0 : i32
    %c0_i32_0 = arith.constant 0 : i32
    %c0_i32_1 = arith.constant 0 : i32
    return %c0_i32, %c0_i32_0 : i32, i32
  }
  func.func @transform_3(%arg0: i32) -> (i32, i32) {
    %c0_i32 = arith.constant 0 : i32
    %c0_i32_0 = arith.constant 0 : i32
    %c0_i32_1 = arith.constant 0 : i32
    return %c0_i32, %c0_i32_0 : i32, i32
  }
  func.func @transform_4(%arg0: i32) -> (i32, i32) {
    %c0_i32 = arith.constant 0 : i32
    %c0_i32_0 = arith.constant 0 : i32
    %c0_i32_1 = arith.constant 0 : i32
    return %c0_i32, %c0_i32_0 : i32, i32
  }
  func.func @transform_5(%arg0: i32) -> (i32, i32) {
    %c0_i32 = arith.constant 0 : i32
    %c0_i32_0 = arith.constant 0 : i32
    %c0_i32_1 = arith.constant 0 : i32
    return %c0_i32, %c0_i32_0 : i32, i32
  }
  func.func @transform_6(%arg0: i32) -> (i32, i32) {
    %c0_i32 = arith.constant 0 : i32
    %c0_i32_0 = arith.constant 0 : i32
    %c0_i32_1 = arith.constant 0 : i32
    return %c0_i32, %c0_i32_0 : i32, i32
  }
  func.func @transform_7(%arg0: i32) -> (i32, i32) {
    %c0_i32 = arith.constant 0 : i32
    %c0_i32_0 = arith.constant 0 : i32
    %c0_i32_1 = arith.constant 0 : i32
    return %c0_i32, %c0_i32_0 : i32, i32
  }
  func.func @transform_8(%arg0: i32) -> (i32, i32) {
    %c0_i32 = arith.constant 0 : i32
    %c0_i32_0 = arith.constant 0 : i32
    %c0_i32_1 = arith.constant 0 : i32
    return %c0_i32, %c0_i32_0 : i32, i32
  }
  func.func @transform_9(%arg0: i32) -> (i32, i32) {
    %c0_i32 = arith.constant 0 : i32
    %c0_i32_0 = arith.constant 0 : i32
    %c0_i32_1 = arith.constant 0 : i32
    return %c0_i32, %c0_i32_0 : i32, i32
  }
  func.func @transform_10(%arg0: i32) -> (i32, i32) {
    %c0_i32 = arith.constant 0 : i32
    %c0_i32_0 = arith.constant 0 : i32
    %c0_i32_1 = arith.constant 0 : i32
    return %c0_i32, %c0_i32_0 : i32, i32
  }
  func.func @transform_11(%arg0: i32) -> (i32, i32) {
    %c0_i32 = arith.constant 0 : i32
    %c0_i32_0 = arith.constant 0 : i32
    return %arg0, %c0_i32 : i32, i32
  }
}

</mosaic_0001>

<llo_original>
// kernel: tpu_custom_call.1
$region0: #{tpu_custom_call.1}
  #allocation0 [shape = 'u32[]', space=smem, size = 0x4, offset = 0x4, fixed_abs, tag = 'smem constant byte address 0x4 - core index']
  #allocation1 [shape = 'u32[144,128]{1,0:T(1,128)}', space=vmem, size = 0x12000, scoped, tag = 'internal scratch']
  %s0 = inlined_call_operand.hbm [shape: f32[8,768], index: 0, kind: input, shape index: {}]
  %s1 = inlined_call_operand.hbm [shape: bf16[768,512], index: 1, kind: input, shape index: {}]
  %s2 = inlined_call_operand.vmem [shape: f32[1,512], index: 2, kind: input, shape index: {}]
  %s3 = inlined_call_operand.hbm [shape: bf16[512,512], index: 3, kind: input, shape index: {}]
  %s4 = inlined_call_operand.vmem [shape: f32[1,512], index: 4, kind: input, shape index: {}]
  %s5 = inlined_call_operand.hbm [shape: bf16[512,128], index: 5, kind: input, shape index: {}]
  %s6 = inlined_call_operand.vmem [shape: f32[1,128], index: 6, kind: input, shape index: {}]
  %s7 = inlined_call_operand.hbm [shape: bf16[128,128], index: 7, kind: input, shape index: {}]
  %s8 = inlined_call_operand.vmem [shape: f32[1,128], index: 8, kind: input, shape index: {}]
  %s9 = inlined_call_operand.hbm [shape: bf16[128,128], index: 9, kind: input, shape index: {}]
  %s10 = inlined_call_operand.vmem [shape: f32[1,128], index: 10, kind: input, shape index: {}]
  %s11 = inlined_call_operand.hbm [shape: f32[8,128], index: 11, kind: output, shape index: {}]
  %s12 = sld [smem:[#allocation0]]
  $region78: #{tpu_custom_call.1} parent=0
    _
  %s14 = ssub.s32 1, %s12
  %s15 = scalar_select 0, %s14, %s12
  $region1: #{tpu_custom_call.1} parent=0
    #allocation2 [shape = 'u8[24576]{0}', space=vmem, size = 0x6000, scoped, tag = 'input window, operand 0, single buffered']
    #allocation3 [shape = 's32[1]{0}', space=sflag, size = 0x4, scoped, tag = 'scoped memory for tpu_custom_call.1']
    #allocation4 [shape = 's32[1]{0}', space=sflag, size = 0x4, scoped, tag = 'scoped memory for tpu_custom_call.1']
    #allocation5 [shape = 'u8[786432]{0}', space=vmem, size = 0xc0000, scoped, tag = 'input window, operand 1, single buffered']
    #allocation6 [shape = 's32[1]{0}', space=sflag, size = 0x4, scoped, tag = 'scoped memory for tpu_custom_call.1']
    #allocation7 [shape = 'u8[524288]{0}', space=vmem, size = 0x80000, scoped, tag = 'input window, operand 3, single buffered']
    #allocation8 [shape = 'u8[131072]{0}', space=vmem, size = 0x20000, scoped, tag = 'input window, operand 5, single buffered']
    #allocation9 [shape = 's32[1]{0}', space=sflag, size = 0x4, scoped, tag = 'scoped memory for tpu_custom_call.1']
    #allocation10 [shape = 'u8[32768]{0}', space=vmem, size = 0x8000, scoped, tag = 'input window, operand 7, single buffered']
    #allocation11 [shape = 'u8[32768]{0}', space=vmem, size = 0x8000, scoped, tag = 'input window, operand 9, single buffered']
    #allocation12 [shape = 's32[1]{0}', space=sflag, size = 0x4, scoped, tag = 'scoped memory for tpu_custom_call.1']
    #allocation13 [shape = 'u8[4096]{0}', space=vmem, size = 0x1000, scoped, tag = 'output window, operand 0, single buffered']
    %16 = vsyncpa [#allocation3], 0
    %17 = vsyncpa [#allocation6], 0
    %18 = vsyncpa [#allocation9], 0
    %19 = vsyncpa [#allocation12], 0
    %20 = vsyncpa [#allocation4], 0
    // Predicated region
    $region2: #{tpu_custom_call.1} parent=1 // pred_check
      _
    $region3: #{tpu_custom_call.1} parent=1 // pred_check_branch
      %22 = sbr.rel (0) target = $region5
    $region4: #{tpu_custom_call.1} parent=1 // pred_region
      %s24 = ssub.s32 768, 768
      %25 = vsyncadd [#allocation3], %s24
      %s27 = sshll.u32 [#allocation2], 4
      %s28 = int_to_ptr.vmem [resolvable:$true] %s27
      %30 = dma.hbm_to_vmem [thread:$0]  %s0, 768, %s28, [#allocation3]
    $region5: #{tpu_custom_call.1} parent=1 // pred_fallthru
      _
    // Predicated region
    $region6: #{tpu_custom_call.1} parent=1 // pred_check
      _
    $region7: #{tpu_custom_call.1} parent=1 // pred_check_branch
      %32 = sbr.rel (0) target = $region9
    $region8: #{tpu_custom_call.1} parent=1 // pred_region
      %s34 = ssub.s32 24576, 24576
      %35 = vsyncadd [#allocation6], %s34
      %s36 = sshll.u32 [#allocation5], 4
      %s37 = int_to_ptr.vmem [resolvable:$true] %s36
      %42 = dma.hbm_to_vmem [thread:$0]  %s1, 24576, %s37, [#allocation6], 256, 256, 16
    $region9: #{tpu_custom_call.1} parent=1 // pred_fallthru
      _
    // Predicated region
    $region10: #{tpu_custom_call.1} parent=1 // pred_check
      _
    $region11: #{tpu_custom_call.1} parent=1 // pred_check_branch
      %44 = sbr.rel (0) target = $region13
    $region12: #{tpu_custom_call.1} parent=1 // pred_region
      _
    $region13: #{tpu_custom_call.1} parent=1 // pred_fallthru
      _
    // Predicated region
    $region14: #{tpu_custom_call.1} parent=1 // pred_check
      _
    $region15: #{tpu_custom_call.1} parent=1 // pred_check_branch
      %46 = sbr.rel (0) target = $region17
    $region16: #{tpu_custom_call.1} parent=1 // pred_region
      %s48 = ssub.s32 16384, 16384
      %49 = vsyncadd [#allocation6], %s48
      %s50 = sshll.u32 [#allocation7], 4
      %s51 = int_to_ptr.vmem [resolvable:$true] %s50
      %56 = dma.hbm_to_vmem [thread:$0]  %s3, 16384, %s51, [#allocation6], 256, 256, 16
    $region17: #{tpu_custom_call.1} parent=1 // pred_fallthru
      _
    // Predicated region
    $region18: #{tpu_custom_call.1} parent=1 // pred_check
      _
    $region19: #{tpu_custom_call.1} parent=1 // pred_check_branch
      %58 = sbr.rel (0) target = $region21
    $region20: #{tpu_custom_call.1} parent=1 // pred_region
      _
    $region21: #{tpu_custom_call.1} parent=1 // pred_fallthru
      _
    // Predicated region
    $region22: #{tpu_custom_call.1} parent=1 // pred_check
      _
    $region23: #{tpu_custom_call.1} parent=1 // pred_check_branch
      %60 = sbr.rel (0) target = $region25
    $region24: #{tpu_custom_call.1} parent=1 // pred_region
      %s62 = ssub.s32 4096, 4096
      %63 = vsyncadd [#allocation9], %s62
      %s64 = sshll.u32 [#allocation8], 4
      %s65 = int_to_ptr.vmem [resolvable:$true] %s64
      %70 = dma.hbm_to_vmem [thread:$0]  %s5, 4096, %s65, [#allocation9], 64, 64, 4
    $region25: #{tpu_custom_call.1} parent=1 // pred_fallthru
      _
    // Predicated region
    $region26: #{tpu_custom_call.1} parent=1 // pred_check
      _
    $region27: #{tpu_custom_call.1} parent=1 // pred_check_branch
      %72 = sbr.rel (0) target = $region29
    $region28: #{tpu_custom_call.1} parent=1 // pred_region
      _
    $region29: #{tpu_custom_call.1} parent=1 // pred_fallthru
      _
    // Predicated region
    $region30: #{tpu_custom_call.1} parent=1 // pred_check
      _
    $region31: #{tpu_custom_call.1} parent=1 // pred_check_branch
      %74 = sbr.rel (0) target = $region33
    $region32: #{tpu_custom_call.1} parent=1 // pred_region
      %s76 = ssub.s32 1024, 1024
      %77 = vsyncadd [#allocation9], %s76
      %s78 = sshll.u32 [#allocation10], 4
      %s79 = int_to_ptr.vmem [resolvable:$true] %s78
      %84 = dma.hbm_to_vmem [thread:$0]  %s7, 1024, %s79, [#allocation9], 64, 64, 4
    $region33: #{tpu_custom_call.1} parent=1 // pred_fallthru
      _
    // Predicated region
    $region34: #{tpu_custom_call.1} parent=1 // pred_check
      _
    $region35: #{tpu_custom_call.1} parent=1 // pred_check_branch
      %86 = sbr.rel (0) target = $region37
    $region36: #{tpu_custom_call.1} parent=1 // pred_region
      _
    $region37: #{tpu_custom_call.1} parent=1 // pred_fallthru
      _
    // Predicated region
    $region38: #{tpu_custom_call.1} parent=1 // pred_check
      _
    $region39: #{tpu_custom_call.1} parent=1 // pred_check_branch
      %88 = sbr.rel (0) target = $region41
    $region40: #{tpu_custom_call.1} parent=1 // pred_region
      %s90 = ssub.s32 1024, 1024
      %91 = vsyncadd [#allocation12], %s90
      %s92 = sshll.u32 [#allocation11], 4
      %s93 = int_to_ptr.vmem [resolvable:$true] %s92
      %98 = dma.hbm_to_vmem [thread:$0]  %s9, 1024, %s93, [#allocation12], 64, 64, 4
    $region41: #{tpu_custom_call.1} parent=1 // pred_fallthru
      _
    // Predicated region
    $region42: #{tpu_custom_call.1} parent=1 // pred_check
      _
    $region43: #{tpu_custom_call.1} parent=1 // pred_check_branch
      %100 = sbr.rel (0) target = $region45
    $region44: #{tpu_custom_call.1} parent=1 // pred_region
      _
    $region45: #{tpu_custom_call.1} parent=1 // pred_fallthru
      _
    // Predicated region
    $region46: #{tpu_custom_call.1} parent=1 // pred_check
      _
    $region47: #{tpu_custom_call.1} parent=1 // pred_check_branch
      %102 = sbr.rel (0) target = $region49
    $region48: #{tpu_custom_call.1} parent=1 // pred_region
      %103 = dma.done [#allocation3], 768
    $region49: #{tpu_custom_call.1} parent=1 // pred_fallthru
      _
    // Predicated region
    $region50: #{tpu_custom_call.1} parent=1 // pred_check
      _
    $region51: #{tpu_custom_call.1} parent=1 // pred_check_branch
      %105 = sbr.rel (0) target = $region53
    $region52: #{tpu_custom_call.1} parent=1 // pred_region
      %106 = dma.done [#allocation6], 24576
    $region53: #{tpu_custom_call.1} parent=1 // pred_fallthru
      _
    // Predicated region
    $region54: #{tpu_custom_call.1} parent=1 // pred_check
      _
    $region55: #{tpu_custom_call.1} parent=1 // pred_check_branch
      %108 = sbr.rel (0) target = $region57
    $region56: #{tpu_custom_call.1} parent=1 // pred_region
      %109 = dma.done [#allocation6], 16384
    $region57: #{tpu_custom_call.1} parent=1 // pred_fallthru
      _
    // Predicated region
    $region58: #{tpu_custom_call.1} parent=1 // pred_check
      _
    $region59: #{tpu_custom_call.1} parent=1 // pred_check_branch
      %111 = sbr.rel (0) target = $region61
    $region60: #{tpu_custom_call.1} parent=1 // pred_region
      %112 = dma.done [#allocation9], 4096
    $region61: #{tpu_custom_call.1} parent=1 // pred_fallthru
      _
    // Predicated region
    $region62: #{tpu_custom_call.1} parent=1 // pred_check
      _
    $region63: #{tpu_custom_call.1} parent=1 // pred_check_branch
      %114 = sbr.rel (0) target = $region65
    $region64: #{tpu_custom_call.1} parent=1 // pred_region
      %115 = dma.done [#allocation9], 1024
    $region65: #{tpu_custom_call.1} parent=1 // pred_fallthru
      _
    // Predicated region
    $region66: #{tpu_custom_call.1} parent=1 // pred_check
      _
    $region67: #{tpu_custom_call.1} parent=1 // pred_check_branch
      %117 = sbr.rel (0) target = $region69
    $region68: #{tpu_custom_call.1} parent=1 // pred_region
      %118 = dma.done [#allocation12], 1024
    $region69: #{tpu_custom_call.1} parent=1 // pred_fallthru
      _
    %v120 = vld [vmem:[%s2] sm:$0xf]
    %v121 = vld [vmem:[%s4] sm:$0xf]
    %v122 = vld [vmem:[%s6] sm:$0x1]
    %v123 = vld [vmem:[%s8] sm:$0x1]
    %v124 = vld [vmem:[%s10] sm:$0x1]
    %v125 = vld [vmem:[#allocation2] sm:$0xff]
    %v126 = vld [vmem:[#allocation2 + $0x8] sm:$0xff]
    %v127 = vld [vmem:[#allocation2 + $0x10] sm:$0xff]
    %v128 = vld [vmem:[#allocation2 + $0x18] sm:$0xff]
    %v129 = vld [vmem:[#allocation2 + $0x20] sm:$0xff]
    %v130 = vld [vmem:[#allocation2 + $0x28] sm:$0xff]
    %v131 = vpack.c.bf16 %v125, %v125
    %v132 = vpack.c.bf16 %v126, %v126
    %v133 = vpack.c.bf16 %v127, %v127
    %v134 = vpack.c.bf16 %v128, %v128
    %v135 = vpack.c.bf16 %v129, %v129
    %v136 = vpack.c.bf16 %v130, %v130
    %v137 = vld [vmem:[#allocation5] sm:$0xff]
    %v138 = vld [vmem:[#allocation5 + $0x8] sm:$0xff]
    %v139 = vld [vmem:[#allocation5 + $0x10] sm:$0xff]
    %v140 = vld [vmem:[#allocation5 + $0x18] sm:$0xff]
    %v141 = vld [vmem:[#allocation5 + $0x20] sm:$0xff]
    %v142 = vld [vmem:[#allocation5 + $0x28] sm:$0xff]
    %v143 = vld [vmem:[#allocation5 + $0x30] sm:$0xff]
    %v144 = vld [vmem:[#allocation5 + $0x38] sm:$0xff]
    %v145 = vld [vmem:[#allocation5 + $0x40] sm:$0xff]
    %v146 = vld [vmem:[#allocation5 + $0x48] sm:$0xff]
    %v147 = vld [vmem:[#allocation5 + $0x50] sm:$0xff]
    %v148 = vld [vmem:[#allocation5 + $0x58] sm:$0xff]
    %v149 = vld [vmem:[#allocation5 + $0x60] sm:$0xff]
    %v150 = vld [vmem:[#allocation5 + $0x68] sm:$0xff]
    %v151 = vld [vmem:[#allocation5 + $0x70] sm:$0xff]
    %v152 = vld [vmem:[#allocation5 + $0x78] sm:$0xff]
    %v153 = vld [vmem:[#allocation5 + $0x80] sm:$0xff]
    %v154 = vld [vmem:[#allocation5 + $0x88] sm:$0xff]
    %v155 = vld [vmem:[#allocation5 + $0x90] sm:$0xff]
    %v156 = vld [vmem:[#allocation5 + $0x98] sm:$0xff]
    %v157 = vld [vmem:[#allocation5 + $0xa0] sm:$0xff]
    %v158 = vld [vmem:[#allocation5 + $0xa8] sm:$0xff]
    %v159 = vld [vmem:[#allocation5 + $0xb0] sm:$0xff]
    %v160 = vld [vmem:[#allocation5 + $0xb8] sm:$0xff]
    %v161 = vld [vmem:[#allocation5 + $0xc0] sm:$0xff]
    %v162 = vld [vmem:[#allocation5 + $0xc8] sm:$0xff]
    %v163 = vld [vmem:[#allocation5 + $0xd0] sm:$0xff]
    %v164 = vld [vmem:[#allocation5 + $0xd8] sm:$0xff]
    %v165 = vld [vmem:[#allocation5 + $0xe0] sm:$0xff]
    %v166 = vld [vmem:[#allocation5 + $0xe8] sm:$0xff]
    %v167 = vld [vmem:[#allocation5 + $0xf0] sm:$0xff]
    %v168 = vld [vmem:[#allocation5 + $0xf8] sm:$0xff]
    %v169 = vld [vmem:[#allocation5 + $0x100] sm:$0xff]
    %v170 = vld [vmem:[#allocation5 + $0x108] sm:$0xff]
    %v171 = vld [vmem:[#allocation5 + $0x110] sm:$0xff]
    %v172 = vld [vmem:[#allocation5 + $0x118] sm:$0xff]
    %v173 = vld [vmem:[#allocation5 + $0x120] sm:$0xff]
    %v174 = vld [vmem:[#allocation5 + $0x128] sm:$0xff]
    %v175 = vld [vmem:[#allocation5 + $0x130] sm:$0xff]
    %v176 = vld [vmem:[#allocation5 + $0x138] sm:$0xff]
    %v177 = vld [vmem:[#allocation5 + $0x140] sm:$0xff]
    %v178 = vld [vmem:[#allocation5 + $0x148] sm:$0xff]
    %v179 = vld [vmem:[#allocation5 + $0x150] sm:$0xff]
    %v180 = vld [vmem:[#allocation5 + $0x158] sm:$0xff]
    %v181 = vld [vmem:[#allocation5 + $0x160] sm:$0xff]
    %v182 = vld [vmem:[#allocation5 + $0x168] sm:$0xff]
    %v183 = vld [vmem:[#allocation5 + $0x170] sm:$0xff]
    %v184 = vld [vmem:[#allocation5 + $0x178] sm:$0xff]
    %v185 = vld [vmem:[#allocation5 + $0x180] sm:$0xff]
    %v186 = vld [vmem:[#allocation5 + $0x188] sm:$0xff]
    %v187 = vld [vmem:[#allocation5 + $0x190] sm:$0xff]
    %v188 = vld [vmem:[#allocation5 + $0x198] sm:$0xff]
    %v189 = vld [vmem:[#allocation5 + $0x1a0] sm:$0xff]
    %v190 = vld [vmem:[#allocation5 + $0x1a8] sm:$0xff]
    %v191 = vld [vmem:[#allocation5 + $0x1b0] sm:$0xff]
    %v192 = vld [vmem:[#allocation5 + $0x1b8] sm:$0xff]
    %v193 = vld [vmem:[#allocation5 + $0x1c0] sm:$0xff]
    %v194 = vld [vmem:[#allocation5 + $0x1c8] sm:$0xff]
    %v195 = vld [vmem:[#allocation5 + $0x1d0] sm:$0xff]
    %v196 = vld [vmem:[#allocation5 + $0x1d8] sm:$0xff]
    %v197 = vld [vmem:[#allocation5 + $0x1e0] sm:$0xff]
    %v198 = vld [vmem:[#allocation5 + $0x1e8] sm:$0xff]
    %v199 = vld [vmem:[#allocation5 + $0x1f0] sm:$0xff]
    %v200 = vld [vmem:[#allocation5 + $0x1f8] sm:$0xff]
    %v201 = vld [vmem:[#allocation5 + $0x200] sm:$0xff]
    %v202 = vld [vmem:[#allocation5 + $0x208] sm:$0xff]
    %v203 = vld [vmem:[#allocation5 + $0x210] sm:$0xff]
    %v204 = vld [vmem:[#allocation5 + $0x218] sm:$0xff]
    %v205 = vld [vmem:[#allocation5 + $0x220] sm:$0xff]
    %v206 = vld [vmem:[#allocation5 + $0x228] sm:$0xff]
    %v207 = vld [vmem:[#allocation5 + $0x230] sm:$0xff]
    %v208 = vld [vmem:[#allocation5 + $0x238] sm:$0xff]
    %v209 = vld [vmem:[#allocation5 + $0x240] sm:$0xff]
    %v210 = vld [vmem:[#allocation5 + $0x248] sm:$0xff]
    %v211 = vld [vmem:[#allocation5 + $0x250] sm:$0xff]
    %v212 = vld [vmem:[#allocation5 + $0x258] sm:$0xff]
    %v213 = vld [vmem:[#allocation5 + $0x260] sm:$0xff]
    %v214 = vld [vmem:[#allocation5 + $0x268] sm:$0xff]
    %v215 = vld [vmem:[#allocation5 + $0x270] sm:$0xff]
    %v216 = vld [vmem:[#allocation5 + $0x278] sm:$0xff]
    %v217 = vld [vmem:[#allocation5 + $0x280] sm:$0xff]
    %v218 = vld [vmem:[#allocation5 + $0x288] sm:$0xff]
    %v219 = vld [vmem:[#allocation5 + $0x290] sm:$0xff]
    %v220 = vld [vmem:[#allocation5 + $0x298] sm:$0xff]
    %v221 = vld [vmem:[#allocation5 + $0x2a0] sm:$0xff]
    %v222 = vld [vmem:[#allocation5 + $0x2a8] sm:$0xff]
    %v223 = vld [vmem:[#allocation5 + $0x2b0] sm:$0xff]
    %v224 = vld [vmem:[#allocation5 + $0x2b8] sm:$0xff]
    %v225 = vld [vmem:[#allocation5 + $0x2c0] sm:$0xff]
    %v226 = vld [vmem:[#allocation5 + $0x2c8] sm:$0xff]
    %v227 = vld [vmem:[#allocation5 + $0x2d0] sm:$0xff]
    %v228 = vld [vmem:[#allocation5 + $0x2d8] sm:$0xff]
    %v229 = vld [vmem:[#allocation5 + $0x2e0] sm:$0xff]
    %v230 = vld [vmem:[#allocation5 + $0x2e8] sm:$0xff]
    %v231 = vld [vmem:[#allocation5 + $0x2f0] sm:$0xff]
    %v232 = vld [vmem:[#allocation5 + $0x2f8] sm:$0xff]
    %v233 = vld [vmem:[#allocation5 + $0x300] sm:$0xff]
    %v234 = vld [vmem:[#allocation5 + $0x308] sm:$0xff]
    %v235 = vld [vmem:[#allocation5 + $0x310] sm:$0xff]
    %v236 = vld [vmem:[#allocation5 + $0x318] sm:$0xff]
    %v237 = vld [vmem:[#allocation5 + $0x320] sm:$0xff]
    %v238 = vld [vmem:[#allocation5 + $0x328] sm:$0xff]
    %v239 = vld [vmem:[#allocation5 + $0x330] sm:$0xff]
    %v240 = vld [vmem:[#allocation5 + $0x338] sm:$0xff]
    %v241 = vld [vmem:[#allocation5 + $0x340] sm:$0xff]
    %v242 = vld [vmem:[#allocation5 + $0x348] sm:$0xff]
    %v243 = vld [vmem:[#allocation5 + $0x350] sm:$0xff]
    %v244 = vld [vmem:[#allocation5 + $0x358] sm:$0xff]
    %v245 = vld [vmem:[#allocation5 + $0x360] sm:$0xff]
    %v246 = vld [vmem:[#allocation5 + $0x368] sm:$0xff]
    %v247 = vld [vmem:[#allocation5 + $0x370] sm:$0xff]
    %v248 = vld [vmem:[#allocation5 + $0x378] sm:$0xff]
    %v249 = vld [vmem:[#allocation5 + $0x380] sm:$0xff]
    %v250 = vld [vmem:[#allocation5 + $0x388] sm:$0xff]
    %v251 = vld [vmem:[#allocation5 + $0x390] sm:$0xff]
    %v252 = vld [vmem:[#allocation5 + $0x398] sm:$0xff]
    %v253 = vld [vmem:[#allocation5 + $0x3a0] sm:$0xff]
    %v254 = vld [vmem:[#allocation5 + $0x3a8] sm:$0xff]
    %v255 = vld [vmem:[#allocation5 + $0x3b0] sm:$0xff]
    %v256 = vld [vmem:[#allocation5 + $0x3b8] sm:$0xff]
    %v257 = vld [vmem:[#allocation5 + $0x3c0] sm:$0xff]
    %v258 = vld [vmem:[#allocation5 + $0x3c8] sm:$0xff]
    %v259 = vld [vmem:[#allocation5 + $0x3d0] sm:$0xff]
    %v260 = vld [vmem:[#allocation5 + $0x3d8] sm:$0xff]
    %v261 = vld [vmem:[#allocation5 + $0x3e0] sm:$0xff]
    %v262 = vld [vmem:[#allocation5 + $0x3e8] sm:$0xff]
    %v263 = vld [vmem:[#allocation5 + $0x3f0] sm:$0xff]
    %v264 = vld [vmem:[#allocation5 + $0x3f8] sm:$0xff]
    %v265 = vld [vmem:[#allocation5 + $0x400] sm:$0xff]
    %v266 = vld [vmem:[#allocation5 + $0x408] sm:$0xff]
    %v267 = vld [vmem:[#allocation5 + $0x410] sm:$0xff]
    %v268 = vld [vmem:[#allocation5 + $0x418] sm:$0xff]
    %v269 = vld [vmem:[#allocation5 + $0x420] sm:$0xff]
    %v270 = vld [vmem:[#allocation5 + $0x428] sm:$0xff]
    %v271 = vld [vmem:[#allocation5 + $0x430] sm:$0xff]
    %v272 = vld [vmem:[#allocation5 + $0x438] sm:$0xff]
    %v273 = vld [vmem:[#allocation5 + $0x440] sm:$0xff]
    %v274 = vld [vmem:[#allocation5 + $0x448] sm:$0xff]
    %v275 = vld [vmem:[#allocation5 + $0x450] sm:$0xff]
    %v276 = vld [vmem:[#allocation5 + $0x458] sm:$0xff]
    %v277 = vld [vmem:[#allocation5 + $0x460] sm:$0xff]
    %v278 = vld [vmem:[#allocation5 + $0x468] sm:$0xff]
    %v279 = vld [vmem:[#allocation5 + $0x470] sm:$0xff]
    %v280 = vld [vmem:[#allocation5 + $0x478] sm:$0xff]
    %v281 = vld [vmem:[#allocation5 + $0x480] sm:$0xff]
    %v282 = vld [vmem:[#allocation5 + $0x488] sm:$0xff]
    %v283 = vld [vmem:[#allocation5 + $0x490] sm:$0xff]
    %v284 = vld [vmem:[#allocation5 + $0x498] sm:$0xff]
    %v285 = vld [vmem:[#allocation5 + $0x4a0] sm:$0xff]
    %v286 = vld [vmem:[#allocation5 + $0x4a8] sm:$0xff]
    %v287 = vld [vmem:[#allocation5 + $0x4b0] sm:$0xff]
    %v288 = vld [vmem:[#allocation5 + $0x4b8] sm:$0xff]
    %v289 = vld [vmem:[#allocation5 + $0x4c0] sm:$0xff]
    %v290 = vld [vmem:[#allocation5 + $0x4c8] sm:$0xff]
    %v291 = vld [vmem:[#allocation5 + $0x4d0] sm:$0xff]
    %v292 = vld [vmem:[#allocation5 + $0x4d8] sm:$0xff]
    %v293 = vld [vmem:[#allocation5 + $0x4e0] sm:$0xff]
    %v294 = vld [vmem:[#allocation5 + $0x4e8] sm:$0xff]
    %v295 = vld [vmem:[#allocation5 + $0x4f0] sm:$0xff]
    %v296 = vld [vmem:[#allocation5 + $0x4f8] sm:$0xff]
    %v297 = vld [vmem:[#allocation5 + $0x500] sm:$0xff]
    %v298 = vld [vmem:[#allocation5 + $0x508] sm:$0xff]
    %v299 = vld [vmem:[#allocation5 + $0x510] sm:$0xff]
    %v300 = vld [vmem:[#allocation5 + $0x518] sm:$0xff]
    %v301 = vld [vmem:[#allocation5 + $0x520] sm:$0xff]
    %v302 = vld [vmem:[#allocation5 + $0x528] sm:$0xff]
    %v303 = vld [vmem:[#allocation5 + $0x530] sm:$0xff]
    %v304 = vld [vmem:[#allocation5 + $0x538] sm:$0xff]
    %v305 = vld [vmem:[#allocation5 + $0x540] sm:$0xff]
    %v306 = vld [vmem:[#allocation5 + $0x548] sm:$0xff]
    %v307 = vld [vmem:[#allocation5 + $0x550] sm:$0xff]
    %v308 = vld [vmem:[#allocation5 + $0x558] sm:$0xff]
    %v309 = vld [vmem:[#allocation5 + $0x560] sm:$0xff]
    %v310 = vld [vmem:[#allocation5 + $0x568] sm:$0xff]
    %v311 = vld [vmem:[#allocation5 + $0x570] sm:$0xff]
    %v312 = vld [vmem:[#allocation5 + $0x578] sm:$0xff]
    %v313 = vld [vmem:[#allocation5 + $0x580] sm:$0xff]
    %v314 = vld [vmem:[#allocation5 + $0x588] sm:$0xff]
    %v315 = vld [vmem:[#allocation5 + $0x590] sm:$0xff]
    %v316 = vld [vmem:[#allocation5 + $0x598] sm:$0xff]
    %v317 = vld [vmem:[#allocation5 + $0x5a0] sm:$0xff]
    %v318 = vld [vmem:[#allocation5 + $0x5a8] sm:$0xff]
    %v319 = vld [vmem:[#allocation5 + $0x5b0] sm:$0xff]
    %v320 = vld [vmem:[#allocation5 + $0x5b8] sm:$0xff]
    %v321 = vld [vmem:[#allocation5 + $0x5c0] sm:$0xff]
    %v322 = vld [vmem:[#allocation5 + $0x5c8] sm:$0xff]
    %v323 = vld [vmem:[#allocation5 + $0x5d0] sm:$0xff]
    %v324 = vld [vmem:[#allocation5 + $0x5d8] sm:$0xff]
    %v325 = vld [vmem:[#allocation5 + $0x5e0] sm:$0xff]
    %v326 = vld [vmem:[#allocation5 + $0x5e8] sm:$0xff]
    %v327 = vld [vmem:[#allocation5 + $0x5f0] sm:$0xff]
    %v328 = vld [vmem:[#allocation5 + $0x5f8] sm:$0xff]
    %v330 = vlaneseq
    %v331 = vshrl.u32 %v330, 7
    %v332 = vsub.s32 0, %v331
    %v333 = vrot.slane %v120, %v332
    %v334 = vlaneseq
    %v335 = vshrl.u32 %v334, 7
    %v336 = vsub.s32 1, %v335
    %v337 = vrot.slane %v120, %v336
    %v338 = vlaneseq
    %v339 = vshrl.u32 %v338, 7
    %v340 = vsub.s32 2, %v339
    %v341 = vrot.slane %v120, %v340
    %v342 = vlaneseq
    %v343 = vshrl.u32 %v342, 7
    %v344 = vsub.s32 3, %v343
    %v345 = vrot.slane %v120, %v344
    %v542 = vunpack.c.l.b16 %v137
    %v543 = vunpack.c.h.b16 %v137
    %v544 = vunpack.c.l.b16 %v138
    %v545 = vunpack.c.h.b16 %v138
    %v546 = vunpack.c.l.b16 %v139
    %v547 = vunpack.c.h.b16 %v139
    %v548 = vunpack.c.l.b16 %v140
    %v549 = vunpack.c.h.b16 %v140
    %v550 = vunpack.c.l.b16 %v141
    %v551 = vunpack.c.h.b16 %v141
    %v552 = vunpack.c.l.b16 %v142
    %v553 = vunpack.c.h.b16 %v142
    %v554 = vunpack.c.l.b16 %v143
    %v555 = vunpack.c.h.b16 %v143
    %v556 = vunpack.c.l.b16 %v144
    %v557 = vunpack.c.h.b16 %v144
    %v558 = vunpack.c.l.b16 %v145
    %v559 = vunpack.c.h.b16 %v145
    %v560 = vunpack.c.l.b16 %v146
    %v561 = vunpack.c.h.b16 %v146
    %v562 = vunpack.c.l.b16 %v147
    %v563 = vunpack.c.h.b16 %v147
    %v564 = vunpack.c.l.b16 %v148
    %v565 = vunpack.c.h.b16 %v148
    %v566 = vunpack.c.l.b16 %v149
    %v567 = vunpack.c.h.b16 %v149
    %v568 = vunpack.c.l.b16 %v150
    %v569 = vunpack.c.h.b16 %v150
    %v570 = vunpack.c.l.b16 %v151
    %v571 = vunpack.c.h.b16 %v151
    %v572 = vunpack.c.l.b16 %v152
    %v573 = vunpack.c.h.b16 %v152
    %v574 = vunpack.c.l.b16 %v153
    %v575 = vunpack.c.h.b16 %v153
    %v576 = vunpack.c.l.b16 %v154
    %v577 = vunpack.c.h.b16 %v154
    %v578 = vunpack.c.l.b16 %v155
    %v579 = vunpack.c.h.b16 %v155
    %v580 = vunpack.c.l.b16 %v156
    %v581 = vunpack.c.h.b16 %v156
    %v582 = vunpack.c.l.b16 %v157
    %v583 = vunpack.c.h.b16 %v157
    %v584 = vunpack.c.l.b16 %v158
    %v585 = vunpack.c.h.b16 %v158
    %v586 = vunpack.c.l.b16 %v159
    %v587 = vunpack.c.h.b16 %v159
    %v588 = vunpack.c.l.b16 %v160
    %v589 = vunpack.c.h.b16 %v160
    %v590 = vunpack.c.l.b16 %v161
    %v591 = vunpack.c.h.b16 %v161
    %v592 = vunpack.c.l.b16 %v162
    %v593 = vunpack.c.h.b16 %v162
    %v594 = vunpack.c.l.b16 %v163
    %v595 = vunpack.c.h.b16 %v163
    %v596 = vunpack.c.l.b16 %v164
    %v597 = vunpack.c.h.b16 %v164
    %v598 = vunpack.c.l.b16 %v165
    %v599 = vunpack.c.h.b16 %v165
    %v600 = vunpack.c.l.b16 %v166
    %v601 = vunpack.c.h.b16 %v166
    %v602 = vunpack.c.l.b16 %v167
    %v603 = vunpack.c.h.b16 %v167
    %v604 = vunpack.c.l.b16 %v168
    %v605 = vunpack.c.h.b16 %v168
    %v606 = vunpack.c.l.b16 %v169
    %v607 = vunpack.c.h.b16 %v169
    %v608 = vunpack.c.l.b16 %v170
    %v609 = vunpack.c.h.b16 %v170
    %v610 = vunpack.c.l.b16 %v171
    %v611 = vunpack.c.h.b16 %v171
    %v612 = vunpack.c.l.b16 %v172
    %v613 = vunpack.c.h.b16 %v172
    %v614 = vunpack.c.l.b16 %v173
    %v615 = vunpack.c.h.b16 %v173
    %v616 = vunpack.c.l.b16 %v174
    %v617 = vunpack.c.h.b16 %v174
    %v618 = vunpack.c.l.b16 %v175
    %v619 = vunpack.c.h.b16 %v175
    %v620 = vunpack.c.l.b16 %v176
    %v621 = vunpack.c.h.b16 %v176
    %v622 = vunpack.c.l.b16 %v177
    %v623 = vunpack.c.h.b16 %v177
    %v624 = vunpack.c.l.b16 %v178
    %v625 = vunpack.c.h.b16 %v178
    %v626 = vunpack.c.l.b16 %v179
    %v627 = vunpack.c.h.b16 %v179
    %v628 = vunpack.c.l.b16 %v180
    %v629 = vunpack.c.h.b16 %v180
    %v630 = vunpack.c.l.b16 %v181
    %v631 = vunpack.c.h.b16 %v181
    %v632 = vunpack.c.l.b16 %v182
    %v633 = vunpack.c.h.b16 %v182
    %v634 = vunpack.c.l.b16 %v183
    %v635 = vunpack.c.h.b16 %v183
    %v636 = vunpack.c.l.b16 %v184
    %v637 = vunpack.c.h.b16 %v184
    %v638 = vunpack.c.l.b16 %v185
    %v639 = vunpack.c.h.b16 %v185
    %v640 = vunpack.c.l.b16 %v186
    %v641 = vunpack.c.h.b16 %v186
    %v642 = vunpack.c.l.b16 %v187
    %v643 = vunpack.c.h.b16 %v187
    %v644 = vunpack.c.l.b16 %v188
    %v645 = vunpack.c.h.b16 %v188
    %v646 = vunpack.c.l.b16 %v189
    %v647 = vunpack.c.h.b16 %v189
    %v648 = vunpack.c.l.b16 %v190
    %v649 = vunpack.c.h.b16 %v190
    %v650 = vunpack.c.l.b16 %v191
    %v651 = vunpack.c.h.b16 %v191
    %v652 = vunpack.c.l.b16 %v192
    %v653 = vunpack.c.h.b16 %v192
    %v654 = vunpack.c.l.b16 %v193
    %v655 = vunpack.c.h.b16 %v193
    %v656 = vunpack.c.l.b16 %v194
    %v657 = vunpack.c.h.b16 %v194
    %v658 = vunpack.c.l.b16 %v195
    %v659 = vunpack.c.h.b16 %v195
    %v660 = vunpack.c.l.b16 %v196
    %v661 = vunpack.c.h.b16 %v196
    %v662 = vunpack.c.l.b16 %v197
    %v663 = vunpack.c.h.b16 %v197
    %v664 = vunpack.c.l.b16 %v198
    %v665 = vunpack.c.h.b16 %v198
    %v666 = vunpack.c.l.b16 %v199
    %v667 = vunpack.c.h.b16 %v199
    %v668 = vunpack.c.l.b16 %v200
    %v669 = vunpack.c.h.b16 %v200
    %v670 = vunpack.c.l.b16 %v201
    %v671 = vunpack.c.h.b16 %v201
    %v672 = vunpack.c.l.b16 %v202
    %v673 = vunpack.c.h.b16 %v202
    %v674 = vunpack.c.l.b16 %v203
    %v675 = vunpack.c.h.b16 %v203
    %v676 = vunpack.c.l.b16 %v204
    %v677 = vunpack.c.h.b16 %v204
    %v678 = vunpack.c.l.b16 %v205
    %v679 = vunpack.c.h.b16 %v205
    %v680 = vunpack.c.l.b16 %v206
    %v681 = vunpack.c.h.b16 %v206
    %v682 = vunpack.c.l.b16 %v207
    %v683 = vunpack.c.h.b16 %v207
    %v684 = vunpack.c.l.b16 %v208
    %v685 = vunpack.c.h.b16 %v208
    %v686 = vunpack.c.l.b16 %v209
    %v687 = vunpack.c.h.b16 %v209
    %v688 = vunpack.c.l.b16 %v210
    %v689 = vunpack.c.h.b16 %v210
    %v690 = vunpack.c.l.b16 %v211
    %v691 = vunpack.c.h.b16 %v211
    %v692 = vunpack.c.l.b16 %v212
    %v693 = vunpack.c.h.b16 %v212
    %v694 = vunpack.c.l.b16 %v213
    %v695 = vunpack.c.h.b16 %v213
    %v696 = vunpack.c.l.b16 %v214
    %v697 = vunpack.c.h.b16 %v214
    %v698 = vunpack.c.l.b16 %v215
    %v699 = vunpack.c.h.b16 %v215
    %v700 = vunpack.c.l.b16 %v216
    %v701 = vunpack.c.h.b16 %v216
    %v702 = vunpack.c.l.b16 %v217
    %v703 = vunpack.c.h.b16 %v217
    %v704 = vunpack.c.l.b16 %v218
    %v705 = vunpack.c.h.b16 %v218
    %v706 = vunpack.c.l.b16 %v219
    %v707 = vunpack.c.h.b16 %v219
    %v708 = vunpack.c.l.b16 %v220
    %v709 = vunpack.c.h.b16 %v220
    %v710 = vunpack.c.l.b16 %v221
    %v711 = vunpack.c.h.b16 %v221
    %v712 = vunpack.c.l.b16 %v222
    %v713 = vunpack.c.h.b16 %v222
    %v714 = vunpack.c.l.b16 %v223
    %v715 = vunpack.c.h.b16 %v223
    %v716 = vunpack.c.l.b16 %v224
    %v717 = vunpack.c.h.b16 %v224
    %v718 = vunpack.c.l.b16 %v225
    %v719 = vunpack.c.h.b16 %v225
    %v720 = vunpack.c.l.b16 %v226
    %v721 = vunpack.c.h.b16 %v226
    %v722 = vunpack.c.l.b16 %v227
    %v723 = vunpack.c.h.b16 %v227
    %v724 = vunpack.c.l.b16 %v228
    %v725 = vunpack.c.h.b16 %v228
    %v726 = vunpack.c.l.b16 %v229
    %v727 = vunpack.c.h.b16 %v229
    %v728 = vunpack.c.l.b16 %v230
    %v729 = vunpack.c.h.b16 %v230
    %v730 = vunpack.c.l.b16 %v231
    %v731 = vunpack.c.h.b16 %v231
    %v732 = vunpack.c.l.b16 %v232
    %v733 = vunpack.c.h.b16 %v232
    %v734 = vunpack.c.l.b16 %v233
    %v735 = vunpack.c.h.b16 %v233
    %v736 = vunpack.c.l.b16 %v234
    %v737 = vunpack.c.h.b16 %v234
    %v738 = vunpack.c.l.b16 %v235
    %v739 = vunpack.c.h.b16 %v235
    %v740 = vunpack.c.l.b16 %v236
    %v741 = vunpack.c.h.b16 %v236
    %v742 = vunpack.c.l.b16 %v237
    %v743 = vunpack.c.h.b16 %v237
    %v744 = vunpack.c.l.b16 %v238
    %v745 = vunpack.c.h.b16 %v238
    %v746 = vunpack.c.l.b16 %v239
    %v747 = vunpack.c.h.b16 %v239
    %v748 = vunpack.c.l.b16 %v240
    %v749 = vunpack.c.h.b16 %v240
    %v750 = vunpack.c.l.b16 %v241
    %v751 = vunpack.c.h.b16 %v241
    %v752 = vunpack.c.l.b16 %v242
    %v753 = vunpack.c.h.b16 %v242
    %v754 = vunpack.c.l.b16 %v243
    %v755 = vunpack.c.h.b16 %v243
    %v756 = vunpack.c.l.b16 %v244
    %v757 = vunpack.c.h.b16 %v244
    %v758 = vunpack.c.l.b16 %v245
    %v759 = vunpack.c.h.b16 %v245
    %v760 = vunpack.c.l.b16 %v246
    %v761 = vunpack.c.h.b16 %v246
    %v762 = vunpack.c.l.b16 %v247
    %v763 = vunpack.c.h.b16 %v247
    %v764 = vunpack.c.l.b16 %v248
    %v765 = vunpack.c.h.b16 %v248
    %v766 = vunpack.c.l.b16 %v249
    %v767 = vunpack.c.h.b16 %v249
    %v768 = vunpack.c.l.b16 %v250
    %v769 = vunpack.c.h.b16 %v250
    %v770 = vunpack.c.l.b16 %v251
    %v771 = vunpack.c.h.b16 %v251
    %v772 = vunpack.c.l.b16 %v252
    %v773 = vunpack.c.h.b16 %v252
    %v774 = vunpack.c.l.b16 %v253
    %v775 = vunpack.c.h.b16 %v253
    %v776 = vunpack.c.l.b16 %v254
    %v777 = vunpack.c.h.b16 %v254
    %v778 = vunpack.c.l.b16 %v255
    %v779 = vunpack.c.h.b16 %v255
    %v780 = vunpack.c.l.b16 %v256
    %v781 = vunpack.c.h.b16 %v256
    %v782 = vunpack.c.l.b16 %v257
    %v783 = vunpack.c.h.b16 %v257
    %v784 = vunpack.c.l.b16 %v258
    %v785 = vunpack.c.h.b16 %v258
    %v786 = vunpack.c.l.b16 %v259
    %v787 = vunpack.c.h.b16 %v259
    %v788 = vunpack.c.l.b16 %v260
    %v789 = vunpack.c.h.b16 %v260
    %v790 = vunpack.c.l.b16 %v261
    %v791 = vunpack.c.h.b16 %v261
    %v792 = vunpack.c.l.b16 %v262
    %v793 = vunpack.c.h.b16 %v262
    %v794 = vunpack.c.l.b16 %v263
    %v795 = vunpack.c.h.b16 %v263
    %v796 = vunpack.c.l.b16 %v264
    %v797 = vunpack.c.h.b16 %v264
    %v798 = vunpack.c.l.b16 %v265
    %v799 = vunpack.c.h.b16 %v265
    %v800 = vunpack.c.l.b16 %v266
    %v801 = vunpack.c.h.b16 %v266
    %v802 = vunpack.c.l.b16 %v267
    %v803 = vunpack.c.h.b16 %v267
    %v804 = vunpack.c.l.b16 %v268
    %v805 = vunpack.c.h.b16 %v268
    %v806 = vunpack.c.l.b16 %v269
    %v807 = vunpack.c.h.b16 %v269
    %v808 = vunpack.c.l.b16 %v270
    %v809 = vunpack.c.h.b16 %v270
    %v810 = vunpack.c.l.b16 %v271
    %v811 = vunpack.c.h.b16 %v271
    %v812 = vunpack.c.l.b16 %v272
    %v813 = vunpack.c.h.b16 %v272
    %v814 = vunpack.c.l.b16 %v273
    %v815 = vunpack.c.h.b16 %v273
    %v816 = vunpack.c.l.b16 %v274
    %v817 = vunpack.c.h.b16 %v274
    %v818 = vunpack.c.l.b16 %v275
    %v819 = vunpack.c.h.b16 %v275
    %v820 = vunpack.c.l.b16 %v276
    %v821 = vunpack.c.h.b16 %v276
    %v822 = vunpack.c.l.b16 %v277
    %v823 = vunpack.c.h.b16 %v277
    %v824 = vunpack.c.l.b16 %v278
    %v825 = vunpack.c.h.b16 %v278
    %v826 = vunpack.c.l.b16 %v279
    %v827 = vunpack.c.h.b16 %v279
    %v828 = vunpack.c.l.b16 %v280
    %v829 = vunpack.c.h.b16 %v280
    %v830 = vunpack.c.l.b16 %v281
    %v831 = vunpack.c.h.b16 %v281
    %v832 = vunpack.c.l.b16 %v282
    %v833 = vunpack.c.h.b16 %v282
    %v834 = vunpack.c.l.b16 %v283
    %v835 = vunpack.c.h.b16 %v283
    %v836 = vunpack.c.l.b16 %v284
    %v837 = vunpack.c.h.b16 %v284
    %v838 = vunpack.c.l.b16 %v285
    %v839 = vunpack.c.h.b16 %v285
    %v840 = vunpack.c.l.b16 %v286
    %v841 = vunpack.c.h.b16 %v286
    %v842 = vunpack.c.l.b16 %v287
    %v843 = vunpack.c.h.b16 %v287
    %v844 = vunpack.c.l.b16 %v288
    %v845 = vunpack.c.h.b16 %v288
    %v846 = vunpack.c.l.b16 %v289
    %v847 = vunpack.c.h.b16 %v289
    %v848 = vunpack.c.l.b16 %v290
    %v849 = vunpack.c.h.b16 %v290
    %v850 = vunpack.c.l.b16 %v291
    %v851 = vunpack.c.h.b16 %v291
    %v852 = vunpack.c.l.b16 %v292
    %v853 = vunpack.c.h.b16 %v292
    %v854 = vunpack.c.l.b16 %v293
    %v855 = vunpack.c.h.b16 %v293
    %v856 = vunpack.c.l.b16 %v294
    %v857 = vunpack.c.h.b16 %v294
    %v858 = vunpack.c.l.b16 %v295
    %v859 = vunpack.c.h.b16 %v295
    %v860 = vunpack.c.l.b16 %v296
    %v861 = vunpack.c.h.b16 %v296
    %v862 = vunpack.c.l.b16 %v297
    %v863 = vunpack.c.h.b16 %v297
    %v864 = vunpack.c.l.b16 %v298
    %v865 = vunpack.c.h.b16 %v298
    %v866 = vunpack.c.l.b16 %v299
    %v867 = vunpack.c.h.b16 %v299
    %v868 = vunpack.c.l.b16 %v300
    %v869 = vunpack.c.h.b16 %v300
    %v870 = vunpack.c.l.b16 %v301
    %v871 = vunpack.c.h.b16 %v301
    %v872 = vunpack.c.l.b16 %v302
    %v873 = vunpack.c.h.b16 %v302
    %v874 = vunpack.c.l.b16 %v303
    %v875 = vunpack.c.h.b16 %v303
    %v876 = vunpack.c.l.b16 %v304
    %v877 = vunpack.c.h.b16 %v304
    %v878 = vunpack.c.l.b16 %v305
    %v879 = vunpack.c.h.b16 %v305
    %v880 = vunpack.c.l.b16 %v306
    %v881 = vunpack.c.h.b16 %v306
    %v882 = vunpack.c.l.b16 %v307
    %v883 = vunpack.c.h.b16 %v307
    %v884 = vunpack.c.l.b16 %v308
    %v885 = vunpack.c.h.b16 %v308
    %v886 = vunpack.c.l.b16 %v309
    %v887 = vunpack.c.h.b16 %v309
    %v888 = vunpack.c.l.b16 %v310
    %v889 = vunpack.c.h.b16 %v310
    %v890 = vunpack.c.l.b16 %v311
    %v891 = vunpack.c.h.b16 %v311
    %v892 = vunpack.c.l.b16 %v312
    %v893 = vunpack.c.h.b16 %v312
    %v894 = vunpack.c.l.b16 %v313
    %v895 = vunpack.c.h.b16 %v313
    %v896 = vunpack.c.l.b16 %v314
    %v897 = vunpack.c.h.b16 %v314
    %v898 = vunpack.c.l.b16 %v315
    %v899 = vunpack.c.h.b16 %v315
    %v900 = vunpack.c.l.b16 %v316
    %v901 = vunpack.c.h.b16 %v316
    %v902 = vunpack.c.l.b16 %v317
    %v903 = vunpack.c.h.b16 %v317
    %v904 = vunpack.c.l.b16 %v318
    %v905 = vunpack.c.h.b16 %v318
    %v906 = vunpack.c.l.b16 %v319
    %v907 = vunpack.c.h.b16 %v319
    %v908 = vunpack.c.l.b16 %v320
    %v909 = vunpack.c.h.b16 %v320
    %v910 = vunpack.c.l.b16 %v321
    %v911 = vunpack.c.h.b16 %v321
    %v912 = vunpack.c.l.b16 %v322
    %v913 = vunpack.c.h.b16 %v322
    %v914 = vunpack.c.l.b16 %v323
    %v915 = vunpack.c.h.b16 %v323
    %v916 = vunpack.c.l.b16 %v324
    %v917 = vunpack.c.h.b16 %v324
    %v918 = vunpack.c.l.b16 %v325
    %v919 = vunpack.c.h.b16 %v325
    %v920 = vunpack.c.l.b16 %v326
    %v921 = vunpack.c.h.b16 %v326
    %v922 = vunpack.c.l.b16 %v327
    %v923 = vunpack.c.h.b16 %v327
    %v924 = vunpack.c.l.b16 %v328
    %v925 = vunpack.c.h.b16 %v328
    %v926 = vpack.c.b16 %v546, %v542
    %v927 = vpack.c.b16 %v547, %v543
    %v928 = vpack.c.b16 %v548, %v544
    %v929 = vpack.c.b16 %v549, %v545
    %v930 = vpack.c.b16 %v554, %v550
    %v931 = vpack.c.b16 %v555, %v551
    %v932 = vpack.c.b16 %v556, %v552
    %v933 = vpack.c.b16 %v557, %v553
    %v934 = vpack.c.b16 %v562, %v558
    %v935 = vpack.c.b16 %v563, %v559
    %v936 = vpack.c.b16 %v564, %v560
    %v937 = vpack.c.b16 %v565, %v561
    %v938 = vpack.c.b16 %v570, %v566
    %v939 = vpack.c.b16 %v571, %v567
    %v940 = vpack.c.b16 %v572, %v568
    %v941 = vpack.c.b16 %v573, %v569
    %v942 = vpack.c.b16 %v578, %v574
    %v943 = vpack.c.b16 %v579, %v575
    %v944 = vpack.c.b16 %v580, %v576
    %v945 = vpack.c.b16 %v581, %v577
    %v946 = vpack.c.b16 %v586, %v582
    %v947 = vpack.c.b16 %v587, %v583
    %v948 = vpack.c.b16 %v588, %v584
    %v949 = vpack.c.b16 %v589, %v585
    %v950 = vpack.c.b16 %v594, %v590
    %v951 = vpack.c.b16 %v595, %v591
    %v952 = vpack.c.b16 %v596, %v592
    %v953 = vpack.c.b16 %v597, %v593
    %v954 = vpack.c.b16 %v602, %v598
    %v955 = vpack.c.b16 %v603, %v599
    %v956 = vpack.c.b16 %v604, %v600
    %v957 = vpack.c.b16 %v605, %v601
    %v958 = vpack.c.b16 %v610, %v606
    %v959 = vpack.c.b16 %v611, %v607
    %v960 = vpack.c.b16 %v612, %v608
    %v961 = vpack.c.b16 %v613, %v609
    %v962 = vpack.c.b16 %v618, %v614
    %v963 = vpack.c.b16 %v619, %v615
    %v964 = vpack.c.b16 %v620, %v616
    %v965 = vpack.c.b16 %v621, %v617
    %v966 = vpack.c.b16 %v626, %v622
    %v967 = vpack.c.b16 %v627, %v623
    %v968 = vpack.c.b16 %v628, %v624
    %v969 = vpack.c.b16 %v629, %v625
    %v970 = vpack.c.b16 %v634, %v630
    %v971 = vpack.c.b16 %v635, %v631
    %v972 = vpack.c.b16 %v636, %v632
    %v973 = vpack.c.b16 %v637, %v633
    %v974 = vpack.c.b16 %v642, %v638
    %v975 = vpack.c.b16 %v643, %v639
    %v976 = vpack.c.b16 %v644, %v640
    %v977 = vpack.c.b16 %v645, %v641
    %v978 = vpack.c.b16 %v650, %v646
    %v979 = vpack.c.b16 %v651, %v647
    %v980 = vpack.c.b16 %v652, %v648
    %v981 = vpack.c.b16 %v653, %v649
    %v982 = vpack.c.b16 %v658, %v654
    %v983 = vpack.c.b16 %v659, %v655
    %v984 = vpack.c.b16 %v660, %v656
    %v985 = vpack.c.b16 %v661, %v657
    %v986 = vpack.c.b16 %v666, %v662
    %v987 = vpack.c.b16 %v667, %v663
    %v988 = vpack.c.b16 %v668, %v664
    %v989 = vpack.c.b16 %v669, %v665
    %v990 = vpack.c.b16 %v674, %v670
    %v991 = vpack.c.b16 %v675, %v671
    %v992 = vpack.c.b16 %v676, %v672
    %v993 = vpack.c.b16 %v677, %v673
    %v994 = vpack.c.b16 %v682, %v678
    %v995 = vpack.c.b16 %v683, %v679
    %v996 = vpack.c.b16 %v684, %v680
    %v997 = vpack.c.b16 %v685, %v681
    %v998 = vpack.c.b16 %v690, %v686
    %v999 = vpack.c.b16 %v691, %v687
    %v1000 = vpack.c.b16 %v692, %v688
    %v1001 = vpack.c.b16 %v693, %v689
    %v1002 = vpack.c.b16 %v698, %v694
    %v1003 = vpack.c.b16 %v699, %v695
    %v1004 = vpack.c.b16 %v700, %v696
    %v1005 = vpack.c.b16 %v701, %v697
    %v1006 = vpack.c.b16 %v706, %v702
    %v1007 = vpack.c.b16 %v707, %v703
    %v1008 = vpack.c.b16 %v708, %v704
    %v1009 = vpack.c.b16 %v709, %v705
    %v1010 = vpack.c.b16 %v714, %v710
    %v1011 = vpack.c.b16 %v715, %v711
    %v1012 = vpack.c.b16 %v716, %v712
    %v1013 = vpack.c.b16 %v717, %v713
    %v1014 = vpack.c.b16 %v722, %v718
    %v1015 = vpack.c.b16 %v723, %v719
    %v1016 = vpack.c.b16 %v724, %v720
    %v1017 = vpack.c.b16 %v725, %v721
    %v1018 = vpack.c.b16 %v730, %v726
    %v1019 = vpack.c.b16 %v731, %v727
    %v1020 = vpack.c.b16 %v732, %v728
    %v1021 = vpack.c.b16 %v733, %v729
    %v1022 = vpack.c.b16 %v738, %v734
    %v1023 = vpack.c.b16 %v739, %v735
    %v1024 = vpack.c.b16 %v740, %v736
    %v1025 = vpack.c.b16 %v741, %v737
    %v1026 = vpack.c.b16 %v746, %v742
    %v1027 = vpack.c.b16 %v747, %v743
    %v1028 = vpack.c.b16 %v748, %v744
    %v1029 = vpack.c.b16 %v749, %v745
    %v1030 = vpack.c.b16 %v754, %v750
    %v1031 = vpack.c.b16 %v755, %v751
    %v1032 = vpack.c.b16 %v756, %v752
    %v1033 = vpack.c.b16 %v757, %v753
    %v1034 = vpack.c.b16 %v762, %v758
    %v1035 = vpack.c.b16 %v763, %v759
    %v1036 = vpack.c.b16 %v764, %v760
    %v1037 = vpack.c.b16 %v765, %v761
    %v1038 = vpack.c.b16 %v770, %v766
    %v1039 = vpack.c.b16 %v771, %v767
    %v1040 = vpack.c.b16 %v772, %v768
    %v1041 = vpack.c.b16 %v773, %v769
    %v1042 = vpack.c.b16 %v778, %v774
    %v1043 = vpack.c.b16 %v779, %v775
    %v1044 = vpack.c.b16 %v780, %v776
    %v1045 = vpack.c.b16 %v781, %v777
    %v1046 = vpack.c.b16 %v786, %v782
    %v1047 = vpack.c.b16 %v787, %v783
    %v1048 = vpack.c.b16 %v788, %v784
    %v1049 = vpack.c.b16 %v789, %v785
    %v1050 = vpack.c.b16 %v794, %v790
    %v1051 = vpack.c.b16 %v795, %v791
    %v1052 = vpack.c.b16 %v796, %v792
    %v1053 = vpack.c.b16 %v797, %v793
    %v1054 = vpack.c.b16 %v802, %v798
    %v1055 = vpack.c.b16 %v803, %v799
    %v1056 = vpack.c.b16 %v804, %v800
    %v1057 = vpack.c.b16 %v805, %v801
    %v1058 = vpack.c.b16 %v810, %v806
    %v1059 = vpack.c.b16 %v811, %v807
    %v1060 = vpack.c.b16 %v812, %v808
    %v1061 = vpack.c.b16 %v813, %v809
    %v1062 = vpack.c.b16 %v818, %v814
    %v1063 = vpack.c.b16 %v819, %v815
    %v1064 = vpack.c.b16 %v820, %v816
    %v1065 = vpack.c.b16 %v821, %v817
    %v1066 = vpack.c.b16 %v826, %v822
    %v1067 = vpack.c.b16 %v827, %v823
    %v1068 = vpack.c.b16 %v828, %v824
    %v1069 = vpack.c.b16 %v829, %v825
    %v1070 = vpack.c.b16 %v834, %v830
    %v1071 = vpack.c.b16 %v835, %v831
    %v1072 = vpack.c.b16 %v836, %v832
    %v1073 = vpack.c.b16 %v837, %v833
    %v1074 = vpack.c.b16 %v842, %v838
    %v1075 = vpack.c.b16 %v843, %v839
    %v1076 = vpack.c.b16 %v844, %v840
    %v1077 = vpack.c.b16 %v845, %v841
    %v1078 = vpack.c.b16 %v850, %v846
    %v1079 = vpack.c.b16 %v851, %v847
    %v1080 = vpack.c.b16 %v852, %v848
    %v1081 = vpack.c.b16 %v853, %v849
    %v1082 = vpack.c.b16 %v858, %v854
    %v1083 = vpack.c.b16 %v859, %v855
    %v1084 = vpack.c.b16 %v860, %v856
    %v1085 = vpack.c.b16 %v861, %v857
    %v1086 = vpack.c.b16 %v866, %v862
    %v1087 = vpack.c.b16 %v867, %v863
    %v1088 = vpack.c.b16 %v868, %v864
    %v1089 = vpack.c.b16 %v869, %v865
    %v1090 = vpack.c.b16 %v874, %v870
    %v1091 = vpack.c.b16 %v875, %v871
    %v1092 = vpack.c.b16 %v876, %v872
    %v1093 = vpack.c.b16 %v877, %v873
    %v1094 = vpack.c.b16 %v882, %v878
    %v1095 = vpack.c.b16 %v883, %v879
    %v1096 = vpack.c.b16 %v884, %v880
    %v1097 = vpack.c.b16 %v885, %v881
    %v1098 = vpack.c.b16 %v890, %v886
    %v1099 = vpack.c.b16 %v891, %v887
    %v1100 = vpack.c.b16 %v892, %v888
    %v1101 = vpack.c.b16 %v893, %v889
    %v1102 = vpack.c.b16 %v898, %v894
    %v1103 = vpack.c.b16 %v899, %v895
    %v1104 = vpack.c.b16 %v900, %v896
    %v1105 = vpack.c.b16 %v901, %v897
    %v1106 = vpack.c.b16 %v906, %v902
    %v1107 = vpack.c.b16 %v907, %v903
    %v1108 = vpack.c.b16 %v908, %v904
    %v1109 = vpack.c.b16 %v909, %v905
    %v1110 = vpack.c.b16 %v914, %v910
    %v1111 = vpack.c.b16 %v915, %v911
    %v1112 = vpack.c.b16 %v916, %v912
    %v1113 = vpack.c.b16 %v917, %v913
    %v1114 = vpack.c.b16 %v922, %v918
    %v1115 = vpack.c.b16 %v923, %v919
    %v1116 = vpack.c.b16 %v924, %v920
    %v1117 = vpack.c.b16 %v925, %v921
    %1310 = vmatprep.subr.bf16.mxu0 %v927
    %1311 = vmatpush1.bf16.msra.mxu0 %v926
    %1312 = vmatprep.subr.bf16.mxu0 %v931
    %1313 = vmatpush1.bf16.msra.mxu0 %v930
    %1314 = vmatprep.subr.bf16.mxu0 %v935
    %1315 = vmatpush1.bf16.msra.mxu0 %v934
    %1316 = vmatprep.subr.bf16.mxu0 %v939
    %1317 = vmatpush1.bf16.msra.mxu0 %v938
    %1318 = vmatprep.subr.bf16.mxu0 %v943
    %1319 = vmatpush1.bf16.msra.mxu0 %v942
    %1320 = vmatprep.subr.bf16.mxu0 %v947
    %1321 = vmatpush1.bf16.msra.mxu0 %v946
    %1322 = vmatprep.subr.bf16.mxu0 %v951
    %1323 = vmatpush1.bf16.msra.mxu0 %v950
    %1324 = vmatprep.subr.bf16.mxu0 %v955
    %1325 = vmatpush1.bf16.msra.mxu0 %v954
    %1326 = vmatprep.subr.bf16.mxu0 %v959
    %1327 = vmatpush1.bf16.msra.mxu0 %v958
    %1328 = vmatprep.subr.bf16.mxu0 %v963
    %1329 = vmatpush1.bf16.msra.mxu0 %v962
    %1330 = vmatprep.subr.bf16.mxu0 %v967
    %1331 = vmatpush1.bf16.msra.mxu0 %v966
    %1332 = vmatprep.subr.bf16.mxu0 %v971
    %1333 = vmatpush1.bf16.msra.mxu0 %v970
    %1334 = vmatprep.subr.bf16.mxu0 %v975
    %1335 = vmatpush1.bf16.msra.mxu0 %v974
    %1336 = vmatprep.subr.bf16.mxu0 %v979
    %1337 = vmatpush1.bf16.msra.mxu0 %v978
    %1338 = vmatprep.subr.bf16.mxu0 %v983
    %1339 = vmatpush1.bf16.msra.mxu0 %v982
    %1340 = vmatprep.subr.bf16.mxu0 %v987
    %1341 = vmatpush1.bf16.msra.mxu0 %v986
    %1342 = vmatprep.mubr.bf16.mxu0 %v132
    %1343 = vmatmul.mubr.bf16.gmra.mrb[0].mxu0 %v131
    %v1344 = vpop.f32.mrb[0].mxu0
    %v1345 = vadd.f32 %v333, %v1344
    %v1346 = vpop.f32.mrb[0].mxu0
    %v1347 = vadd.f32 %v337, %v1346
    %v1348 = vpop.f32.mrb[0].mxu0
    %v1349 = vpop.f32.mrb[0].mxu0
    %1350 = vdwg.mxu0
    %1351 = vmatprep.subr.bf16.mxu0 %v991
    %1352 = vmatpush1.bf16.msra.mxu0 %v990
    %1353 = vmatprep.subr.bf16.mxu0 %v995
    %1354 = vmatpush1.bf16.msra.mxu0 %v994
    %1355 = vmatprep.subr.bf16.mxu0 %v999
    %1356 = vmatpush1.bf16.msra.mxu0 %v998
    %1357 = vmatprep.subr.bf16.mxu0 %v1003
    %1358 = vmatpush1.bf16.msra.mxu0 %v1002
    %1359 = vmatprep.subr.bf16.mxu0 %v1007
    %1360 = vmatpush1.bf16.msra.mxu0 %v1006
    %1361 = vmatprep.subr.bf16.mxu0 %v1011
    %1362 = vmatpush1.bf16.msra.mxu0 %v1010
    %1363 = vmatprep.subr.bf16.mxu0 %v1015
    %1364 = vmatpush1.bf16.msra.mxu0 %v1014
    %1365 = vmatprep.subr.bf16.mxu0 %v1019
    %1366 = vmatpush1.bf16.msra.mxu0 %v1018
    %1367 = vmatprep.subr.bf16.mxu0 %v1023
    %1368 = vmatpush1.bf16.msra.mxu0 %v1022
    %1369 = vmatprep.subr.bf16.mxu0 %v1027
    %1370 = vmatpush1.bf16.msra.mxu0 %v1026
    %1371 = vmatprep.subr.bf16.mxu0 %v1031
    %1372 = vmatpush1.bf16.msra.mxu0 %v1030
    %1373 = vmatprep.subr.bf16.mxu0 %v1035
    %1374 = vmatpush1.bf16.msra.mxu0 %v1034
    %1375 = vmatprep.subr.bf16.mxu0 %v1039
    %1376 = vmatpush1.bf16.msra.mxu0 %v1038
    %1377 = vmatprep.subr.bf16.mxu0 %v1043
    %1378 = vmatpush1.bf16.msra.mxu0 %v1042
    %1379 = vmatprep.subr.bf16.mxu0 %v1047
    %1380 = vmatpush1.bf16.msra.mxu0 %v1046
    %1381 = vmatprep.subr.bf16.mxu0 %v1051
    %1382 = vmatpush1.bf16.msra.mxu0 %v1050
    %1383 = vmatprep.mubr.bf16.mxu0 %v134
    %1384 = vmatmul.mubr.bf16.gmra.mrb[0].mxu0 %v133
    %v1385 = vpop.f32.mrb[0].mxu0
    %v1386 = vadd.f32 %v1345, %v1385
    %v1387 = vpop.f32.mrb[0].mxu0
    %v1388 = vadd.f32 %v1347, %v1387
    %v1389 = vpop.f32.mrb[0].mxu0
    %v1390 = vpop.f32.mrb[0].mxu0
    %1391 = vdwg.mxu0
    %1392 = vmatprep.subr.bf16.mxu0 %v1055
    %1393 = vmatpush1.bf16.msra.mxu0 %v1054
    %1394 = vmatprep.subr.bf16.mxu0 %v1059
    %1395 = vmatpush1.bf16.msra.mxu0 %v1058
    %1396 = vmatprep.subr.bf16.mxu0 %v1063
    %1397 = vmatpush1.bf16.msra.mxu0 %v1062
    %1398 = vmatprep.subr.bf16.mxu0 %v1067
    %1399 = vmatpush1.bf16.msra.mxu0 %v1066
    %1400 = vmatprep.subr.bf16.mxu0 %v1071
    %1401 = vmatpush1.bf16.msra.mxu0 %v1070
    %1402 = vmatprep.subr.bf16.mxu0 %v1075
    %1403 = vmatpush1.bf16.msra.mxu0 %v1074
    %1404 = vmatprep.subr.bf16.mxu0 %v1079
    %1405 = vmatpush1.bf16.msra.mxu0 %v1078
    %1406 = vmatprep.subr.bf16.mxu0 %v1083
    %1407 = vmatpush1.bf16.msra.mxu0 %v1082
    %1408 = vmatprep.subr.bf16.mxu0 %v1087
    %1409 = vmatpush1.bf16.msra.mxu0 %v1086
    %1410 = vmatprep.subr.bf16.mxu0 %v1091
    %1411 = vmatpush1.bf16.msra.mxu0 %v1090
    %1412 = vmatprep.subr.bf16.mxu0 %v1095
    %1413 = vmatpush1.bf16.msra.mxu0 %v1094
    %1414 = vmatprep.subr.bf16.mxu0 %v1099
    %1415 = vmatpush1.bf16.msra.mxu0 %v1098
    %1416 = vmatprep.subr.bf16.mxu0 %v1103
    %1417 = vmatpush1.bf16.msra.mxu0 %v1102
    %1418 = vmatprep.subr.bf16.mxu0 %v1107
    %1419 = vmatpush1.bf16.msra.mxu0 %v1106
    %1420 = vmatprep.subr.bf16.mxu0 %v1111
    %1421 = vmatpush1.bf16.msra.mxu0 %v1110
    %1422 = vmatprep.subr.bf16.mxu0 %v1115
    %1423 = vmatpush1.bf16.msra.mxu0 %v1114
    %1424 = vmatprep.mubr.bf16.mxu0 %v136
    %1425 = vmatmul.mubr.bf16.gmra.mrb[0].mxu0 %v135
    %v1426 = vpop.f32.mrb[0].mxu0
    %v1427 = vadd.f32 %v1386, %v1426
    %v1428 = vpop.f32.mrb[0].mxu0
    %v1429 = vadd.f32 %v1388, %v1428
    %v1430 = vpop.f32.mrb[0].mxu0
    %v1431 = vpop.f32.mrb[0].mxu0
    %1432 = vdwg.mxu0
    %1433 = vmatprep.subr.bf16.mxu0 %v929
    %1434 = vmatpush1.bf16.msra.mxu0 %v928
    %1435 = vmatprep.subr.bf16.mxu0 %v933
    %1436 = vmatpush1.bf16.msra.mxu0 %v932
    %1437 = vmatprep.subr.bf16.mxu0 %v937
    %1438 = vmatpush1.bf16.msra.mxu0 %v936
    %1439 = vmatprep.subr.bf16.mxu0 %v941
    %1440 = vmatpush1.bf16.msra.mxu0 %v940
    %1441 = vmatprep.subr.bf16.mxu0 %v945
    %1442 = vmatpush1.bf16.msra.mxu0 %v944
    %1443 = vmatprep.subr.bf16.mxu0 %v949
    %1444 = vmatpush1.bf16.msra.mxu0 %v948
    %1445 = vmatprep.subr.bf16.mxu0 %v953
    %1446 = vmatpush1.bf16.msra.mxu0 %v952
    %1447 = vmatprep.subr.bf16.mxu0 %v957
    %1448 = vmatpush1.bf16.msra.mxu0 %v956
    %1449 = vmatprep.subr.bf16.mxu0 %v961
    %1450 = vmatpush1.bf16.msra.mxu0 %v960
    %1451 = vmatprep.subr.bf16.mxu0 %v965
    %1452 = vmatpush1.bf16.msra.mxu0 %v964
    %1453 = vmatprep.subr.bf16.mxu0 %v969
    %1454 = vmatpush1.bf16.msra.mxu0 %v968
    %1455 = vmatprep.subr.bf16.mxu0 %v973
    %1456 = vmatpush1.bf16.msra.mxu0 %v972
    %1457 = vmatprep.subr.bf16.mxu0 %v977
    %1458 = vmatpush1.bf16.msra.mxu0 %v976
    %1459 = vmatprep.subr.bf16.mxu0 %v981
    %1460 = vmatpush1.bf16.msra.mxu0 %v980
    %1461 = vmatprep.subr.bf16.mxu0 %v985
    %1462 = vmatpush1.bf16.msra.mxu0 %v984
    %1463 = vmatprep.subr.bf16.mxu0 %v989
    %1464 = vmatpush1.bf16.msra.mxu0 %v988
    %1465 = vmatprep.mubr.bf16.mxu0 %v132
    %1466 = vmatmul.mubr.bf16.gmra.mrb[0].mxu0 %v131
    %v1467 = vpop.f32.mrb[0].mxu0
    %v1468 = vadd.f32 %v341, %v1467
    %v1469 = vpop.f32.mrb[0].mxu0
    %v1470 = vadd.f32 %v345, %v1469
    %v1471 = vpop.f32.mrb[0].mxu0
    %v1472 = vpop.f32.mrb[0].mxu0
    %1473 = vdwg.mxu0
    %1474 = vmatprep.subr.bf16.mxu0 %v993
    %1475 = vmatpush1.bf16.msra.mxu0 %v992
    %1476 = vmatprep.subr.bf16.mxu0 %v997
    %1477 = vmatpush1.bf16.msra.mxu0 %v996
    %1478 = vmatprep.subr.bf16.mxu0 %v1001
    %1479 = vmatpush1.bf16.msra.mxu0 %v1000
    %1480 = vmatprep.subr.bf16.mxu0 %v1005
    %1481 = vmatpush1.bf16.msra.mxu0 %v1004
    %1482 = vmatprep.subr.bf16.mxu0 %v1009
    %1483 = vmatpush1.bf16.msra.mxu0 %v1008
    %1484 = vmatprep.subr.bf16.mxu0 %v1013
    %1485 = vmatpush1.bf16.msra.mxu0 %v1012
    %1486 = vmatprep.subr.bf16.mxu0 %v1017
    %1487 = vmatpush1.bf16.msra.mxu0 %v1016
    %1488 = vmatprep.subr.bf16.mxu0 %v1021
    %1489 = vmatpush1.bf16.msra.mxu0 %v1020
    %1490 = vmatprep.subr.bf16.mxu0 %v1025
    %1491 = vmatpush1.bf16.msra.mxu0 %v1024
    %1492 = vmatprep.subr.bf16.mxu0 %v1029
    %1493 = vmatpush1.bf16.msra.mxu0 %v1028
    %1494 = vmatprep.subr.bf16.mxu0 %v1033
    %1495 = vmatpush1.bf16.msra.mxu0 %v1032
    %1496 = vmatprep.subr.bf16.mxu0 %v1037
    %1497 = vmatpush1.bf16.msra.mxu0 %v1036
    %1498 = vmatprep.subr.bf16.mxu0 %v1041
    %1499 = vmatpush1.bf16.msra.mxu0 %v1040
    %1500 = vmatprep.subr.bf16.mxu0 %v1045
    %1501 = vmatpush1.bf16.msra.mxu0 %v1044
    %1502 = vmatprep.subr.bf16.mxu0 %v1049
    %1503 = vmatpush1.bf16.msra.mxu0 %v1048
    %1504 = vmatprep.subr.bf16.mxu0 %v1053
    %1505 = vmatpush1.bf16.msra.mxu0 %v1052
    %1506 = vmatprep.mubr.bf16.mxu0 %v134
    %1507 = vmatmul.mubr.bf16.gmra.mrb[0].mxu0 %v133
    %v1508 = vpop.f32.mrb[0].mxu0
    %v1509 = vadd.f32 %v1468, %v1508
    %v1510 = vpop.f32.mrb[0].mxu0
    %v1511 = vadd.f32 %v1470, %v1510
    %v1512 = vpop.f32.mrb[0].mxu0
    %v1513 = vpop.f32.mrb[0].mxu0
    %1514 = vdwg.mxu0
    %1515 = vmatprep.subr.bf16.mxu0 %v1057
    %1516 = vmatpush1.bf16.msra.mxu0 %v1056
    %1517 = vmatprep.subr.bf16.mxu0 %v1061
    %1518 = vmatpush1.bf16.msra.mxu0 %v1060
    %1519 = vmatprep.subr.bf16.mxu0 %v1065
    %1520 = vmatpush1.bf16.msra.mxu0 %v1064
    %1521 = vmatprep.subr.bf16.mxu0 %v1069
    %1522 = vmatpush1.bf16.msra.mxu0 %v1068
    %1523 = vmatprep.subr.bf16.mxu0 %v1073
    %1524 = vmatpush1.bf16.msra.mxu0 %v1072
    %1525 = vmatprep.subr.bf16.mxu0 %v1077
    %1526 = vmatpush1.bf16.msra.mxu0 %v1076
    %1527 = vmatprep.subr.bf16.mxu0 %v1081
    %1528 = vmatpush1.bf16.msra.mxu0 %v1080
    %1529 = vmatprep.subr.bf16.mxu0 %v1085
    %1530 = vmatpush1.bf16.msra.mxu0 %v1084
    %1531 = vmatprep.subr.bf16.mxu0 %v1089
    %1532 = vmatpush1.bf16.msra.mxu0 %v1088
    %1533 = vmatprep.subr.bf16.mxu0 %v1093
    %1534 = vmatpush1.bf16.msra.mxu0 %v1092
    %1535 = vmatprep.subr.bf16.mxu0 %v1097
    %1536 = vmatpush1.bf16.msra.mxu0 %v1096
    %1537 = vmatprep.subr.bf16.mxu0 %v1101
    %1538 = vmatpush1.bf16.msra.mxu0 %v1100
    %1539 = vmatprep.subr.bf16.mxu0 %v1105
    %1540 = vmatpush1.bf16.msra.mxu0 %v1104
    %1541 = vmatprep.subr.bf16.mxu0 %v1109
    %1542 = vmatpush1.bf16.msra.mxu0 %v1108
    %1543 = vmatprep.subr.bf16.mxu0 %v1113
    %1544 = vmatpush1.bf16.msra.mxu0 %v1112
    %1545 = vmatprep.subr.bf16.mxu0 %v1117
    %1546 = vmatpush1.bf16.msra.mxu0 %v1116
    %1547 = vmatprep.mubr.bf16.mxu0 %v136
    %1548 = vmatmul.mubr.bf16.gmra.mrb[0].mxu0 %v135
    %v1549 = vpop.f32.mrb[0].mxu0
    %v1550 = vadd.f32 %v1509, %v1549
    %v1551 = vpop.f32.mrb[0].mxu0
    %v1552 = vadd.f32 %v1511, %v1551
    %v1553 = vpop.f32.mrb[0].mxu0
    %v1554 = vpop.f32.mrb[0].mxu0
    %1555 = vdwg.mxu0
    %v1556 = vmax.f32 %v1427, 0.0
    %v1557 = vmax.f32 %v1429, 0.0
    %v1558 = vmax.f32 %v1550, 0.0
    %v1559 = vmax.f32 %v1552, 0.0
    %v1560 = vpack.c.bf16 %v1556, %v1556
    %v1561 = vpack.c.bf16 %v1557, %v1557
    %v1562 = vpack.c.bf16 %v1558, %v1558
    %v1563 = vpack.c.bf16 %v1559, %v1559
    %v1564 = vld [vmem:[#allocation7] sm:$0xff]
    %v1565 = vld [vmem:[#allocation7 + $0x8] sm:$0xff]
    %v1566 = vld [vmem:[#allocation7 + $0x10] sm:$0xff]
    %v1567 = vld [vmem:[#allocation7 + $0x18] sm:$0xff]
    %v1568 = vld [vmem:[#allocation7 + $0x20] sm:$0xff]
    %v1569 = vld [vmem:[#allocation7 + $0x28] sm:$0xff]
    %v1570 = vld [vmem:[#allocation7 + $0x30] sm:$0xff]
    %v1571 = vld [vmem:[#allocation7 + $0x38] sm:$0xff]
    %v1572 = vld [vmem:[#allocation7 + $0x40] sm:$0xff]
    %v1573 = vld [vmem:[#allocation7 + $0x48] sm:$0xff]
    %v1574 = vld [vmem:[#allocation7 + $0x50] sm:$0xff]
    %v1575 = vld [vmem:[#allocation7 + $0x58] sm:$0xff]
    %v1576 = vld [vmem:[#allocation7 + $0x60] sm:$0xff]
    %v1577 = vld [vmem:[#allocation7 + $0x68] sm:$0xff]
    %v1578 = vld [vmem:[#allocation7 + $0x70] sm:$0xff]
    %v1579 = vld [vmem:[#allocation7 + $0x78] sm:$0xff]
    %v1580 = vld [vmem:[#allocation7 + $0x80] sm:$0xff]
    %v1581 = vld [vmem:[#allocation7 + $0x88] sm:$0xff]
    %v1582 = vld [vmem:[#allocation7 + $0x90] sm:$0xff]
    %v1583 = vld [vmem:[#allocation7 + $0x98] sm:$0xff]
    %v1584 = vld [vmem:[#allocation7 + $0xa0] sm:$0xff]
    %v1585 = vld [vmem:[#allocation7 + $0xa8] sm:$0xff]
    %v1586 = vld [vmem:[#allocation7 + $0xb0] sm:$0xff]
    %v1587 = vld [vmem:[#allocation7 + $0xb8] sm:$0xff]
    %v1588 = vld [vmem:[#allocation7 + $0xc0] sm:$0xff]
    %v1589 = vld [vmem:[#allocation7 + $0xc8] sm:$0xff]
    %v1590 = vld [vmem:[#allocation7 + $0xd0] sm:$0xff]
    %v1591 = vld [vmem:[#allocation7 + $0xd8] sm:$0xff]
    %v1592 = vld [vmem:[#allocation7 + $0xe0] sm:$0xff]
    %v1593 = vld [vmem:[#allocation7 + $0xe8] sm:$0xff]
    %v1594 = vld [vmem:[#allocation7 + $0xf0] sm:$0xff]
    %v1595 = vld [vmem:[#allocation7 + $0xf8] sm:$0xff]
    %v1596 = vld [vmem:[#allocation7 + $0x100] sm:$0xff]
    %v1597 = vld [vmem:[#allocation7 + $0x108] sm:$0xff]
    %v1598 = vld [vmem:[#allocation7 + $0x110] sm:$0xff]
    %v1599 = vld [vmem:[#allocation7 + $0x118] sm:$0xff]
    %v1600 = vld [vmem:[#allocation7 + $0x120] sm:$0xff]
    %v1601 = vld [vmem:[#allocation7 + $0x128] sm:$0xff]
    %v1602 = vld [vmem:[#allocation7 + $0x130] sm:$0xff]
    %v1603 = vld [vmem:[#allocation7 + $0x138] sm:$0xff]
    %v1604 = vld [vmem:[#allocation7 + $0x140] sm:$0xff]
    %v1605 = vld [vmem:[#allocation7 + $0x148] sm:$0xff]
    %v1606 = vld [vmem:[#allocation7 + $0x150] sm:$0xff]
    %v1607 = vld [vmem:[#allocation7 + $0x158] sm:$0xff]
    %v1608 = vld [vmem:[#allocation7 + $0x160] sm:$0xff]
    %v1609 = vld [vmem:[#allocation7 + $0x168] sm:$0xff]
    %v1610 = vld [vmem:[#allocation7 + $0x170] sm:$0xff]
    %v1611 = vld [vmem:[#allocation7 + $0x178] sm:$0xff]
    %v1612 = vld [vmem:[#allocation7 + $0x180] sm:$0xff]
    %v1613 = vld [vmem:[#allocation7 + $0x188] sm:$0xff]
    %v1614 = vld [vmem:[#allocation7 + $0x190] sm:$0xff]
    %v1615 = vld [vmem:[#allocation7 + $0x198] sm:$0xff]
    %v1616 = vld [vmem:[#allocation7 + $0x1a0] sm:$0xff]
    %v1617 = vld [vmem:[#allocation7 + $0x1a8] sm:$0xff]
    %v1618 = vld [vmem:[#allocation7 + $0x1b0] sm:$0xff]
    %v1619 = vld [vmem:[#allocation7 + $0x1b8] sm:$0xff]
    %v1620 = vld [vmem:[#allocation7 + $0x1c0] sm:$0xff]
    %v1621 = vld [vmem:[#allocation7 + $0x1c8] sm:$0xff]
    %v1622 = vld [vmem:[#allocation7 + $0x1d0] sm:$0xff]
    %v1623 = vld [vmem:[#allocation7 + $0x1d8] sm:$0xff]
    %v1624 = vld [vmem:[#allocation7 + $0x1e0] sm:$0xff]
    %v1625 = vld [vmem:[#allocation7 + $0x1e8] sm:$0xff]
    %v1626 = vld [vmem:[#allocation7 + $0x1f0] sm:$0xff]
    %v1627 = vld [vmem:[#allocation7 + $0x1f8] sm:$0xff]
    %v1628 = vld [vmem:[#allocation7 + $0x200] sm:$0xff]
    %v1629 = vld [vmem:[#allocation7 + $0x208] sm:$0xff]
    %v1630 = vld [vmem:[#allocation7 + $0x210] sm:$0xff]
    %v1631 = vld [vmem:[#allocation7 + $0x218] sm:$0xff]
    %v1632 = vld [vmem:[#allocation7 + $0x220] sm:$0xff]
    %v1633 = vld [vmem:[#allocation7 + $0x228] sm:$0xff]
    %v1634 = vld [vmem:[#allocation7 + $0x230] sm:$0xff]
    %v1635 = vld [vmem:[#allocation7 + $0x238] sm:$0xff]
    %v1636 = vld [vmem:[#allocation7 + $0x240] sm:$0xff]
    %v1637 = vld [vmem:[#allocation7 + $0x248] sm:$0xff]
    %v1638 = vld [vmem:[#allocation7 + $0x250] sm:$0xff]
    %v1639 = vld [vmem:[#allocation7 + $0x258] sm:$0xff]
    %v1640 = vld [vmem:[#allocation7 + $0x260] sm:$0xff]
    %v1641 = vld [vmem:[#allocation7 + $0x268] sm:$0xff]
    %v1642 = vld [vmem:[#allocation7 + $0x270] sm:$0xff]
    %v1643 = vld [vmem:[#allocation7 + $0x278] sm:$0xff]
    %v1644 = vld [vmem:[#allocation7 + $0x280] sm:$0xff]
    %v1645 = vld [vmem:[#allocation7 + $0x288] sm:$0xff]
    %v1646 = vld [vmem:[#allocation7 + $0x290] sm:$0xff]
    %v1647 = vld [vmem:[#allocation7 + $0x298] sm:$0xff]
    %v1648 = vld [vmem:[#allocation7 + $0x2a0] sm:$0xff]
    %v1649 = vld [vmem:[#allocation7 + $0x2a8] sm:$0xff]
    %v1650 = vld [vmem:[#allocation7 + $0x2b0] sm:$0xff]
    %v1651 = vld [vmem:[#allocation7 + $0x2b8] sm:$0xff]
    %v1652 = vld [vmem:[#allocation7 + $0x2c0] sm:$0xff]
    %v1653 = vld [vmem:[#allocation7 + $0x2c8] sm:$0xff]
    %v1654 = vld [vmem:[#allocation7 + $0x2d0] sm:$0xff]
    %v1655 = vld [vmem:[#allocation7 + $0x2d8] sm:$0xff]
    %v1656 = vld [vmem:[#allocation7 + $0x2e0] sm:$0xff]
    %v1657 = vld [vmem:[#allocation7 + $0x2e8] sm:$0xff]
    %v1658 = vld [vmem:[#allocation7 + $0x2f0] sm:$0xff]
    %v1659 = vld [vmem:[#allocation7 + $0x2f8] sm:$0xff]
    %v1660 = vld [vmem:[#allocation7 + $0x300] sm:$0xff]
    %v1661 = vld [vmem:[#allocation7 + $0x308] sm:$0xff]
    %v1662 = vld [vmem:[#allocation7 + $0x310] sm:$0xff]
    %v1663 = vld [vmem:[#allocation7 + $0x318] sm:$0xff]
    %v1664 = vld [vmem:[#allocation7 + $0x320] sm:$0xff]
    %v1665 = vld [vmem:[#allocation7 + $0x328] sm:$0xff]
    %v1666 = vld [vmem:[#allocation7 + $0x330] sm:$0xff]
    %v1667 = vld [vmem:[#allocation7 + $0x338] sm:$0xff]
    %v1668 = vld [vmem:[#allocation7 + $0x340] sm:$0xff]
    %v1669 = vld [vmem:[#allocation7 + $0x348] sm:$0xff]
    %v1670 = vld [vmem:[#allocation7 + $0x350] sm:$0xff]
    %v1671 = vld [vmem:[#allocation7 + $0x358] sm:$0xff]
    %v1672 = vld [vmem:[#allocation7 + $0x360] sm:$0xff]
    %v1673 = vld [vmem:[#allocation7 + $0x368] sm:$0xff]
    %v1674 = vld [vmem:[#allocation7 + $0x370] sm:$0xff]
    %v1675 = vld [vmem:[#allocation7 + $0x378] sm:$0xff]
    %v1676 = vld [vmem:[#allocation7 + $0x380] sm:$0xff]
    %v1677 = vld [vmem:[#allocation7 + $0x388] sm:$0xff]
    %v1678 = vld [vmem:[#allocation7 + $0x390] sm:$0xff]
    %v1679 = vld [vmem:[#allocation7 + $0x398] sm:$0xff]
    %v1680 = vld [vmem:[#allocation7 + $0x3a0] sm:$0xff]
    %v1681 = vld [vmem:[#allocation7 + $0x3a8] sm:$0xff]
    %v1682 = vld [vmem:[#allocation7 + $0x3b0] sm:$0xff]
    %v1683 = vld [vmem:[#allocation7 + $0x3b8] sm:$0xff]
    %v1684 = vld [vmem:[#allocation7 + $0x3c0] sm:$0xff]
    %v1685 = vld [vmem:[#allocation7 + $0x3c8] sm:$0xff]
    %v1686 = vld [vmem:[#allocation7 + $0x3d0] sm:$0xff]
    %v1687 = vld [vmem:[#allocation7 + $0x3d8] sm:$0xff]
    %v1688 = vld [vmem:[#allocation7 + $0x3e0] sm:$0xff]
    %v1689 = vld [vmem:[#allocation7 + $0x3e8] sm:$0xff]
    %v1690 = vld [vmem:[#allocation7 + $0x3f0] sm:$0xff]
    %v1691 = vld [vmem:[#allocation7 + $0x3f8] sm:$0xff]
    %v1693 = vlaneseq
    %v1694 = vshrl.u32 %v1693, 7
    %v1695 = vsub.s32 0, %v1694
    %v1696 = vrot.slane %v121, %v1695
    %v1697 = vlaneseq
    %v1698 = vshrl.u32 %v1697, 7
    %v1699 = vsub.s32 1, %v1698
    %v1700 = vrot.slane %v121, %v1699
    %v1701 = vlaneseq
    %v1702 = vshrl.u32 %v1701, 7
    %v1703 = vsub.s32 2, %v1702
    %v1704 = vrot.slane %v121, %v1703
    %v1705 = vlaneseq
    %v1706 = vshrl.u32 %v1705, 7
    %v1707 = vsub.s32 3, %v1706
    %v1708 = vrot.slane %v121, %v1707
    %v1841 = vunpack.c.l.b16 %v1564
    %v1842 = vunpack.c.h.b16 %v1564
    %v1843 = vunpack.c.l.b16 %v1565
    %v1844 = vunpack.c.h.b16 %v1565
    %v1845 = vunpack.c.l.b16 %v1566
    %v1846 = vunpack.c.h.b16 %v1566
    %v1847 = vunpack.c.l.b16 %v1567
    %v1848 = vunpack.c.h.b16 %v1567
    %v1849 = vunpack.c.l.b16 %v1568
    %v1850 = vunpack.c.h.b16 %v1568
    %v1851 = vunpack.c.l.b16 %v1569
    %v1852 = vunpack.c.h.b16 %v1569
    %v1853 = vunpack.c.l.b16 %v1570
    %v1854 = vunpack.c.h.b16 %v1570
    %v1855 = vunpack.c.l.b16 %v1571
    %v1856 = vunpack.c.h.b16 %v1571
    %v1857 = vunpack.c.l.b16 %v1572
    %v1858 = vunpack.c.h.b16 %v1572
    %v1859 = vunpack.c.l.b16 %v1573
    %v1860 = vunpack.c.h.b16 %v1573
    %v1861 = vunpack.c.l.b16 %v1574
    %v1862 = vunpack.c.h.b16 %v1574
    %v1863 = vunpack.c.l.b16 %v1575
    %v1864 = vunpack.c.h.b16 %v1575
    %v1865 = vunpack.c.l.b16 %v1576
    %v1866 = vunpack.c.h.b16 %v1576
    %v1867 = vunpack.c.l.b16 %v1577
    %v1868 = vunpack.c.h.b16 %v1577
    %v1869 = vunpack.c.l.b16 %v1578
    %v1870 = vunpack.c.h.b16 %v1578
    %v1871 = vunpack.c.l.b16 %v1579
    %v1872 = vunpack.c.h.b16 %v1579
    %v1873 = vunpack.c.l.b16 %v1580
    %v1874 = vunpack.c.h.b16 %v1580
    %v1875 = vunpack.c.l.b16 %v1581
    %v1876 = vunpack.c.h.b16 %v1581
    %v1877 = vunpack.c.l.b16 %v1582
    %v1878 = vunpack.c.h.b16 %v1582
    %v1879 = vunpack.c.l.b16 %v1583
    %v1880 = vunpack.c.h.b16 %v1583
    %v1881 = vunpack.c.l.b16 %v1584
    %v1882 = vunpack.c.h.b16 %v1584
    %v1883 = vunpack.c.l.b16 %v1585
    %v1884 = vunpack.c.h.b16 %v1585
    %v1885 = vunpack.c.l.b16 %v1586
    %v1886 = vunpack.c.h.b16 %v1586
    %v1887 = vunpack.c.l.b16 %v1587
    %v1888 = vunpack.c.h.b16 %v1587
    %v1889 = vunpack.c.l.b16 %v1588
    %v1890 = vunpack.c.h.b16 %v1588
    %v1891 = vunpack.c.l.b16 %v1589
    %v1892 = vunpack.c.h.b16 %v1589
    %v1893 = vunpack.c.l.b16 %v1590
    %v1894 = vunpack.c.h.b16 %v1590
    %v1895 = vunpack.c.l.b16 %v1591
    %v1896 = vunpack.c.h.b16 %v1591
    %v1897 = vunpack.c.l.b16 %v1592
    %v1898 = vunpack.c.h.b16 %v1592
    %v1899 = vunpack.c.l.b16 %v1593
    %v1900 = vunpack.c.h.b16 %v1593
    %v1901 = vunpack.c.l.b16 %v1594
    %v1902 = vunpack.c.h.b16 %v1594
    %v1903 = vunpack.c.l.b16 %v1595
    %v1904 = vunpack.c.h.b16 %v1595
    %v1905 = vunpack.c.l.b16 %v1596
    %v1906 = vunpack.c.h.b16 %v1596
    %v1907 = vunpack.c.l.b16 %v1597
    %v1908 = vunpack.c.h.b16 %v1597
    %v1909 = vunpack.c.l.b16 %v1598
    %v1910 = vunpack.c.h.b16 %v1598
    %v1911 = vunpack.c.l.b16 %v1599
    %v1912 = vunpack.c.h.b16 %v1599
    %v1913 = vunpack.c.l.b16 %v1600
    %v1914 = vunpack.c.h.b16 %v1600
    %v1915 = vunpack.c.l.b16 %v1601
    %v1916 = vunpack.c.h.b16 %v1601
    %v1917 = vunpack.c.l.b16 %v1602
    %v1918 = vunpack.c.h.b16 %v1602
    %v1919 = vunpack.c.l.b16 %v1603
    %v1920 = vunpack.c.h.b16 %v1603
    %v1921 = vunpack.c.l.b16 %v1604
    %v1922 = vunpack.c.h.b16 %v1604
    %v1923 = vunpack.c.l.b16 %v1605
    %v1924 = vunpack.c.h.b16 %v1605
    %v1925 = vunpack.c.l.b16 %v1606
    %v1926 = vunpack.c.h.b16 %v1606
    %v1927 = vunpack.c.l.b16 %v1607
    %v1928 = vunpack.c.h.b16 %v1607
    %v1929 = vunpack.c.l.b16 %v1608
    %v1930 = vunpack.c.h.b16 %v1608
    %v1931 = vunpack.c.l.b16 %v1609
    %v1932 = vunpack.c.h.b16 %v1609
    %v1933 = vunpack.c.l.b16 %v1610
    %v1934 = vunpack.c.h.b16 %v1610
    %v1935 = vunpack.c.l.b16 %v1611
    %v1936 = vunpack.c.h.b16 %v1611
    %v1937 = vunpack.c.l.b16 %v1612
    %v1938 = vunpack.c.h.b16 %v1612
    %v1939 = vunpack.c.l.b16 %v1613
    %v1940 = vunpack.c.h.b16 %v1613
    %v1941 = vunpack.c.l.b16 %v1614
    %v1942 = vunpack.c.h.b16 %v1614
    %v1943 = vunpack.c.l.b16 %v1615
    %v1944 = vunpack.c.h.b16 %v1615
    %v1945 = vunpack.c.l.b16 %v1616
    %v1946 = vunpack.c.h.b16 %v1616
    %v1947 = vunpack.c.l.b16 %v1617
    %v1948 = vunpack.c.h.b16 %v1617
    %v1949 = vunpack.c.l.b16 %v1618
    %v1950 = vunpack.c.h.b16 %v1618
    %v1951 = vunpack.c.l.b16 %v1619
    %v1952 = vunpack.c.h.b16 %v1619
    %v1953 = vunpack.c.l.b16 %v1620
    %v1954 = vunpack.c.h.b16 %v1620
    %v1955 = vunpack.c.l.b16 %v1621
    %v1956 = vunpack.c.h.b16 %v1621
    %v1957 = vunpack.c.l.b16 %v1622
    %v1958 = vunpack.c.h.b16 %v1622
    %v1959 = vunpack.c.l.b16 %v1623
    %v1960 = vunpack.c.h.b16 %v1623
    %v1961 = vunpack.c.l.b16 %v1624
    %v1962 = vunpack.c.h.b16 %v1624
    %v1963 = vunpack.c.l.b16 %v1625
    %v1964 = vunpack.c.h.b16 %v1625
    %v1965 = vunpack.c.l.b16 %v1626
    %v1966 = vunpack.c.h.b16 %v1626
    %v1967 = vunpack.c.l.b16 %v1627
    %v1968 = vunpack.c.h.b16 %v1627
    %v1969 = vunpack.c.l.b16 %v1628
    %v1970 = vunpack.c.h.b16 %v1628
    %v1971 = vunpack.c.l.b16 %v1629
    %v1972 = vunpack.c.h.b16 %v1629
    %v1973 = vunpack.c.l.b16 %v1630
    %v1974 = vunpack.c.h.b16 %v1630
    %v1975 = vunpack.c.l.b16 %v1631
    %v1976 = vunpack.c.h.b16 %v1631
    %v1977 = vunpack.c.l.b16 %v1632
    %v1978 = vunpack.c.h.b16 %v1632
    %v1979 = vunpack.c.l.b16 %v1633
    %v1980 = vunpack.c.h.b16 %v1633
    %v1981 = vunpack.c.l.b16 %v1634
    %v1982 = vunpack.c.h.b16 %v1634
    %v1983 = vunpack.c.l.b16 %v1635
    %v1984 = vunpack.c.h.b16 %v1635
    %v1985 = vunpack.c.l.b16 %v1636
    %v1986 = vunpack.c.h.b16 %v1636
    %v1987 = vunpack.c.l.b16 %v1637
    %v1988 = vunpack.c.h.b16 %v1637
    %v1989 = vunpack.c.l.b16 %v1638
    %v1990 = vunpack.c.h.b16 %v1638
    %v1991 = vunpack.c.l.b16 %v1639
    %v1992 = vunpack.c.h.b16 %v1639
    %v1993 = vunpack.c.l.b16 %v1640
    %v1994 = vunpack.c.h.b16 %v1640
    %v1995 = vunpack.c.l.b16 %v1641
    %v1996 = vunpack.c.h.b16 %v1641
    %v1997 = vunpack.c.l.b16 %v1642
    %v1998 = vunpack.c.h.b16 %v1642
    %v1999 = vunpack.c.l.b16 %v1643
    %v2000 = vunpack.c.h.b16 %v1643
    %v2001 = vunpack.c.l.b16 %v1644
    %v2002 = vunpack.c.h.b16 %v1644
    %v2003 = vunpack.c.l.b16 %v1645
    %v2004 = vunpack.c.h.b16 %v1645
    %v2005 = vunpack.c.l.b16 %v1646
    %v2006 = vunpack.c.h.b16 %v1646
    %v2007 = vunpack.c.l.b16 %v1647
    %v2008 = vunpack.c.h.b16 %v1647
    %v2009 = vunpack.c.l.b16 %v1648
    %v2010 = vunpack.c.h.b16 %v1648
    %v2011 = vunpack.c.l.b16 %v1649
    %v2012 = vunpack.c.h.b16 %v1649
    %v2013 = vunpack.c.l.b16 %v1650
    %v2014 = vunpack.c.h.b16 %v1650
    %v2015 = vunpack.c.l.b16 %v1651
    %v2016 = vunpack.c.h.b16 %v1651
    %v2017 = vunpack.c.l.b16 %v1652
    %v2018 = vunpack.c.h.b16 %v1652
    %v2019 = vunpack.c.l.b16 %v1653
    %v2020 = vunpack.c.h.b16 %v1653
    %v2021 = vunpack.c.l.b16 %v1654
    %v2022 = vunpack.c.h.b16 %v1654
    %v2023 = vunpack.c.l.b16 %v1655
    %v2024 = vunpack.c.h.b16 %v1655
    %v2025 = vunpack.c.l.b16 %v1656
    %v2026 = vunpack.c.h.b16 %v1656
    %v2027 = vunpack.c.l.b16 %v1657
    %v2028 = vunpack.c.h.b16 %v1657
    %v2029 = vunpack.c.l.b16 %v1658
    %v2030 = vunpack.c.h.b16 %v1658
    %v2031 = vunpack.c.l.b16 %v1659
    %v2032 = vunpack.c.h.b16 %v1659
    %v2033 = vunpack.c.l.b16 %v1660
    %v2034 = vunpack.c.h.b16 %v1660
    %v2035 = vunpack.c.l.b16 %v1661
    %v2036 = vunpack.c.h.b16 %v1661
    %v2037 = vunpack.c.l.b16 %v1662
    %v2038 = vunpack.c.h.b16 %v1662
    %v2039 = vunpack.c.l.b16 %v1663
    %v2040 = vunpack.c.h.b16 %v1663
    %v2041 = vunpack.c.l.b16 %v1664
    %v2042 = vunpack.c.h.b16 %v1664
    %v2043 = vunpack.c.l.b16 %v1665
    %v2044 = vunpack.c.h.b16 %v1665
    %v2045 = vunpack.c.l.b16 %v1666
    %v2046 = vunpack.c.h.b16 %v1666
    %v2047 = vunpack.c.l.b16 %v1667
    %v2048 = vunpack.c.h.b16 %v1667
    %v2049 = vunpack.c.l.b16 %v1668
    %v2050 = vunpack.c.h.b16 %v1668
    %v2051 = vunpack.c.l.b16 %v1669
    %v2052 = vunpack.c.h.b16 %v1669
    %v2053 = vunpack.c.l.b16 %v1670
    %v2054 = vunpack.c.h.b16 %v1670
    %v2055 = vunpack.c.l.b16 %v1671
    %v2056 = vunpack.c.h.b16 %v1671
    %v2057 = vunpack.c.l.b16 %v1672
    %v2058 = vunpack.c.h.b16 %v1672
    %v2059 = vunpack.c.l.b16 %v1673
    %v2060 = vunpack.c.h.b16 %v1673
    %v2061 = vunpack.c.l.b16 %v1674
    %v2062 = vunpack.c.h.b16 %v1674
    %v2063 = vunpack.c.l.b16 %v1675
    %v2064 = vunpack.c.h.b16 %v1675
    %v2065 = vunpack.c.l.b16 %v1676
    %v2066 = vunpack.c.h.b16 %v1676
    %v2067 = vunpack.c.l.b16 %v1677
    %v2068 = vunpack.c.h.b16 %v1677
    %v2069 = vunpack.c.l.b16 %v1678
    %v2070 = vunpack.c.h.b16 %v1678
    %v2071 = vunpack.c.l.b16 %v1679
    %v2072 = vunpack.c.h.b16 %v1679
    %v2073 = vunpack.c.l.b16 %v1680
    %v2074 = vunpack.c.h.b16 %v1680
    %v2075 = vunpack.c.l.b16 %v1681
    %v2076 = vunpack.c.h.b16 %v1681
    %v2077 = vunpack.c.l.b16 %v1682
    %v2078 = vunpack.c.h.b16 %v1682
    %v2079 = vunpack.c.l.b16 %v1683
    %v2080 = vunpack.c.h.b16 %v1683
    %v2081 = vunpack.c.l.b16 %v1684
    %v2082 = vunpack.c.h.b16 %v1684
    %v2083 = vunpack.c.l.b16 %v1685
    %v2084 = vunpack.c.h.b16 %v1685
    %v2085 = vunpack.c.l.b16 %v1686
    %v2086 = vunpack.c.h.b16 %v1686
    %v2087 = vunpack.c.l.b16 %v1687
    %v2088 = vunpack.c.h.b16 %v1687
    %v2089 = vunpack.c.l.b16 %v1688
    %v2090 = vunpack.c.h.b16 %v1688
    %v2091 = vunpack.c.l.b16 %v1689
    %v2092 = vunpack.c.h.b16 %v1689
    %v2093 = vunpack.c.l.b16 %v1690
    %v2094 = vunpack.c.h.b16 %v1690
    %v2095 = vunpack.c.l.b16 %v1691
    %v2096 = vunpack.c.h.b16 %v1691
    %v2097 = vpack.c.b16 %v1845, %v1841
    %v2098 = vpack.c.b16 %v1846, %v1842
    %v2099 = vpack.c.b16 %v1847, %v1843
    %v2100 = vpack.c.b16 %v1848, %v1844
    %v2101 = vpack.c.b16 %v1853, %v1849
    %v2102 = vpack.c.b16 %v1854, %v1850
    %v2103 = vpack.c.b16 %v1855, %v1851
    %v2104 = vpack.c.b16 %v1856, %v1852
    %v2105 = vpack.c.b16 %v1861, %v1857
    %v2106 = vpack.c.b16 %v1862, %v1858
    %v2107 = vpack.c.b16 %v1863, %v1859
    %v2108 = vpack.c.b16 %v1864, %v1860
    %v2109 = vpack.c.b16 %v1869, %v1865
    %v2110 = vpack.c.b16 %v1870, %v1866
    %v2111 = vpack.c.b16 %v1871, %v1867
    %v2112 = vpack.c.b16 %v1872, %v1868
    %v2113 = vpack.c.b16 %v1877, %v1873
    %v2114 = vpack.c.b16 %v1878, %v1874
    %v2115 = vpack.c.b16 %v1879, %v1875
    %v2116 = vpack.c.b16 %v1880, %v1876
    %v2117 = vpack.c.b16 %v1885, %v1881
    %v2118 = vpack.c.b16 %v1886, %v1882
    %v2119 = vpack.c.b16 %v1887, %v1883
    %v2120 = vpack.c.b16 %v1888, %v1884
    %v2121 = vpack.c.b16 %v1893, %v1889
    %v2122 = vpack.c.b16 %v1894, %v1890
    %v2123 = vpack.c.b16 %v1895, %v1891
    %v2124 = vpack.c.b16 %v1896, %v1892
    %v2125 = vpack.c.b16 %v1901, %v1897
    %v2126 = vpack.c.b16 %v1902, %v1898
    %v2127 = vpack.c.b16 %v1903, %v1899
    %v2128 = vpack.c.b16 %v1904, %v1900
    %v2129 = vpack.c.b16 %v1909, %v1905
    %v2130 = vpack.c.b16 %v1910, %v1906
    %v2131 = vpack.c.b16 %v1911, %v1907
    %v2132 = vpack.c.b16 %v1912, %v1908
    %v2133 = vpack.c.b16 %v1917, %v1913
    %v2134 = vpack.c.b16 %v1918, %v1914
    %v2135 = vpack.c.b16 %v1919, %v1915
    %v2136 = vpack.c.b16 %v1920, %v1916
    %v2137 = vpack.c.b16 %v1925, %v1921
    %v2138 = vpack.c.b16 %v1926, %v1922
    %v2139 = vpack.c.b16 %v1927, %v1923
    %v2140 = vpack.c.b16 %v1928, %v1924
    %v2141 = vpack.c.b16 %v1933, %v1929
    %v2142 = vpack.c.b16 %v1934, %v1930
    %v2143 = vpack.c.b16 %v1935, %v1931
    %v2144 = vpack.c.b16 %v1936, %v1932
    %v2145 = vpack.c.b16 %v1941, %v1937
    %v2146 = vpack.c.b16 %v1942, %v1938
    %v2147 = vpack.c.b16 %v1943, %v1939
    %v2148 = vpack.c.b16 %v1944, %v1940
    %v2149 = vpack.c.b16 %v1949, %v1945
    %v2150 = vpack.c.b16 %v1950, %v1946
    %v2151 = vpack.c.b16 %v1951, %v1947
    %v2152 = vpack.c.b16 %v1952, %v1948
    %v2153 = vpack.c.b16 %v1957, %v1953
    %v2154 = vpack.c.b16 %v1958, %v1954
    %v2155 = vpack.c.b16 %v1959, %v1955
    %v2156 = vpack.c.b16 %v1960, %v1956
    %v2157 = vpack.c.b16 %v1965, %v1961
    %v2158 = vpack.c.b16 %v1966, %v1962
    %v2159 = vpack.c.b16 %v1967, %v1963
    %v2160 = vpack.c.b16 %v1968, %v1964
    %v2161 = vpack.c.b16 %v1973, %v1969
    %v2162 = vpack.c.b16 %v1974, %v1970
    %v2163 = vpack.c.b16 %v1975, %v1971
    %v2164 = vpack.c.b16 %v1976, %v1972
    %v2165 = vpack.c.b16 %v1981, %v1977
    %v2166 = vpack.c.b16 %v1982, %v1978
    %v2167 = vpack.c.b16 %v1983, %v1979
    %v2168 = vpack.c.b16 %v1984, %v1980
    %v2169 = vpack.c.b16 %v1989, %v1985
    %v2170 = vpack.c.b16 %v1990, %v1986
    %v2171 = vpack.c.b16 %v1991, %v1987
    %v2172 = vpack.c.b16 %v1992, %v1988
    %v2173 = vpack.c.b16 %v1997, %v1993
    %v2174 = vpack.c.b16 %v1998, %v1994
    %v2175 = vpack.c.b16 %v1999, %v1995
    %v2176 = vpack.c.b16 %v2000, %v1996
    %v2177 = vpack.c.b16 %v2005, %v2001
    %v2178 = vpack.c.b16 %v2006, %v2002
    %v2179 = vpack.c.b16 %v2007, %v2003
    %v2180 = vpack.c.b16 %v2008, %v2004
    %v2181 = vpack.c.b16 %v2013, %v2009
    %v2182 = vpack.c.b16 %v2014, %v2010
    %v2183 = vpack.c.b16 %v2015, %v2011
    %v2184 = vpack.c.b16 %v2016, %v2012
    %v2185 = vpack.c.b16 %v2021, %v2017
    %v2186 = vpack.c.b16 %v2022, %v2018
    %v2187 = vpack.c.b16 %v2023, %v2019
    %v2188 = vpack.c.b16 %v2024, %v2020
    %v2189 = vpack.c.b16 %v2029, %v2025
    %v2190 = vpack.c.b16 %v2030, %v2026
    %v2191 = vpack.c.b16 %v2031, %v2027
    %v2192 = vpack.c.b16 %v2032, %v2028
    %v2193 = vpack.c.b16 %v2037, %v2033
    %v2194 = vpack.c.b16 %v2038, %v2034
    %v2195 = vpack.c.b16 %v2039, %v2035
    %v2196 = vpack.c.b16 %v2040, %v2036
    %v2197 = vpack.c.b16 %v2045, %v2041
    %v2198 = vpack.c.b16 %v2046, %v2042
    %v2199 = vpack.c.b16 %v2047, %v2043
    %v2200 = vpack.c.b16 %v2048, %v2044
    %v2201 = vpack.c.b16 %v2053, %v2049
    %v2202 = vpack.c.b16 %v2054, %v2050
    %v2203 = vpack.c.b16 %v2055, %v2051
    %v2204 = vpack.c.b16 %v2056, %v2052
    %v2205 = vpack.c.b16 %v2061, %v2057
    %v2206 = vpack.c.b16 %v2062, %v2058
    %v2207 = vpack.c.b16 %v2063, %v2059
    %v2208 = vpack.c.b16 %v2064, %v2060
    %v2209 = vpack.c.b16 %v2069, %v2065
    %v2210 = vpack.c.b16 %v2070, %v2066
    %v2211 = vpack.c.b16 %v2071, %v2067
    %v2212 = vpack.c.b16 %v2072, %v2068
    %v2213 = vpack.c.b16 %v2077, %v2073
    %v2214 = vpack.c.b16 %v2078, %v2074
    %v2215 = vpack.c.b16 %v2079, %v2075
    %v2216 = vpack.c.b16 %v2080, %v2076
    %v2217 = vpack.c.b16 %v2085, %v2081
    %v2218 = vpack.c.b16 %v2086, %v2082
    %v2219 = vpack.c.b16 %v2087, %v2083
    %v2220 = vpack.c.b16 %v2088, %v2084
    %v2221 = vpack.c.b16 %v2093, %v2089
    %v2222 = vpack.c.b16 %v2094, %v2090
    %v2223 = vpack.c.b16 %v2095, %v2091
    %v2224 = vpack.c.b16 %v2096, %v2092
    %2353 = vmatprep.subr.bf16.mxu0 %v2098
    %2354 = vmatpush1.bf16.msra.mxu0 %v2097
    %2355 = vmatprep.subr.bf16.mxu0 %v2102
    %2356 = vmatpush1.bf16.msra.mxu0 %v2101
    %2357 = vmatprep.subr.bf16.mxu0 %v2106
    %2358 = vmatpush1.bf16.msra.mxu0 %v2105
    %2359 = vmatprep.subr.bf16.mxu0 %v2110
    %2360 = vmatpush1.bf16.msra.mxu0 %v2109
    %2361 = vmatprep.subr.bf16.mxu0 %v2114
    %2362 = vmatpush1.bf16.msra.mxu0 %v2113
    %2363 = vmatprep.subr.bf16.mxu0 %v2118
    %2364 = vmatpush1.bf16.msra.mxu0 %v2117
    %2365 = vmatprep.subr.bf16.mxu0 %v2122
    %2366 = vmatpush1.bf16.msra.mxu0 %v2121
    %2367 = vmatprep.subr.bf16.mxu0 %v2126
    %2368 = vmatpush1.bf16.msra.mxu0 %v2125
    %2369 = vmatprep.subr.bf16.mxu0 %v2130
    %2370 = vmatpush1.bf16.msra.mxu0 %v2129
    %2371 = vmatprep.subr.bf16.mxu0 %v2134
    %2372 = vmatpush1.bf16.msra.mxu0 %v2133
    %2373 = vmatprep.subr.bf16.mxu0 %v2138
    %2374 = vmatpush1.bf16.msra.mxu0 %v2137
    %2375 = vmatprep.subr.bf16.mxu0 %v2142
    %2376 = vmatpush1.bf16.msra.mxu0 %v2141
    %2377 = vmatprep.subr.bf16.mxu0 %v2146
    %2378 = vmatpush1.bf16.msra.mxu0 %v2145
    %2379 = vmatprep.subr.bf16.mxu0 %v2150
    %2380 = vmatpush1.bf16.msra.mxu0 %v2149
    %2381 = vmatprep.subr.bf16.mxu0 %v2154
    %2382 = vmatpush1.bf16.msra.mxu0 %v2153
    %2383 = vmatprep.subr.bf16.mxu0 %v2158
    %2384 = vmatpush1.bf16.msra.mxu0 %v2157
    %2385 = vmatprep.mubr.bf16.mxu0 %v1561
    %2386 = vmatmul.mubr.bf16.gmra.mrb[0].mxu0 %v1560
    %v2387 = vpop.f32.mrb[0].mxu0
    %v2388 = vadd.f32 %v1696, %v2387
    %v2389 = vpop.f32.mrb[0].mxu0
    %v2390 = vadd.f32 %v1700, %v2389
    %v2391 = vpop.f32.mrb[0].mxu0
    %v2392 = vpop.f32.mrb[0].mxu0
    %2393 = vdwg.mxu0
    %2394 = vmatprep.subr.bf16.mxu0 %v2162
    %2395 = vmatpush1.bf16.msra.mxu0 %v2161
    %2396 = vmatprep.subr.bf16.mxu0 %v2166
    %2397 = vmatpush1.bf16.msra.mxu0 %v2165
    %2398 = vmatprep.subr.bf16.mxu0 %v2170
    %2399 = vmatpush1.bf16.msra.mxu0 %v2169
    %2400 = vmatprep.subr.bf16.mxu0 %v2174
    %2401 = vmatpush1.bf16.msra.mxu0 %v2173
    %2402 = vmatprep.subr.bf16.mxu0 %v2178
    %2403 = vmatpush1.bf16.msra.mxu0 %v2177
    %2404 = vmatprep.subr.bf16.mxu0 %v2182
    %2405 = vmatpush1.bf16.msra.mxu0 %v2181
    %2406 = vmatprep.subr.bf16.mxu0 %v2186
    %2407 = vmatpush1.bf16.msra.mxu0 %v2185
    %2408 = vmatprep.subr.bf16.mxu0 %v2190
    %2409 = vmatpush1.bf16.msra.mxu0 %v2189
    %2410 = vmatprep.subr.bf16.mxu0 %v2194
    %2411 = vmatpush1.bf16.msra.mxu0 %v2193
    %2412 = vmatprep.subr.bf16.mxu0 %v2198
    %2413 = vmatpush1.bf16.msra.mxu0 %v2197
    %2414 = vmatprep.subr.bf16.mxu0 %v2202
    %2415 = vmatpush1.bf16.msra.mxu0 %v2201
    %2416 = vmatprep.subr.bf16.mxu0 %v2206
    %2417 = vmatpush1.bf16.msra.mxu0 %v2205
    %2418 = vmatprep.subr.bf16.mxu0 %v2210
    %2419 = vmatpush1.bf16.msra.mxu0 %v2209
    %2420 = vmatprep.subr.bf16.mxu0 %v2214
    %2421 = vmatpush1.bf16.msra.mxu0 %v2213
    %2422 = vmatprep.subr.bf16.mxu0 %v2218
    %2423 = vmatpush1.bf16.msra.mxu0 %v2217
    %2424 = vmatprep.subr.bf16.mxu0 %v2222
    %2425 = vmatpush1.bf16.msra.mxu0 %v2221
    %2426 = vmatprep.mubr.bf16.mxu0 %v1563
    %2427 = vmatmul.mubr.bf16.gmra.mrb[0].mxu0 %v1562
    %v2428 = vpop.f32.mrb[0].mxu0
    %v2429 = vadd.f32 %v2388, %v2428
    %v2430 = vpop.f32.mrb[0].mxu0
    %v2431 = vadd.f32 %v2390, %v2430
    %v2432 = vpop.f32.mrb[0].mxu0
    %v2433 = vpop.f32.mrb[0].mxu0
    %2434 = vdwg.mxu0
    %2435 = vmatprep.subr.bf16.mxu0 %v2100
    %2436 = vmatpush1.bf16.msra.mxu0 %v2099
    %2437 = vmatprep.subr.bf16.mxu0 %v2104
    %2438 = vmatpush1.bf16.msra.mxu0 %v2103
    %2439 = vmatprep.subr.bf16.mxu0 %v2108
    %2440 = vmatpush1.bf16.msra.mxu0 %v2107
    %2441 = vmatprep.subr.bf16.mxu0 %v2112
    %2442 = vmatpush1.bf16.msra.mxu0 %v2111
    %2443 = vmatprep.subr.bf16.mxu0 %v2116
    %2444 = vmatpush1.bf16.msra.mxu0 %v2115
    %2445 = vmatprep.subr.bf16.mxu0 %v2120
    %2446 = vmatpush1.bf16.msra.mxu0 %v2119
    %2447 = vmatprep.subr.bf16.mxu0 %v2124
    %2448 = vmatpush1.bf16.msra.mxu0 %v2123
    %2449 = vmatprep.subr.bf16.mxu0 %v2128
    %2450 = vmatpush1.bf16.msra.mxu0 %v2127
    %2451 = vmatprep.subr.bf16.mxu0 %v2132
    %2452 = vmatpush1.bf16.msra.mxu0 %v2131
    %2453 = vmatprep.subr.bf16.mxu0 %v2136
    %2454 = vmatpush1.bf16.msra.mxu0 %v2135
    %2455 = vmatprep.subr.bf16.mxu0 %v2140
    %2456 = vmatpush1.bf16.msra.mxu0 %v2139
    %2457 = vmatprep.subr.bf16.mxu0 %v2144
    %2458 = vmatpush1.bf16.msra.mxu0 %v2143
    %2459 = vmatprep.subr.bf16.mxu0 %v2148
    %2460 = vmatpush1.bf16.msra.mxu0 %v2147
    %2461 = vmatprep.subr.bf16.mxu0 %v2152
    %2462 = vmatpush1.bf16.msra.mxu0 %v2151
    %2463 = vmatprep.subr.bf16.mxu0 %v2156
    %2464 = vmatpush1.bf16.msra.mxu0 %v2155
    %2465 = vmatprep.subr.bf16.mxu0 %v2160
    %2466 = vmatpush1.bf16.msra.mxu0 %v2159
    %2467 = vmatprep.mubr.bf16.mxu0 %v1561
    %2468 = vmatmul.mubr.bf16.gmra.mrb[0].mxu0 %v1560
    %v2469 = vpop.f32.mrb[0].mxu0
    %v2470 = vadd.f32 %v1704, %v2469
    %v2471 = vpop.f32.mrb[0].mxu0
    %v2472 = vadd.f32 %v1708, %v2471
    %v2473 = vpop.f32.mrb[0].mxu0
    %v2474 = vpop.f32.mrb[0].mxu0
    %2475 = vdwg.mxu0
    %2476 = vmatprep.subr.bf16.mxu0 %v2164
    %2477 = vmatpush1.bf16.msra.mxu0 %v2163
    %2478 = vmatprep.subr.bf16.mxu0 %v2168
    %2479 = vmatpush1.bf16.msra.mxu0 %v2167
    %2480 = vmatprep.subr.bf16.mxu0 %v2172
    %2481 = vmatpush1.bf16.msra.mxu0 %v2171
    %2482 = vmatprep.subr.bf16.mxu0 %v2176
    %2483 = vmatpush1.bf16.msra.mxu0 %v2175
    %2484 = vmatprep.subr.bf16.mxu0 %v2180
    %2485 = vmatpush1.bf16.msra.mxu0 %v2179
    %2486 = vmatprep.subr.bf16.mxu0 %v2184
    %2487 = vmatpush1.bf16.msra.mxu0 %v2183
    %2488 = vmatprep.subr.bf16.mxu0 %v2188
    %2489 = vmatpush1.bf16.msra.mxu0 %v2187
    %2490 = vmatprep.subr.bf16.mxu0 %v2192
    %2491 = vmatpush1.bf16.msra.mxu0 %v2191
    %2492 = vmatprep.subr.bf16.mxu0 %v2196
    %2493 = vmatpush1.bf16.msra.mxu0 %v2195
    %2494 = vmatprep.subr.bf16.mxu0 %v2200
    %2495 = vmatpush1.bf16.msra.mxu0 %v2199
    %2496 = vmatprep.subr.bf16.mxu0 %v2204
    %2497 = vmatpush1.bf16.msra.mxu0 %v2203
    %2498 = vmatprep.subr.bf16.mxu0 %v2208
    %2499 = vmatpush1.bf16.msra.mxu0 %v2207
    %2500 = vmatprep.subr.bf16.mxu0 %v2212
    %2501 = vmatpush1.bf16.msra.mxu0 %v2211
    %2502 = vmatprep.subr.bf16.mxu0 %v2216
    %2503 = vmatpush1.bf16.msra.mxu0 %v2215
    %2504 = vmatprep.subr.bf16.mxu0 %v2220
    %2505 = vmatpush1.bf16.msra.mxu0 %v2219
    %2506 = vmatprep.subr.bf16.mxu0 %v2224
    %2507 = vmatpush1.bf16.msra.mxu0 %v2223
    %2508 = vmatprep.mubr.bf16.mxu0 %v1563
    %2509 = vmatmul.mubr.bf16.gmra.mrb[0].mxu0 %v1562
    %v2510 = vpop.f32.mrb[0].mxu0
    %v2511 = vadd.f32 %v2470, %v2510
    %v2512 = vpop.f32.mrb[0].mxu0
    %v2513 = vadd.f32 %v2472, %v2512
    %v2514 = vpop.f32.mrb[0].mxu0
    %v2515 = vpop.f32.mrb[0].mxu0
    %2516 = vdwg.mxu0
    %v2517 = vmax.f32 %v2429, 0.0
    %v2518 = vmax.f32 %v2431, 0.0
    %v2519 = vmax.f32 %v2511, 0.0
    %v2520 = vmax.f32 %v2513, 0.0
    %v2521 = vpack.c.bf16 %v2517, %v2517
    %v2522 = vpack.c.bf16 %v2518, %v2518
    %v2523 = vpack.c.bf16 %v2519, %v2519
    %v2524 = vpack.c.bf16 %v2520, %v2520
    %2525 = vmatprep.subr.bf16.mxu0 %v2098
    %2526 = vmatpush1.bf16.msra.mxu0 %v2097
    %2527 = vmatprep.subr.bf16.mxu0 %v2102
    %2528 = vmatpush1.bf16.msra.mxu0 %v2101
    %2529 = vmatprep.subr.bf16.mxu0 %v2106
    %2530 = vmatpush1.bf16.msra.mxu0 %v2105
    %2531 = vmatprep.subr.bf16.mxu0 %v2110
    %2532 = vmatpush1.bf16.msra.mxu0 %v2109
    %2533 = vmatprep.subr.bf16.mxu0 %v2114
    %2534 = vmatpush1.bf16.msra.mxu0 %v2113
    %2535 = vmatprep.subr.bf16.mxu0 %v2118
    %2536 = vmatpush1.bf16.msra.mxu0 %v2117
    %2537 = vmatprep.subr.bf16.mxu0 %v2122
    %2538 = vmatpush1.bf16.msra.mxu0 %v2121
    %2539 = vmatprep.subr.bf16.mxu0 %v2126
    %2540 = vmatpush1.bf16.msra.mxu0 %v2125
    %2541 = vmatprep.subr.bf16.mxu0 %v2130
    %2542 = vmatpush1.bf16.msra.mxu0 %v2129
    %2543 = vmatprep.subr.bf16.mxu0 %v2134
    %2544 = vmatpush1.bf16.msra.mxu0 %v2133
    %2545 = vmatprep.subr.bf16.mxu0 %v2138
    %2546 = vmatpush1.bf16.msra.mxu0 %v2137
    %2547 = vmatprep.subr.bf16.mxu0 %v2142
    %2548 = vmatpush1.bf16.msra.mxu0 %v2141
    %2549 = vmatprep.subr.bf16.mxu0 %v2146
    %2550 = vmatpush1.bf16.msra.mxu0 %v2145
    %2551 = vmatprep.subr.bf16.mxu0 %v2150
    %2552 = vmatpush1.bf16.msra.mxu0 %v2149
    %2553 = vmatprep.subr.bf16.mxu0 %v2154
    %2554 = vmatpush1.bf16.msra.mxu0 %v2153
    %2555 = vmatprep.subr.bf16.mxu0 %v2158
    %2556 = vmatpush1.bf16.msra.mxu0 %v2157
    %2557 = vmatprep.mubr.bf16.mxu0 %v2522
    %2558 = vmatmul.mubr.bf16.gmra.mrb[0].mxu0 %v2521
    %v2559 = vpop.f32.mrb[0].mxu0
    %v2560 = vadd.f32 %v1696, %v2559
    %v2561 = vpop.f32.mrb[0].mxu0
    %v2562 = vadd.f32 %v1700, %v2561
    %v2563 = vpop.f32.mrb[0].mxu0
    %v2564 = vpop.f32.mrb[0].mxu0
    %2565 = vdwg.mxu0
    %2566 = vmatprep.subr.bf16.mxu0 %v2162
    %2567 = vmatpush1.bf16.msra.mxu0 %v2161
    %2568 = vmatprep.subr.bf16.mxu0 %v2166
    %2569 = vmatpush1.bf16.msra.mxu0 %v2165
    %2570 = vmatprep.subr.bf16.mxu0 %v2170
    %2571 = vmatpush1.bf16.msra.mxu0 %v2169
    %2572 = vmatprep.subr.bf16.mxu0 %v2174
    %2573 = vmatpush1.bf16.msra.mxu0 %v2173
    %2574 = vmatprep.subr.bf16.mxu0 %v2178
    %2575 = vmatpush1.bf16.msra.mxu0 %v2177
    %2576 = vmatprep.subr.bf16.mxu0 %v2182
    %2577 = vmatpush1.bf16.msra.mxu0 %v2181
    %2578 = vmatprep.subr.bf16.mxu0 %v2186
    %2579 = vmatpush1.bf16.msra.mxu0 %v2185
    %2580 = vmatprep.subr.bf16.mxu0 %v2190
    %2581 = vmatpush1.bf16.msra.mxu0 %v2189
    %2582 = vmatprep.subr.bf16.mxu0 %v2194
    %2583 = vmatpush1.bf16.msra.mxu0 %v2193
    %2584 = vmatprep.subr.bf16.mxu0 %v2198
    %2585 = vmatpush1.bf16.msra.mxu0 %v2197
    %2586 = vmatprep.subr.bf16.mxu0 %v2202
    %2587 = vmatpush1.bf16.msra.mxu0 %v2201
    %2588 = vmatprep.subr.bf16.mxu0 %v2206
    %2589 = vmatpush1.bf16.msra.mxu0 %v2205
    %2590 = vmatprep.subr.bf16.mxu0 %v2210
    %2591 = vmatpush1.bf16.msra.mxu0 %v2209
    %2592 = vmatprep.subr.bf16.mxu0 %v2214
    %2593 = vmatpush1.bf16.msra.mxu0 %v2213
    %2594 = vmatprep.subr.bf16.mxu0 %v2218
    %2595 = vmatpush1.bf16.msra.mxu0 %v2217
    %2596 = vmatprep.subr.bf16.mxu0 %v2222
    %2597 = vmatpush1.bf16.msra.mxu0 %v2221
    %2598 = vmatprep.mubr.bf16.mxu0 %v2524
    %2599 = vmatmul.mubr.bf16.gmra.mrb[0].mxu0 %v2523
    %v2600 = vpop.f32.mrb[0].mxu0
    %v2601 = vadd.f32 %v2560, %v2600
    %v2602 = vpop.f32.mrb[0].mxu0
    %v2603 = vadd.f32 %v2562, %v2602
    %v2604 = vpop.f32.mrb[0].mxu0
    %v2605 = vpop.f32.mrb[0].mxu0
    %2606 = vdwg.mxu0
    %2607 = vmatprep.subr.bf16.mxu0 %v2100
    %2608 = vmatpush1.bf16.msra.mxu0 %v2099
    %2609 = vmatprep.subr.bf16.mxu0 %v2104
    %2610 = vmatpush1.bf16.msra.mxu0 %v2103
    %2611 = vmatprep.subr.bf16.mxu0 %v2108
    %2612 = vmatpush1.bf16.msra.mxu0 %v2107
    %2613 = vmatprep.subr.bf16.mxu0 %v2112
    %2614 = vmatpush1.bf16.msra.mxu0 %v2111
    %2615 = vmatprep.subr.bf16.mxu0 %v2116
    %2616 = vmatpush1.bf16.msra.mxu0 %v2115
    %2617 = vmatprep.subr.bf16.mxu0 %v2120
    %2618 = vmatpush1.bf16.msra.mxu0 %v2119
    %2619 = vmatprep.subr.bf16.mxu0 %v2124
    %2620 = vmatpush1.bf16.msra.mxu0 %v2123
    %2621 = vmatprep.subr.bf16.mxu0 %v2128
    %2622 = vmatpush1.bf16.msra.mxu0 %v2127
    %2623 = vmatprep.subr.bf16.mxu0 %v2132
    %2624 = vmatpush1.bf16.msra.mxu0 %v2131
    %2625 = vmatprep.subr.bf16.mxu0 %v2136
    %2626 = vmatpush1.bf16.msra.mxu0 %v2135
    %2627 = vmatprep.subr.bf16.mxu0 %v2140
    %2628 = vmatpush1.bf16.msra.mxu0 %v2139
    %2629 = vmatprep.subr.bf16.mxu0 %v2144
    %2630 = vmatpush1.bf16.msra.mxu0 %v2143
    %2631 = vmatprep.subr.bf16.mxu0 %v2148
    %2632 = vmatpush1.bf16.msra.mxu0 %v2147
    %2633 = vmatprep.subr.bf16.mxu0 %v2152
    %2634 = vmatpush1.bf16.msra.mxu0 %v2151
    %2635 = vmatprep.subr.bf16.mxu0 %v2156
    %2636 = vmatpush1.bf16.msra.mxu0 %v2155
    %2637 = vmatprep.subr.bf16.mxu0 %v2160
    %2638 = vmatpush1.bf16.msra.mxu0 %v2159
    %2639 = vmatprep.mubr.bf16.mxu0 %v2522
    %2640 = vmatmul.mubr.bf16.gmra.mrb[0].mxu0 %v2521
    %v2641 = vpop.f32.mrb[0].mxu0
    %v2642 = vadd.f32 %v1704, %v2641
    %v2643 = vpop.f32.mrb[0].mxu0
    %v2644 = vadd.f32 %v1708, %v2643
    %v2645 = vpop.f32.mrb[0].mxu0
    %v2646 = vpop.f32.mrb[0].mxu0
    %2647 = vdwg.mxu0
    %2648 = vmatprep.subr.bf16.mxu0 %v2164
    %2649 = vmatpush1.bf16.msra.mxu0 %v2163
    %2650 = vmatprep.subr.bf16.mxu0 %v2168
    %2651 = vmatpush1.bf16.msra.mxu0 %v2167
    %2652 = vmatprep.subr.bf16.mxu0 %v2172
    %2653 = vmatpush1.bf16.msra.mxu0 %v2171
    %2654 = vmatprep.subr.bf16.mxu0 %v2176
    %2655 = vmatpush1.bf16.msra.mxu0 %v2175
    %2656 = vmatprep.subr.bf16.mxu0 %v2180
    %2657 = vmatpush1.bf16.msra.mxu0 %v2179
    %2658 = vmatprep.subr.bf16.mxu0 %v2184
    %2659 = vmatpush1.bf16.msra.mxu0 %v2183
    %2660 = vmatprep.subr.bf16.mxu0 %v2188
    %2661 = vmatpush1.bf16.msra.mxu0 %v2187
    %2662 = vmatprep.subr.bf16.mxu0 %v2192
    %2663 = vmatpush1.bf16.msra.mxu0 %v2191
    %2664 = vmatprep.subr.bf16.mxu0 %v2196
    %2665 = vmatpush1.bf16.msra.mxu0 %v2195
    %2666 = vmatprep.subr.bf16.mxu0 %v2200
    %2667 = vmatpush1.bf16.msra.mxu0 %v2199
    %2668 = vmatprep.subr.bf16.mxu0 %v2204
    %2669 = vmatpush1.bf16.msra.mxu0 %v2203
    %2670 = vmatprep.subr.bf16.mxu0 %v2208
    %2671 = vmatpush1.bf16.msra.mxu0 %v2207
    %2672 = vmatprep.subr.bf16.mxu0 %v2212
    %2673 = vmatpush1.bf16.msra.mxu0 %v2211
    %2674 = vmatprep.subr.bf16.mxu0 %v2216
    %2675 = vmatpush1.bf16.msra.mxu0 %v2215
    %2676 = vmatprep.subr.bf16.mxu0 %v2220
    %2677 = vmatpush1.bf16.msra.mxu0 %v2219
    %2678 = vmatprep.subr.bf16.mxu0 %v2224
    %2679 = vmatpush1.bf16.msra.mxu0 %v2223
    %2680 = vmatprep.mubr.bf16.mxu0 %v2524
    %2681 = vmatmul.mubr.bf16.gmra.mrb[0].mxu0 %v2523
    %v2682 = vpop.f32.mrb[0].mxu0
    %v2683 = vadd.f32 %v2642, %v2682
    %v2684 = vpop.f32.mrb[0].mxu0
    %v2685 = vadd.f32 %v2644, %v2684
    %v2686 = vpop.f32.mrb[0].mxu0
    %v2687 = vpop.f32.mrb[0].mxu0
    %2688 = vdwg.mxu0
    %v2689 = vmax.f32 %v2601, 0.0
    %v2690 = vmax.f32 %v2603, 0.0
    %v2691 = vmax.f32 %v2683, 0.0
    %v2692 = vmax.f32 %v2685, 0.0
    %v2693 = vpack.c.bf16 %v2689, %v2689
    %v2694 = vpack.c.bf16 %v2690, %v2690
    %v2695 = vpack.c.bf16 %v2691, %v2691
    %v2696 = vpack.c.bf16 %v2692, %v2692
    %v2697 = vld [vmem:[#allocation8] sm:$0xf]
    %v2698 = vld [vmem:[#allocation8 + $0x4] sm:$0xf]
    %v2699 = vld [vmem:[#allocation8 + $0x8] sm:$0xf]
    %v2700 = vld [vmem:[#allocation8 + $0xc] sm:$0xf]
    %v2701 = vld [vmem:[#allocation8 + $0x10] sm:$0xf]
    %v2702 = vld [vmem:[#allocation8 + $0x14] sm:$0xf]
    %v2703 = vld [vmem:[#allocation8 + $0x18] sm:$0xf]
    %v2704 = vld [vmem:[#allocation8 + $0x1c] sm:$0xf]
    %v2705 = vld [vmem:[#allocation8 + $0x20] sm:$0xf]
    %v2706 = vld [vmem:[#allocation8 + $0x24] sm:$0xf]
    %v2707 = vld [vmem:[#allocation8 + $0x28] sm:$0xf]
    %v2708 = vld [vmem:[#allocation8 + $0x2c] sm:$0xf]
    %v2709 = vld [vmem:[#allocation8 + $0x30] sm:$0xf]
    %v2710 = vld [vmem:[#allocation8 + $0x34] sm:$0xf]
    %v2711 = vld [vmem:[#allocation8 + $0x38] sm:$0xf]
    %v2712 = vld [vmem:[#allocation8 + $0x3c] sm:$0xf]
    %v2713 = vld [vmem:[#allocation8 + $0x40] sm:$0xf]
    %v2714 = vld [vmem:[#allocation8 + $0x44] sm:$0xf]
    %v2715 = vld [vmem:[#allocation8 + $0x48] sm:$0xf]
    %v2716 = vld [vmem:[#allocation8 + $0x4c] sm:$0xf]
    %v2717 = vld [vmem:[#allocation8 + $0x50] sm:$0xf]
    %v2718 = vld [vmem:[#allocation8 + $0x54] sm:$0xf]
    %v2719 = vld [vmem:[#allocation8 + $0x58] sm:$0xf]
    %v2720 = vld [vmem:[#allocation8 + $0x5c] sm:$0xf]
    %v2721 = vld [vmem:[#allocation8 + $0x60] sm:$0xf]
    %v2722 = vld [vmem:[#allocation8 + $0x64] sm:$0xf]
    %v2723 = vld [vmem:[#allocation8 + $0x68] sm:$0xf]
    %v2724 = vld [vmem:[#allocation8 + $0x6c] sm:$0xf]
    %v2725 = vld [vmem:[#allocation8 + $0x70] sm:$0xf]
    %v2726 = vld [vmem:[#allocation8 + $0x74] sm:$0xf]
    %v2727 = vld [vmem:[#allocation8 + $0x78] sm:$0xf]
    %v2728 = vld [vmem:[#allocation8 + $0x7c] sm:$0xf]
    %v2729 = vld [vmem:[#allocation8 + $0x80] sm:$0xf]
    %v2730 = vld [vmem:[#allocation8 + $0x84] sm:$0xf]
    %v2731 = vld [vmem:[#allocation8 + $0x88] sm:$0xf]
    %v2732 = vld [vmem:[#allocation8 + $0x8c] sm:$0xf]
    %v2733 = vld [vmem:[#allocation8 + $0x90] sm:$0xf]
    %v2734 = vld [vmem:[#allocation8 + $0x94] sm:$0xf]
    %v2735 = vld [vmem:[#allocation8 + $0x98] sm:$0xf]
    %v2736 = vld [vmem:[#allocation8 + $0x9c] sm:$0xf]
    %v2737 = vld [vmem:[#allocation8 + $0xa0] sm:$0xf]
    %v2738 = vld [vmem:[#allocation8 + $0xa4] sm:$0xf]
    %v2739 = vld [vmem:[#allocation8 + $0xa8] sm:$0xf]
    %v2740 = vld [vmem:[#allocation8 + $0xac] sm:$0xf]
    %v2741 = vld [vmem:[#allocation8 + $0xb0] sm:$0xf]
    %v2742 = vld [vmem:[#allocation8 + $0xb4] sm:$0xf]
    %v2743 = vld [vmem:[#allocation8 + $0xb8] sm:$0xf]
    %v2744 = vld [vmem:[#allocation8 + $0xbc] sm:$0xf]
    %v2745 = vld [vmem:[#allocation8 + $0xc0] sm:$0xf]
    %v2746 = vld [vmem:[#allocation8 + $0xc4] sm:$0xf]
    %v2747 = vld [vmem:[#allocation8 + $0xc8] sm:$0xf]
    %v2748 = vld [vmem:[#allocation8 + $0xcc] sm:$0xf]
    %v2749 = vld [vmem:[#allocation8 + $0xd0] sm:$0xf]
    %v2750 = vld [vmem:[#allocation8 + $0xd4] sm:$0xf]
    %v2751 = vld [vmem:[#allocation8 + $0xd8] sm:$0xf]
    %v2752 = vld [vmem:[#allocation8 + $0xdc] sm:$0xf]
    %v2753 = vld [vmem:[#allocation8 + $0xe0] sm:$0xf]
    %v2754 = vld [vmem:[#allocation8 + $0xe4] sm:$0xf]
    %v2755 = vld [vmem:[#allocation8 + $0xe8] sm:$0xf]
    %v2756 = vld [vmem:[#allocation8 + $0xec] sm:$0xf]
    %v2757 = vld [vmem:[#allocation8 + $0xf0] sm:$0xf]
    %v2758 = vld [vmem:[#allocation8 + $0xf4] sm:$0xf]
    %v2759 = vld [vmem:[#allocation8 + $0xf8] sm:$0xf]
    %v2760 = vld [vmem:[#allocation8 + $0xfc] sm:$0xf]
    %v2762 = vlaneseq
    %v2763 = vshrl.u32 %v2762, 7
    %v2764 = vsub.s32 0, %v2763
    %v2765 = vrot.slane %v122, %v2764
    %v2831 = vunpack.c.l.b16 %v2697
    %v2832 = vunpack.c.l.b16 %v2698
    %v2833 = vunpack.c.l.b16 %v2699
    %v2834 = vunpack.c.l.b16 %v2700
    %v2835 = vunpack.c.l.b16 %v2701
    %v2836 = vunpack.c.l.b16 %v2702
    %v2837 = vunpack.c.l.b16 %v2703
    %v2838 = vunpack.c.l.b16 %v2704
    %v2839 = vunpack.c.l.b16 %v2705
    %v2840 = vunpack.c.l.b16 %v2706
    %v2841 = vunpack.c.l.b16 %v2707
    %v2842 = vunpack.c.l.b16 %v2708
    %v2843 = vunpack.c.l.b16 %v2709
    %v2844 = vunpack.c.l.b16 %v2710
    %v2845 = vunpack.c.l.b16 %v2711
    %v2846 = vunpack.c.l.b16 %v2712
    %v2847 = vunpack.c.l.b16 %v2713
    %v2848 = vunpack.c.l.b16 %v2714
    %v2849 = vunpack.c.l.b16 %v2715
    %v2850 = vunpack.c.l.b16 %v2716
    %v2851 = vunpack.c.l.b16 %v2717
    %v2852 = vunpack.c.l.b16 %v2718
    %v2853 = vunpack.c.l.b16 %v2719
    %v2854 = vunpack.c.l.b16 %v2720
    %v2855 = vunpack.c.l.b16 %v2721
    %v2856 = vunpack.c.l.b16 %v2722
    %v2857 = vunpack.c.l.b16 %v2723
    %v2858 = vunpack.c.l.b16 %v2724
    %v2859 = vunpack.c.l.b16 %v2725
    %v2860 = vunpack.c.l.b16 %v2726
    %v2861 = vunpack.c.l.b16 %v2727
    %v2862 = vunpack.c.l.b16 %v2728
    %v2863 = vunpack.c.l.b16 %v2729
    %v2864 = vunpack.c.l.b16 %v2730
    %v2865 = vunpack.c.l.b16 %v2731
    %v2866 = vunpack.c.l.b16 %v2732
    %v2867 = vunpack.c.l.b16 %v2733
    %v2868 = vunpack.c.l.b16 %v2734
    %v2869 = vunpack.c.l.b16 %v2735
    %v2870 = vunpack.c.l.b16 %v2736
    %v2871 = vunpack.c.l.b16 %v2737
    %v2872 = vunpack.c.l.b16 %v2738
    %v2873 = vunpack.c.l.b16 %v2739
    %v2874 = vunpack.c.l.b16 %v2740
    %v2875 = vunpack.c.l.b16 %v2741
    %v2876 = vunpack.c.l.b16 %v2742
    %v2877 = vunpack.c.l.b16 %v2743
    %v2878 = vunpack.c.l.b16 %v2744
    %v2879 = vunpack.c.l.b16 %v2745
    %v2880 = vunpack.c.l.b16 %v2746
    %v2881 = vunpack.c.l.b16 %v2747
    %v2882 = vunpack.c.l.b16 %v2748
    %v2883 = vunpack.c.l.b16 %v2749
    %v2884 = vunpack.c.l.b16 %v2750
    %v2885 = vunpack.c.l.b16 %v2751
    %v2886 = vunpack.c.l.b16 %v2752
    %v2887 = vunpack.c.l.b16 %v2753
    %v2888 = vunpack.c.l.b16 %v2754
    %v2889 = vunpack.c.l.b16 %v2755
    %v2890 = vunpack.c.l.b16 %v2756
    %v2891 = vunpack.c.l.b16 %v2757
    %v2892 = vunpack.c.l.b16 %v2758
    %v2893 = vunpack.c.l.b16 %v2759
    %v2894 = vunpack.c.l.b16 %v2760
    %v2895 = vpack.c.b16 %v2832, %v2831
    %v2896 = vpack.c.b16 %v2834, %v2833
    %v2897 = vpack.c.b16 %v2836, %v2835
    %v2898 = vpack.c.b16 %v2838, %v2837
    %v2899 = vpack.c.b16 %v2840, %v2839
    %v2900 = vpack.c.b16 %v2842, %v2841
    %v2901 = vpack.c.b16 %v2844, %v2843
    %v2902 = vpack.c.b16 %v2846, %v2845
    %v2903 = vpack.c.b16 %v2848, %v2847
    %v2904 = vpack.c.b16 %v2850, %v2849
    %v2905 = vpack.c.b16 %v2852, %v2851
    %v2906 = vpack.c.b16 %v2854, %v2853
    %v2907 = vpack.c.b16 %v2856, %v2855
    %v2908 = vpack.c.b16 %v2858, %v2857
    %v2909 = vpack.c.b16 %v2860, %v2859
    %v2910 = vpack.c.b16 %v2862, %v2861
    %v2911 = vpack.c.b16 %v2864, %v2863
    %v2912 = vpack.c.b16 %v2866, %v2865
    %v2913 = vpack.c.b16 %v2868, %v2867
    %v2914 = vpack.c.b16 %v2870, %v2869
    %v2915 = vpack.c.b16 %v2872, %v2871
    %v2916 = vpack.c.b16 %v2874, %v2873
    %v2917 = vpack.c.b16 %v2876, %v2875
    %v2918 = vpack.c.b16 %v2878, %v2877
    %v2919 = vpack.c.b16 %v2880, %v2879
    %v2920 = vpack.c.b16 %v2882, %v2881
    %v2921 = vpack.c.b16 %v2884, %v2883
    %v2922 = vpack.c.b16 %v2886, %v2885
    %v2923 = vpack.c.b16 %v2888, %v2887
    %v2924 = vpack.c.b16 %v2890, %v2889
    %v2925 = vpack.c.b16 %v2892, %v2891
    %v2926 = vpack.c.b16 %v2894, %v2893
    %2959 = vmatprep.subr.bf16.mxu0 0
    %2960 = vmatpush1.bf16.msra.mxu0 %v2895
    %2961 = vmatprep.subr.bf16.mxu0 0
    %2962 = vmatpush1.bf16.msra.mxu0 %v2896
    %2963 = vmatprep.subr.bf16.mxu0 0
    %2964 = vmatpush1.bf16.msra.mxu0 %v2897
    %2965 = vmatprep.subr.bf16.mxu0 0
    %2966 = vmatpush1.bf16.msra.mxu0 %v2898
    %2967 = vmatprep.subr.bf16.mxu0 0
    %2968 = vmatpush1.bf16.msra.mxu0 %v2899
    %2969 = vmatprep.subr.bf16.mxu0 0
    %2970 = vmatpush1.bf16.msra.mxu0 %v2900
    %2971 = vmatprep.subr.bf16.mxu0 0
    %2972 = vmatpush1.bf16.msra.mxu0 %v2901
    %2973 = vmatprep.subr.bf16.mxu0 0
    %2974 = vmatpush1.bf16.msra.mxu0 %v2902
    %2975 = vmatprep.subr.bf16.mxu0 0
    %2976 = vmatpush1.bf16.msra.mxu0 %v2903
    %2977 = vmatprep.subr.bf16.mxu0 0
    %2978 = vmatpush1.bf16.msra.mxu0 %v2904
    %2979 = vmatprep.subr.bf16.mxu0 0
    %2980 = vmatpush1.bf16.msra.mxu0 %v2905
    %2981 = vmatprep.subr.bf16.mxu0 0
    %2982 = vmatpush1.bf16.msra.mxu0 %v2906
    %2983 = vmatprep.subr.bf16.mxu0 0
    %2984 = vmatpush1.bf16.msra.mxu0 %v2907
    %2985 = vmatprep.subr.bf16.mxu0 0
    %2986 = vmatpush1.bf16.msra.mxu0 %v2908
    %2987 = vmatprep.subr.bf16.mxu0 0
    %2988 = vmatpush1.bf16.msra.mxu0 %v2909
    %2989 = vmatprep.subr.bf16.mxu0 0
    %2990 = vmatpush1.bf16.msra.mxu0 %v2910
    %2991 = vmatprep.mubr.bf16.mxu0 %v2694
    %2992 = vmatmul.mubr.bf16.gmra.mrb[0].mxu0 %v2693
    %v2993 = vpop.f32.mrb[0].mxu0
    %v2994 = vadd.f32 %v2765, %v2993
    %v2995 = vpop.f32.mrb[0].mxu0
    %v2996 = vpop.f32.mrb[0].mxu0
    %v2997 = vpop.f32.mrb[0].mxu0
    %2998 = vdwg.mxu0
    %2999 = vmatprep.subr.bf16.mxu0 0
    %3000 = vmatpush1.bf16.msra.mxu0 %v2911
    %3001 = vmatprep.subr.bf16.mxu0 0
    %3002 = vmatpush1.bf16.msra.mxu0 %v2912
    %3003 = vmatprep.subr.bf16.mxu0 0
    %3004 = vmatpush1.bf16.msra.mxu0 %v2913
    %3005 = vmatprep.subr.bf16.mxu0 0
    %3006 = vmatpush1.bf16.msra.mxu0 %v2914
    %3007 = vmatprep.subr.bf16.mxu0 0
    %3008 = vmatpush1.bf16.msra.mxu0 %v2915
    %3009 = vmatprep.subr.bf16.mxu0 0
    %3010 = vmatpush1.bf16.msra.mxu0 %v2916
    %3011 = vmatprep.subr.bf16.mxu0 0
    %3012 = vmatpush1.bf16.msra.mxu0 %v2917
    %3013 = vmatprep.subr.bf16.mxu0 0
    %3014 = vmatpush1.bf16.msra.mxu0 %v2918
    %3015 = vmatprep.subr.bf16.mxu0 0
    %3016 = vmatpush1.bf16.msra.mxu0 %v2919
    %3017 = vmatprep.subr.bf16.mxu0 0
    %3018 = vmatpush1.bf16.msra.mxu0 %v2920
    %3019 = vmatprep.subr.bf16.mxu0 0
    %3020 = vmatpush1.bf16.msra.mxu0 %v2921
    %3021 = vmatprep.subr.bf16.mxu0 0
    %3022 = vmatpush1.bf16.msra.mxu0 %v2922
    %3023 = vmatprep.subr.bf16.mxu0 0
    %3024 = vmatpush1.bf16.msra.mxu0 %v2923
    %3025 = vmatprep.subr.bf16.mxu0 0
    %3026 = vmatpush1.bf16.msra.mxu0 %v2924
    %3027 = vmatprep.subr.bf16.mxu0 0
    %3028 = vmatpush1.bf16.msra.mxu0 %v2925
    %3029 = vmatprep.subr.bf16.mxu0 0
    %3030 = vmatpush1.bf16.msra.mxu0 %v2926
    %3031 = vmatprep.mubr.bf16.mxu0 %v2696
    %3032 = vmatmul.mubr.bf16.gmra.mrb[0].mxu0 %v2695
    %v3033 = vpop.f32.mrb[0].mxu0
    %v3034 = vadd.f32 %v2994, %v3033
    %v3035 = vpop.f32.mrb[0].mxu0
    %v3036 = vpop.f32.mrb[0].mxu0
    %v3037 = vpop.f32.mrb[0].mxu0
    %3038 = vdwg.mxu0
    %v3039 = vmax.f32 %v3034, 0.0
    %v3040 = vpack.c.bf16 %v3039, %v3039
    %v3041 = vld [vmem:[#allocation10] sm:$0xf]
    %v3042 = vld [vmem:[#allocation10 + $0x4] sm:$0xf]
    %v3043 = vld [vmem:[#allocation10 + $0x8] sm:$0xf]
    %v3044 = vld [vmem:[#allocation10 + $0xc] sm:$0xf]
    %v3045 = vld [vmem:[#allocation10 + $0x10] sm:$0xf]
    %v3046 = vld [vmem:[#allocation10 + $0x14] sm:$0xf]
    %v3047 = vld [vmem:[#allocation10 + $0x18] sm:$0xf]
    %v3048 = vld [vmem:[#allocation10 + $0x1c] sm:$0xf]
    %v3049 = vld [vmem:[#allocation10 + $0x20] sm:$0xf]
    %v3050 = vld [vmem:[#allocation10 + $0x24] sm:$0xf]
    %v3051 = vld [vmem:[#allocation10 + $0x28] sm:$0xf]
    %v3052 = vld [vmem:[#allocation10 + $0x2c] sm:$0xf]
    %v3053 = vld [vmem:[#allocation10 + $0x30] sm:$0xf]
    %v3054 = vld [vmem:[#allocation10 + $0x34] sm:$0xf]
    %v3055 = vld [vmem:[#allocation10 + $0x38] sm:$0xf]
    %v3056 = vld [vmem:[#allocation10 + $0x3c] sm:$0xf]
    %v3058 = vlaneseq
    %v3059 = vshrl.u32 %v3058, 7
    %v3060 = vsub.s32 0, %v3059
    %v3061 = vrot.slane %v123, %v3060
    %v3079 = vunpack.c.l.b16 %v3041
    %v3080 = vunpack.c.l.b16 %v3042
    %v3081 = vunpack.c.l.b16 %v3043
    %v3082 = vunpack.c.l.b16 %v3044
    %v3083 = vunpack.c.l.b16 %v3045
    %v3084 = vunpack.c.l.b16 %v3046
    %v3085 = vunpack.c.l.b16 %v3047
    %v3086 = vunpack.c.l.b16 %v3048
    %v3087 = vunpack.c.l.b16 %v3049
    %v3088 = vunpack.c.l.b16 %v3050
    %v3089 = vunpack.c.l.b16 %v3051
    %v3090 = vunpack.c.l.b16 %v3052
    %v3091 = vunpack.c.l.b16 %v3053
    %v3092 = vunpack.c.l.b16 %v3054
    %v3093 = vunpack.c.l.b16 %v3055
    %v3094 = vunpack.c.l.b16 %v3056
    %v3095 = vpack.c.b16 %v3080, %v3079
    %v3096 = vpack.c.b16 %v3082, %v3081
    %v3097 = vpack.c.b16 %v3084, %v3083
    %v3098 = vpack.c.b16 %v3086, %v3085
    %v3099 = vpack.c.b16 %v3088, %v3087
    %v3100 = vpack.c.b16 %v3090, %v3089
    %v3101 = vpack.c.b16 %v3092, %v3091
    %v3102 = vpack.c.b16 %v3094, %v3093
    %3111 = vmatprep.subr.bf16.mxu0 0
    %3112 = vmatpush1.bf16.msra.mxu0 %v3095
    %3113 = vmatprep.subr.bf16.mxu0 0
    %3114 = vmatpush1.bf16.msra.mxu0 %v3096
    %3115 = vmatprep.subr.bf16.mxu0 0
    %3116 = vmatpush1.bf16.msra.mxu0 %v3097
    %3117 = vmatprep.subr.bf16.mxu0 0
    %3118 = vmatpush1.bf16.msra.mxu0 %v3098
    %3119 = vmatprep.subr.bf16.mxu0 0
    %3120 = vmatpush1.bf16.msra.mxu0 %v3099
    %3121 = vmatprep.subr.bf16.mxu0 0
    %3122 = vmatpush1.bf16.msra.mxu0 %v3100
    %3123 = vmatprep.subr.bf16.mxu0 0
    %3124 = vmatpush1.bf16.msra.mxu0 %v3101
    %3125 = vmatprep.subr.bf16.mxu0 0
    %3126 = vmatpush1.bf16.msra.mxu0 %v3102
    %3127 = vmatprep.subr.bf16.mxu0 0
    %3128 = vmatpush1.bf16.msra.mxu0 0
    %3129 = vmatprep.subr.bf16.mxu0 0
    %3130 = vmatpush1.bf16.msra.mxu0 0
    %3131 = vmatprep.subr.bf16.mxu0 0
    %3132 = vmatpush1.bf16.msra.mxu0 0
    %3133 = vmatprep.subr.bf16.mxu0 0
    %3134 = vmatpush1.bf16.msra.mxu0 0
    %3135 = vmatprep.subr.bf16.mxu0 0
    %3136 = vmatpush1.bf16.msra.mxu0 0
    %3137 = vmatprep.subr.bf16.mxu0 0
    %3138 = vmatpush1.bf16.msra.mxu0 0
    %3139 = vmatprep.subr.bf16.mxu0 0
    %3140 = vmatpush1.bf16.msra.mxu0 0
    %3141 = vmatprep.subr.bf16.mxu0 0
    %3142 = vmatpush1.bf16.msra.mxu0 0
    %3143 = vmatprep.mubr.bf16.mxu0 0
    %3144 = vmatmul.mubr.bf16.gmra.mrb[0].mxu0 %v3040
    %v3145 = vpop.f32.mrb[0].mxu0
    %v3146 = vadd.f32 %v3061, %v3145
    %v3147 = vpop.f32.mrb[0].mxu0
    %v3148 = vpop.f32.mrb[0].mxu0
    %v3149 = vpop.f32.mrb[0].mxu0
    %3150 = vdwg.mxu0
    %v3151 = vmax.f32 %v3146, 0.0
    %v3152 = vpack.c.bf16 %v3151, %v3151
    %3153 = vmatprep.subr.bf16.mxu0 0
    %3154 = vmatpush1.bf16.msra.mxu0 %v3095
    %3155 = vmatprep.subr.bf16.mxu0 0
    %3156 = vmatpush1.bf16.msra.mxu0 %v3096
    %3157 = vmatprep.subr.bf16.mxu0 0
    %3158 = vmatpush1.bf16.msra.mxu0 %v3097
    %3159 = vmatprep.subr.bf16.mxu0 0
    %3160 = vmatpush1.bf16.msra.mxu0 %v3098
    %3161 = vmatprep.subr.bf16.mxu0 0
    %3162 = vmatpush1.bf16.msra.mxu0 %v3099
    %3163 = vmatprep.subr.bf16.mxu0 0
    %3164 = vmatpush1.bf16.msra.mxu0 %v3100
    %3165 = vmatprep.subr.bf16.mxu0 0
    %3166 = vmatpush1.bf16.msra.mxu0 %v3101
    %3167 = vmatprep.subr.bf16.mxu0 0
    %3168 = vmatpush1.bf16.msra.mxu0 %v3102
    %3169 = vmatprep.subr.bf16.mxu0 0
    %3170 = vmatpush1.bf16.msra.mxu0 0
    %3171 = vmatprep.subr.bf16.mxu0 0
    %3172 = vmatpush1.bf16.msra.mxu0 0
    %3173 = vmatprep.subr.bf16.mxu0 0
    %3174 = vmatpush1.bf16.msra.mxu0 0
    %3175 = vmatprep.subr.bf16.mxu0 0
    %3176 = vmatpush1.bf16.msra.mxu0 0
    %3177 = vmatprep.subr.bf16.mxu0 0
    %3178 = vmatpush1.bf16.msra.mxu0 0
    %3179 = vmatprep.subr.bf16.mxu0 0
    %3180 = vmatpush1.bf16.msra.mxu0 0
    %3181 = vmatprep.subr.bf16.mxu0 0
    %3182 = vmatpush1.bf16.msra.mxu0 0
    %3183 = vmatprep.subr.bf16.mxu0 0
    %3184 = vmatpush1.bf16.msra.mxu0 0
    %3185 = vmatprep.mubr.bf16.mxu0 0
    %3186 = vmatmul.mubr.bf16.gmra.mrb[0].mxu0 %v3152
    %v3187 = vpop.f32.mrb[0].mxu0
    %v3188 = vadd.f32 %v3061, %v3187
    %v3189 = vpop.f32.mrb[0].mxu0
    %v3190 = vpop.f32.mrb[0].mxu0
    %v3191 = vpop.f32.mrb[0].mxu0
    %3192 = vdwg.mxu0
    %v3193 = vmax.f32 %v3188, 0.0
    %v3194 = vpack.c.bf16 %v3193, %v3193
    %v3195 = vld [vmem:[#allocation11] sm:$0xf]
    %v3196 = vld [vmem:[#allocation11 + $0x4] sm:$0xf]
    %v3197 = vld [vmem:[#allocation11 + $0x8] sm:$0xf]
    %v3198 = vld [vmem:[#allocation11 + $0xc] sm:$0xf]
    %v3199 = vld [vmem:[#allocation11 + $0x10] sm:$0xf]
    %v3200 = vld [vmem:[#allocation11 + $0x14] sm:$0xf]
    %v3201 = vld [vmem:[#allocation11 + $0x18] sm:$0xf]
    %v3202 = vld [vmem:[#allocation11 + $0x1c] sm:$0xf]
    %v3203 = vld [vmem:[#allocation11 + $0x20] sm:$0xf]
    %v3204 = vld [vmem:[#allocation11 + $0x24] sm:$0xf]
    %v3205 = vld [vmem:[#allocation11 + $0x28] sm:$0xf]
    %v3206 = vld [vmem:[#allocation11 + $0x2c] sm:$0xf]
    %v3207 = vld [vmem:[#allocation11 + $0x30] sm:$0xf]
    %v3208 = vld [vmem:[#allocation11 + $0x34] sm:$0xf]
    %v3209 = vld [vmem:[#allocation11 + $0x38] sm:$0xf]
    %v3210 = vld [vmem:[#allocation11 + $0x3c] sm:$0xf]
    %v3212 = vlaneseq
    %v3213 = vshrl.u32 %v3212, 7
    %v3214 = vsub.s32 0, %v3213
    %v3215 = vrot.slane %v124, %v3214
    %v3233 = vunpack.c.l.b16 %v3195
    %v3234 = vunpack.c.l.b16 %v3196
    %v3235 = vunpack.c.l.b16 %v3197
    %v3236 = vunpack.c.l.b16 %v3198
    %v3237 = vunpack.c.l.b16 %v3199
    %v3238 = vunpack.c.l.b16 %v3200
    %v3239 = vunpack.c.l.b16 %v3201
    %v3240 = vunpack.c.l.b16 %v3202
    %v3241 = vunpack.c.l.b16 %v3203
    %v3242 = vunpack.c.l.b16 %v3204
    %v3243 = vunpack.c.l.b16 %v3205
    %v3244 = vunpack.c.l.b16 %v3206
    %v3245 = vunpack.c.l.b16 %v3207
    %v3246 = vunpack.c.l.b16 %v3208
    %v3247 = vunpack.c.l.b16 %v3209
    %v3248 = vunpack.c.l.b16 %v3210
    %v3249 = vpack.c.b16 %v3234, %v3233
    %v3250 = vpack.c.b16 %v3236, %v3235
    %v3251 = vpack.c.b16 %v3238, %v3237
    %v3252 = vpack.c.b16 %v3240, %v3239
    %v3253 = vpack.c.b16 %v3242, %v3241
    %v3254 = vpack.c.b16 %v3244, %v3243
    %v3255 = vpack.c.b16 %v3246, %v3245
    %v3256 = vpack.c.b16 %v3248, %v3247
    %3265 = vmatprep.subr.bf16.mxu0 0
    %3266 = vmatpush1.bf16.msra.mxu0 %v3249
    %3267 = vmatprep.subr.bf16.mxu0 0
    %3268 = vmatpush1.bf16.msra.mxu0 %v3250
    %3269 = vmatprep.subr.bf16.mxu0 0
    %3270 = vmatpush1.bf16.msra.mxu0 %v3251
    %3271 = vmatprep.subr.bf16.mxu0 0
    %3272 = vmatpush1.bf16.msra.mxu0 %v3252
    %3273 = vmatprep.subr.bf16.mxu0 0
    %3274 = vmatpush1.bf16.msra.mxu0 %v3253
    %3275 = vmatprep.subr.bf16.mxu0 0
    %3276 = vmatpush1.bf16.msra.mxu0 %v3254
    %3277 = vmatprep.subr.bf16.mxu0 0
    %3278 = vmatpush1.bf16.msra.mxu0 %v3255
    %3279 = vmatprep.subr.bf16.mxu0 0
    %3280 = vmatpush1.bf16.msra.mxu0 %v3256
    %3281 = vmatprep.subr.bf16.mxu0 0
    %3282 = vmatpush1.bf16.msra.mxu0 0
    %3283 = vmatprep.subr.bf16.mxu0 0
    %3284 = vmatpush1.bf16.msra.mxu0 0
    %3285 = vmatprep.subr.bf16.mxu0 0
    %3286 = vmatpush1.bf16.msra.mxu0 0
    %3287 = vmatprep.subr.bf16.mxu0 0
    %3288 = vmatpush1.bf16.msra.mxu0 0
    %3289 = vmatprep.subr.bf16.mxu0 0
    %3290 = vmatpush1.bf16.msra.mxu0 0
    %3291 = vmatprep.subr.bf16.mxu0 0
    %3292 = vmatpush1.bf16.msra.mxu0 0
    %3293 = vmatprep.subr.bf16.mxu0 0
    %3294 = vmatpush1.bf16.msra.mxu0 0
    %3295 = vmatprep.subr.bf16.mxu0 0
    %3296 = vmatpush1.bf16.msra.mxu0 0
    %3297 = vmatprep.mubr.bf16.mxu0 0
    %3298 = vmatmul.mubr.bf16.gmra.mrb[0].mxu0 %v3194
    %v3299 = vpop.f32.mrb[0].mxu0
    %v3300 = vadd.f32 %v3215, %v3299
    %v3301 = vpop.f32.mrb[0].mxu0
    %v3302 = vpop.f32.mrb[0].mxu0
    %v3303 = vpop.f32.mrb[0].mxu0
    %3304 = vdwg.mxu0
    %3305 = vst [vmem:[#allocation13] sm:$0xff] %v3300
    // Predicated region
    $region70: #{tpu_custom_call.1} parent=1 // pred_check
      _
    $region71: #{tpu_custom_call.1} parent=1 // pred_check_branch
      %3307 = sbr.rel (0) target = $region73
    $region72: #{tpu_custom_call.1} parent=1 // pred_region
      %s3309 = ssub.s32 128, 128
      %3310 = vsyncadd [#allocation4], %s3309
      %s3312 = sshll.u32 [#allocation13], 4
      %s3313 = int_to_ptr.vmem [resolvable:$true] %s3312
      %3315 = dma.vmem_to_hbm [thread:$0]  %s3313, 128, %s11, [#allocation4]
    $region73: #{tpu_custom_call.1} parent=1 // pred_fallthru
      _
    // Predicated region
    $region74: #{tpu_custom_call.1} parent=1 // pred_check
      _
    $region75: #{tpu_custom_call.1} parent=1 // pred_check_branch
      %3317 = sbr.rel (0) target = $region77
    $region76: #{tpu_custom_call.1} parent=1 // pred_region
      %3318 = dma.done [#allocation4], 128
    $region77: #{tpu_custom_call.1} parent=1 // pred_fallthru
      _
    %3319 = vsyncpa [#allocation3], 1
    %3320 = vsyncpa [#allocation6], 1
    %3321 = vsyncpa [#allocation9], 1
    %3322 = vsyncpa [#allocation12], 1
    %3323 = vsyncpa [#allocation4], 1

// kernel: tpu_custom_call.1
$region0: #{tpu_custom_call.1}
  #allocation0 [shape = 'u32[]', space=smem, size = 0x4, offset = 0x4, fixed_abs, tag = 'smem constant byte address 0x4 - core index']
  #allocation1 [shape = 'u32[144,128]{1,0:T(1,128)}', space=vmem, size = 0x12000, scoped, tag = 'internal scratch']
  %s0 = inlined_call_operand.hbm [shape: f32[8,768], index: 0, kind: input, shape index: {}]
  %s1 = inlined_call_operand.hbm [shape: bf16[768,512], index: 1, kind: input, shape index: {}]
  %s2 = inlined_call_operand.vmem [shape: f32[1,512], index: 2, kind: input, shape index: {}]
  %s3 = inlined_call_operand.hbm [shape: bf16[512,512], index: 3, kind: input, shape index: {}]
  %s4 = inlined_call_operand.vmem [shape: f32[1,512], index: 4, kind: input, shape index: {}]
  %s5 = inlined_call_operand.hbm [shape: bf16[512,128], index: 5, kind: input, shape index: {}]
  %s6 = inlined_call_operand.vmem [shape: f32[1,128], index: 6, kind: input, shape index: {}]
  %s7 = inlined_call_operand.hbm [shape: bf16[128,128], index: 7, kind: input, shape index: {}]
  %s8 = inlined_call_operand.vmem [shape: f32[1,128], index: 8, kind: input, shape index: {}]
  %s9 = inlined_call_operand.hbm [shape: bf16[128,128], index: 9, kind: input, shape index: {}]
  %s10 = inlined_call_operand.vmem [shape: f32[1,128], index: 10, kind: input, shape index: {}]
  %s11 = inlined_call_operand.hbm [shape: f32[8,128], index: 11, kind: output, shape index: {}]
  %s12 = sld [smem:[#allocation0]]
  $region78: #{tpu_custom_call.1} parent=0
    _
  %s14 = ssub.s32 1, %s12
  %s15 = scalar_select 0, %s14, %s12
  $region1: #{tpu_custom_call.1} parent=0
    #allocation2 [shape = 'u8[24576]{0}', space=vmem, size = 0x6000, scoped, tag = 'input window, operand 0, single buffered']
    #allocation3 [shape = 's32[1]{0}', space=sflag, size = 0x4, scoped, tag = 'scoped memory for tpu_custom_call.1']
    #allocation4 [shape = 's32[1]{0}', space=sflag, size = 0x4, scoped, tag = 'scoped memory for tpu_custom_call.1']
    #allocation5 [shape = 'u8[786432]{0}', space=vmem, size = 0xc0000, scoped, tag = 'input window, operand 1, single buffered']
    #allocation6 [shape = 's32[1]{0}', space=sflag, size = 0x4, scoped, tag = 'scoped memory for tpu_custom_call.1']
    #allocation7 [shape = 'u8[524288]{0}', space=vmem, size = 0x80000, scoped, tag = 'input window, operand 3, single buffered']
    #allocation8 [shape = 'u8[131072]{0}', space=vmem, size = 0x20000, scoped, tag = 'input window, operand 5, single buffered']
    #allocation9 [shape = 's32[1]{0}', space=sflag, size = 0x4, scoped, tag = 'scoped memory for tpu_custom_call.1']
    #allocation10 [shape = 'u8[32768]{0}', space=vmem, size = 0x8000, scoped, tag = 'input window, operand 7, single buffered']
    #allocation11 [shape = 'u8[32768]{0}', space=vmem, size = 0x8000, scoped, tag = 'input window, operand 9, single buffered']
    #allocation12 [shape = 's32[1]{0}', space=sflag, size = 0x4, scoped, tag = 'scoped memory for tpu_custom_call.1']
    #allocation13 [shape = 'u8[4096]{0}', space=vmem, size = 0x1000, scoped, tag = 'output window, operand 0, single buffered']
    %16 = vsyncpa [#allocation3], 0
    %17 = vsyncpa [#allocation6], 0
    %18 = vsyncpa [#allocation9], 0
    %19 = vsyncpa [#allocation12], 0
    %20 = vsyncpa [#allocation4], 0
    // Predicated region
    $region2: #{tpu_custom_call.1} parent=1 // pred_check
      _
    $region3: #{tpu_custom_call.1} parent=1 // pred_check_branch
      %22 = sbr.rel (0) target = $region5
    $region4: #{tpu_custom_call.1} parent=1 // pred_region
      %s24 = ssub.s32 768, 768
      %25 = vsyncadd [#allocation3], %s24
      %s27 = sshll.u32 [#allocation2], 4
      %s28 = int_to_ptr.vmem [resolvable:$true] %s27
      %30 = dma.hbm_to_vmem [thread:$0]  %s0, 768, %s28, [#allocation3]
    $region5: #{tpu_custom_call.1} parent=1 // pred_fallthru
      _
    // Predicated region
    $region6: #{tpu_custom_call.1} parent=1 // pred_check
      _
    $region7: #{tpu_custom_call.1} parent=1 // pred_check_branch
      %32 = sbr.rel (0) target = $region9
    $region8: #{tpu_custom_call.1} parent=1 // pred_region
      %s34 = ssub.s32 24576, 24576
      %35 = vsyncadd [#allocation6], %s34
      %s36 = sshll.u32 [#allocation5], 4
      %s37 = int_to_ptr.vmem [resolvable:$true] %s36
      %42 = dma.hbm_to_vmem [thread:$0]  %s1, 24576, %s37, [#allocation6], 256, 256, 16
    $region9: #{tpu_custom_call.1} parent=1 // pred_fallthru
      _
    // Predicated region
    $region10: #{tpu_custom_call.1} parent=1 // pred_check
      _
    $region11: #{tpu_custom_call.1} parent=1 // pred_check_branch
      %44 = sbr.rel (0) target = $region13
    $region12: #{tpu_custom_call.1} parent=1 // pred_region
      _
    $region13: #{tpu_custom_call.1} parent=1 // pred_fallthru
      _
    // Predicated region
    $region14: #{tpu_custom_call.1} parent=1 // pred_check
      _
    $region15: #{tpu_custom_call.1} parent=1 // pred_check_branch
      %46 = sbr.rel (0) target = $region17
    $region16: #{tpu_custom_call.1} parent=1 // pred_region
      %s48 = ssub.s32 16384, 16384
      %49 = vsyncadd [#allocation6], %s48
      %s50 = sshll.u32 [#allocation7], 4
      %s51 = int_to_ptr.vmem [resolvable:$true] %s50
      %56 = dma.hbm_to_vmem [thread:$0]  %s3, 16384, %s51, [#allocation6], 256, 256, 16
    $region17: #{tpu_custom_call.1} parent=1 // pred_fallthru
      _
    // Predicated region
    $region18: #{tpu_custom_call.1} parent=1 // pred_check
      _
    $region19: #{tpu_custom_call.1} parent=1 // pred_check_branch
      %58 = sbr.rel (0) target = $region21
    $region20: #{tpu_custom_call.1} parent=1 // pred_region
      _
    $region21: #{tpu_custom_call.1} parent=1 // pred_fallthru
      _
    // Predicated region
    $region22: #{tpu_custom_call.1} parent=1 // pred_check
      _
    $region23: #{tpu_custom_call.1} parent=1 // pred_check_branch
      %60 = sbr.rel (0) target = $region25
    $region24: #{tpu_custom_call.1} parent=1 // pred_region
      %s62 = ssub.s32 4096, 4096
      %63 = vsyncadd [#allocation9], %s62
      %s64 = sshll.u32 [#allocation8], 4
      %s65 = int_to_ptr.vmem [resolvable:$true] %s64
      %70 = dma.hbm_to_vmem [thread:$0]  %s5, 4096, %s65, [#allocation9], 64, 64, 4
    $region25: #{tpu_custom_call.1} parent=1 // pred_fallthru
      _
    // Predicated region
    $region26: #{tpu_custom_call.1} parent=1 // pred_check
      _
    $region27: #{tpu_custom_call.1} parent=1 // pred_check_branch
      %72 = sbr.rel (0) target = $region29
    $region28: #{tpu_custom_call.1} parent=1 // pred_region
      _
    $region29: #{tpu_custom_call.1} parent=1 // pred_fallthru
      _
    // Predicated region
    $region30: #{tpu_custom_call.1} parent=1 // pred_check
      _
    $region31: #{tpu_custom_call.1} parent=1 // pred_check_branch
      %74 = sbr.rel (0) target = $region33
    $region32: #{tpu_custom_call.1} parent=1 // pred_region
      %s76 = ssub.s32 1024, 1024
      %77 = vsyncadd [#allocation9], %s76
      %s78 = sshll.u32 [#allocation10], 4
      %s79 = int_to_ptr.vmem [resolvable:$true] %s78
      %84 = dma.hbm_to_vmem [thread:$0]  %s7, 1024, %s79, [#allocation9], 64, 64, 4
    $region33: #{tpu_custom_call.1} parent=1 // pred_fallthru
      _
    // Predicated region
    $region34: #{tpu_custom_call.1} parent=1 // pred_check
      _
    $region35: #{tpu_custom_call.1} parent=1 // pred_check_branch
      %86 = sbr.rel (0) target = $region37
    $region36: #{tpu_custom_call.1} parent=1 // pred_region
      _
    $region37: #{tpu_custom_call.1} parent=1 // pred_fallthru
      _
    // Predicated region
    $region38: #{tpu_custom_call.1} parent=1 // pred_check
      _
    $region39: #{tpu_custom_call.1} parent=1 // pred_check_branch
      %88 = sbr.rel (0) target = $region41
    $region40: #{tpu_custom_call.1} parent=1 // pred_region
      %s90 = ssub.s32 1024, 1024
      %91 = vsyncadd [#allocation12], %s90
      %s92 = sshll.u32 [#allocation11], 4
      %s93 = int_to_ptr.vmem [resolvable:$true] %s92
      %98 = dma.hbm_to_vmem [thread:$0]  %s9, 1024, %s93, [#allocation12], 64, 64, 4
    $region41: #{tpu_custom_call.1} parent=1 // pred_fallthru
      _
    // Predicated region
    $region42: #{tpu_custom_call.1} parent=1 // pred_check
      _
    $region43: #{tpu_custom_call.1} parent=1 // pred_check_branch
      %100 = sbr.rel (0) target = $region45
    $region44: #{tpu_custom_call.1} parent=1 // pred_region
      _
    $region45: #{tpu_custom_call.1} parent=1 // pred_fallthru
      _
    // Predicated region
    $region46: #{tpu_custom_call.1} parent=1 // pred_check
      _
    $region47: #{tpu_custom_call.1} parent=1 // pred_check_branch
      %102 = sbr.rel (0) target = $region49
    $region48: #{tpu_custom_call.1} parent=1 // pred_region
      %103 = dma.done [#allocation3], 768
    $region49: #{tpu_custom_call.1} parent=1 // pred_fallthru
      _
    // Predicated region
    $region50: #{tpu_custom_call.1} parent=1 // pred_check
      _
    $region51: #{tpu_custom_call.1} parent=1 // pred_check_branch
      %105 = sbr.rel (0) target = $region53
    $region52: #{tpu_custom_call.1} parent=1 // pred_region
      %106 = dma.done [#allocation6], 24576
    $region53: #{tpu_custom_call.1} parent=1 // pred_fallthru
      _
    // Predicated region
    $region54: #{tpu_custom_call.1} parent=1 // pred_check
      _
    $region55: #{tpu_custom_call.1} parent=1 // pred_check_branch
      %108 = sbr.rel (0) target = $region57
    $region56: #{tpu_custom_call.1} parent=1 // pred_region
      %109 = dma.done [#allocation6], 16384
    $region57: #{tpu_custom_call.1} parent=1 // pred_fallthru
      _
    // Predicated region
    $region58: #{tpu_custom_call.1} parent=1 // pred_check
      _
    $region59: #{tpu_custom_call.1} parent=1 // pred_check_branch
      %111 = sbr.rel (0) target = $region61
    $region60: #{tpu_custom_call.1} parent=1 // pred_region
      %112 = dma.done [#allocation9], 4096
    $region61: #{tpu_custom_call.1} parent=1 // pred_fallthru
      _
    // Predicated region
    $region62: #{tpu_custom_call.1} parent=1 // pred_check
      _
    $region63: #{tpu_custom_call.1} parent=1 // pred_check_branch
      %114 = sbr.rel (0) target = $region65
    $region64: #{tpu_custom_call.1} parent=1 // pred_region
      %115 = dma.done [#allocation9], 1024
    $region65: #{tpu_custom_call.1} parent=1 // pred_fallthru
      _
    // Predicated region
    $region66: #{tpu_custom_call.1} parent=1 // pred_check
      _
    $region67: #{tpu_custom_call.1} parent=1 // pred_check_branch
      %117 = sbr.rel (0) target = $region69
    $region68: #{tpu_custom_call.1} parent=1 // pred_region
      %118 = dma.done [#allocation12], 1024
    $region69: #{tpu_custom_call.1} parent=1 // pred_fallthru
      _
    %v120 = vld [vmem:[%s2] sm:$0xf]
    %v121 = vld [vmem:[%s4] sm:$0xf]
    %v122 = vld [vmem:[%s6] sm:$0x1]
    %v123 = vld [vmem:[%s8] sm:$0x1]
    %v124 = vld [vmem:[%s10] sm:$0x1]
    %v125 = vld [vmem:[#allocation2] sm:$0xff]
    %v126 = vld [vmem:[#allocation2 + $0x8] sm:$0xff]
    %v127 = vld [vmem:[#allocation2 + $0x10] sm:$0xff]
    %v128 = vld [vmem:[#allocation2 + $0x18] sm:$0xff]
    %v129 = vld [vmem:[#allocation2 + $0x20] sm:$0xff]
    %v130 = vld [vmem:[#allocation2 + $0x28] sm:$0xff]
    %v131 = vpack.c.bf16 %v125, %v125
    %v132 = vpack.c.bf16 %v126, %v126
    %v133 = vpack.c.bf16 %v127, %v127
    %v134 = vpack.c.bf16 %v128, %v128
    %v135 = vpack.c.bf16 %v129, %v129
    %v136 = vpack.c.bf16 %v130, %v130
    %v137 = vld [vmem:[#allocation5] sm:$0xff]
    %v138 = vld [vmem:[#allocation5 + $0x8] sm:$0xff]
    %v139 = vld [vmem:[#allocation5 + $0x10] sm:$0xff]
    %v140 = vld [vmem:[#allocation5 + $0x18] sm:$0xff]
    %v141 = vld [vmem:[#allocation5 + $0x20] sm:$0xff]
    %v142 = vld [vmem:[#allocation5 + $0x28] sm:$0xff]
    %v143 = vld [vmem:[#allocation5 + $0x30] sm:$0xff]
    %v144 = vld [vmem:[#allocation5 + $0x38] sm:$0xff]
    %v145 = vld [vmem:[#allocation5 + $0x40] sm:$0xff]
    %v146 = vld [vmem:[#allocation5 + $0x48] sm:$0xff]
    %v147 = vld [vmem:[#allocation5 + $0x50] sm:$0xff]
    %v148 = vld [vmem:[#allocation5 + $0x58] sm:$0xff]
    %v149 = vld [vmem:[#allocation5 + $0x60] sm:$0xff]
    %v150 = vld [vmem:[#allocation5 + $0x68] sm:$0xff]
    %v151 = vld [vmem:[#allocation5 + $0x70] sm:$0xff]
    %v152 = vld [vmem:[#allocation5 + $0x78] sm:$0xff]
    %v153 = vld [vmem:[#allocation5 + $0x80] sm:$0xff]
    %v154 = vld [vmem:[#allocation5 + $0x88] sm:$0xff]
    %v155 = vld [vmem:[#allocation5 + $0x90] sm:$0xff]
    %v156 = vld [vmem:[#allocation5 + $0x98] sm:$0xff]
    %v157 = vld [vmem:[#allocation5 + $0xa0] sm:$0xff]
    %v158 = vld [vmem:[#allocation5 + $0xa8] sm:$0xff]
    %v159 = vld [vmem:[#allocation5 + $0xb0] sm:$0xff]
    %v160 = vld [vmem:[#allocation5 + $0xb8] sm:$0xff]
    %v161 = vld [vmem:[#allocation5 + $0xc0] sm:$0xff]
    %v162 = vld [vmem:[#allocation5 + $0xc8] sm:$0xff]
    %v163 = vld [vmem:[#allocation5 + $0xd0] sm:$0xff]
    %v164 = vld [vmem:[#allocation5 + $0xd8] sm:$0xff]
    %v165 = vld [vmem:[#allocation5 + $0xe0] sm:$0xff]
    %v166 = vld [vmem:[#allocation5 + $0xe8] sm:$0xff]
    %v167 = vld [vmem:[#allocation5 + $0xf0] sm:$0xff]
    %v168 = vld [vmem:[#allocation5 + $0xf8] sm:$0xff]
    %v169 = vld [vmem:[#allocation5 + $0x100] sm:$0xff]
    %v170 = vld [vmem:[#allocation5 + $0x108] sm:$0xff]
    %v171 = vld [vmem:[#allocation5 + $0x110] sm:$0xff]
    %v172 = vld [vmem:[#allocation5 + $0x118] sm:$0xff]
    %v173 = vld [vmem:[#allocation5 + $0x120] sm:$0xff]
    %v174 = vld [vmem:[#allocation5 + $0x128] sm:$0xff]
    %v175 = vld [vmem:[#allocation5 + $0x130] sm:$0xff]
    %v176 = vld [vmem:[#allocation5 + $0x138] sm:$0xff]
    %v177 = vld [vmem:[#allocation5 + $0x140] sm:$0xff]
    %v178 = vld [vmem:[#allocation5 + $0x148] sm:$0xff]
    %v179 = vld [vmem:[#allocation5 + $0x150] sm:$0xff]
    %v180 = vld [vmem:[#allocation5 + $0x158] sm:$0xff]
    %v181 = vld [vmem:[#allocation5 + $0x160] sm:$0xff]
    %v182 = vld [vmem:[#allocation5 + $0x168] sm:$0xff]
    %v183 = vld [vmem:[#allocation5 + $0x170] sm:$0xff]
    %v184 = vld [vmem:[#allocation5 + $0x178] sm:$0xff]
    %v185 = vld [vmem:[#allocation5 + $0x180] sm:$0xff]
    %v186 = vld [vmem:[#allocation5 + $0x188] sm:$0xff]
    %v187 = vld [vmem:[#allocation5 + $0x190] sm:$0xff]
    %v188 = vld [vmem:[#allocation5 + $0x198] sm:$0xff]
    %v189 = vld [vmem:[#allocation5 + $0x1a0] sm:$0xff]
    %v190 = vld [vmem:[#allocation5 + $0x1a8] sm:$0xff]
    %v191 = vld [vmem:[#allocation5 + $0x1b0] sm:$0xff]
    %v192 = vld [vmem:[#allocation5 + $0x1b8] sm:$0xff]
    %v193 = vld [vmem:[#allocation5 + $0x1c0] sm:$0xff]
    %v194 = vld [vmem:[#allocation5 + $0x1c8] sm:$0xff]
    %v195 = vld [vmem:[#allocation5 + $0x1d0] sm:$0xff]
    %v196 = vld [vmem:[#allocation5 + $0x1d8] sm:$0xff]
    %v197 = vld [vmem:[#allocation5 + $0x1e0] sm:$0xff]
    %v198 = vld [vmem:[#allocation5 + $0x1e8] sm:$0xff]
    %v199 = vld [vmem:[#allocation5 + $0x1f0] sm:$0xff]
    %v200 = vld [vmem:[#allocation5 + $0x1f8] sm:$0xff]
    %v201 = vld [vmem:[#allocation5 + $0x200] sm:$0xff]
    %v202 = vld [vmem:[#allocation5 + $0x208] sm:$0xff]
    %v203 = vld [vmem:[#allocation5 + $0x210] sm:$0xff]
    %v204 = vld [vmem:[#allocation5 + $0x218] sm:$0xff]
    %v205 = vld [vmem:[#allocation5 + $0x220] sm:$0xff]
    %v206 = vld [vmem:[#allocation5 + $0x228] sm:$0xff]
    %v207 = vld [vmem:[#allocation5 + $0x230] sm:$0xff]
    %v208 = vld [vmem:[#allocation5 + $0x238] sm:$0xff]
    %v209 = vld [vmem:[#allocation5 + $0x240] sm:$0xff]
    %v210 = vld [vmem:[#allocation5 + $0x248] sm:$0xff]
    %v211 = vld [vmem:[#allocation5 + $0x250] sm:$0xff]
    %v212 = vld [vmem:[#allocation5 + $0x258] sm:$0xff]
    %v213 = vld [vmem:[#allocation5 + $0x260] sm:$0xff]
    %v214 = vld [vmem:[#allocation5 + $0x268] sm:$0xff]
    %v215 = vld [vmem:[#allocation5 + $0x270] sm:$0xff]
    %v216 = vld [vmem:[#allocation5 + $0x278] sm:$0xff]
    %v217 = vld [vmem:[#allocation5 + $0x280] sm:$0xff]
    %v218 = vld [vmem:[#allocation5 + $0x288] sm:$0xff]
    %v219 = vld [vmem:[#allocation5 + $0x290] sm:$0xff]
    %v220 = vld [vmem:[#allocation5 + $0x298] sm:$0xff]
    %v221 = vld [vmem:[#allocation5 + $0x2a0] sm:$0xff]
    %v222 = vld [vmem:[#allocation5 + $0x2a8] sm:$0xff]
    %v223 = vld [vmem:[#allocation5 + $0x2b0] sm:$0xff]
    %v224 = vld [vmem:[#allocation5 + $0x2b8] sm:$0xff]
    %v225 = vld [vmem:[#allocation5 + $0x2c0] sm:$0xff]
    %v226 = vld [vmem:[#allocation5 + $0x2c8] sm:$0xff]
    %v227 = vld [vmem:[#allocation5 + $0x2d0] sm:$0xff]
    %v228 = vld [vmem:[#allocation5 + $0x2d8] sm:$0xff]
    %v229 = vld [vmem:[#allocation5 + $0x2e0] sm:$0xff]
    %v230 = vld [vmem:[#allocation5 + $0x2e8] sm:$0xff]
    %v231 = vld [vmem:[#allocation5 + $0x2f0] sm:$0xff]
    %v232 = vld [vmem:[#allocation5 + $0x2f8] sm:$0xff]
    %v233 = vld [vmem:[#allocation5 + $0x300] sm:$0xff]
    %v234 = vld [vmem:[#allocation5 + $0x308] sm:$0xff]
    %v235 = vld [vmem:[#allocation5 + $0x310] sm:$0xff]
    %v236 = vld [vmem:[#allocation5 + $0x318] sm:$0xff]
    %v237 = vld [vmem:[#allocation5 + $0x320] sm:$0xff]
    %v238 = vld [vmem:[#allocation5 + $0x328] sm:$0xff]
    %v239 = vld [vmem:[#allocation5 + $0x330] sm:$0xff]
    %v240 = vld [vmem:[#allocation5 + $0x338] sm:$0xff]
    %v241 = vld [vmem:[#allocation5 + $0x340] sm:$0xff]
    %v242 = vld [vmem:[#allocation5 + $0x348] sm:$0xff]
    %v243 = vld [vmem:[#allocation5 + $0x350] sm:$0xff]
    %v244 = vld [vmem:[#allocation5 + $0x358] sm:$0xff]
    %v245 = vld [vmem:[#allocation5 + $0x360] sm:$0xff]
    %v246 = vld [vmem:[#allocation5 + $0x368] sm:$0xff]
    %v247 = vld [vmem:[#allocation5 + $0x370] sm:$0xff]
    %v248 = vld [vmem:[#allocation5 + $0x378] sm:$0xff]
    %v249 = vld [vmem:[#allocation5 + $0x380] sm:$0xff]
    %v250 = vld [vmem:[#allocation5 + $0x388] sm:$0xff]
    %v251 = vld [vmem:[#allocation5 + $0x390] sm:$0xff]
    %v252 = vld [vmem:[#allocation5 + $0x398] sm:$0xff]
    %v253 = vld [vmem:[#allocation5 + $0x3a0] sm:$0xff]
    %v254 = vld [vmem:[#allocation5 + $0x3a8] sm:$0xff]
    %v255 = vld [vmem:[#allocation5 + $0x3b0] sm:$0xff]
    %v256 = vld [vmem:[#allocation5 + $0x3b8] sm:$0xff]
    %v257 = vld [vmem:[#allocation5 + $0x3c0] sm:$0xff]
    %v258 = vld [vmem:[#allocation5 + $0x3c8] sm:$0xff]
    %v259 = vld [vmem:[#allocation5 + $0x3d0] sm:$0xff]
    %v260 = vld [vmem:[#allocation5 + $0x3d8] sm:$0xff]
    %v261 = vld [vmem:[#allocation5 + $0x3e0] sm:$0xff]
    %v262 = vld [vmem:[#allocation5 + $0x3e8] sm:$0xff]
    %v263 = vld [vmem:[#allocation5 + $0x3f0] sm:$0xff]
    %v264 = vld [vmem:[#allocation5 + $0x3f8] sm:$0xff]
    %v265 = vld [vmem:[#allocation5 + $0x400] sm:$0xff]
    %v266 = vld [vmem:[#allocation5 + $0x408] sm:$0xff]
    %v267 = vld [vmem:[#allocation5 + $0x410] sm:$0xff]
    %v268 = vld [vmem:[#allocation5 + $0x418] sm:$0xff]
    %v269 = vld [vmem:[#allocation5 + $0x420] sm:$0xff]
    %v270 = vld [vmem:[#allocation5 + $0x428] sm:$0xff]
    %v271 = vld [vmem:[#allocation5 + $0x430] sm:$0xff]
    %v272 = vld [vmem:[#allocation5 + $0x438] sm:$0xff]
    %v273 = vld [vmem:[#allocation5 + $0x440] sm:$0xff]
    %v274 = vld [vmem:[#allocation5 + $0x448] sm:$0xff]
    %v275 = vld [vmem:[#allocation5 + $0x450] sm:$0xff]
    %v276 = vld [vmem:[#allocation5 + $0x458] sm:$0xff]
    %v277 = vld [vmem:[#allocation5 + $0x460] sm:$0xff]
    %v278 = vld [vmem:[#allocation5 + $0x468] sm:$0xff]
    %v279 = vld [vmem:[#allocation5 + $0x470] sm:$0xff]
    %v280 = vld [vmem:[#allocation5 + $0x478] sm:$0xff]
    %v281 = vld [vmem:[#allocation5 + $0x480] sm:$0xff]
    %v282 = vld [vmem:[#allocation5 + $0x488] sm:$0xff]
    %v283 = vld [vmem:[#allocation5 + $0x490] sm:$0xff]
    %v284 = vld [vmem:[#allocation5 + $0x498] sm:$0xff]
    %v285 = vld [vmem:[#allocation5 + $0x4a0] sm:$0xff]
    %v286 = vld [vmem:[#allocation5 + $0x4a8] sm:$0xff]
    %v287 = vld [vmem:[#allocation5 + $0x4b0] sm:$0xff]
    %v288 = vld [vmem:[#allocation5 + $0x4b8] sm:$0xff]
    %v289 = vld [vmem:[#allocation5 + $0x4c0] sm:$0xff]
    %v290 = vld [vmem:[#allocation5 + $0x4c8] sm:$0xff]
    %v291 = vld [vmem:[#allocation5 + $0x4d0] sm:$0xff]
    %v292 = vld [vmem:[#allocation5 + $0x4d8] sm:$0xff]
    %v293 = vld [vmem:[#allocation5 + $0x4e0] sm:$0xff]
    %v294 = vld [vmem:[#allocation5 + $0x4e8] sm:$0xff]
    %v295 = vld [vmem:[#allocation5 + $0x4f0] sm:$0xff]
    %v296 = vld [vmem:[#allocation5 + $0x4f8] sm:$0xff]
    %v297 = vld [vmem:[#allocation5 + $0x500] sm:$0xff]
    %v298 = vld [vmem:[#allocation5 + $0x508] sm:$0xff]
    %v299 = vld [vmem:[#allocation5 + $0x510] sm:$0xff]
    %v300 = vld [vmem:[#allocation5 + $0x518] sm:$0xff]
    %v301 = vld [vmem:[#allocation5 + $0x520] sm:$0xff]
    %v302 = vld [vmem:[#allocation5 + $0x528] sm:$0xff]
    %v303 = vld [vmem:[#allocation5 + $0x530] sm:$0xff]
    %v304 = vld [vmem:[#allocation5 + $0x538] sm:$0xff]
    %v305 = vld [vmem:[#allocation5 + $0x540] sm:$0xff]
    %v306 = vld [vmem:[#allocation5 + $0x548] sm:$0xff]
    %v307 = vld [vmem:[#allocation5 + $0x550] sm:$0xff]
    %v308 = vld [vmem:[#allocation5 + $0x558] sm:$0xff]
    %v309 = vld [vmem:[#allocation5 + $0x560] sm:$0xff]
    %v310 = vld [vmem:[#allocation5 + $0x568] sm:$0xff]
    %v311 = vld [vmem:[#allocation5 + $0x570] sm:$0xff]
    %v312 = vld [vmem:[#allocation5 + $0x578] sm:$0xff]
    %v313 = vld [vmem:[#allocation5 + $0x580] sm:$0xff]
    %v314 = vld [vmem:[#allocation5 + $0x588] sm:$0xff]
    %v315 = vld [vmem:[#allocation5 + $0x590] sm:$0xff]
    %v316 = vld [vmem:[#allocation5 + $0x598] sm:$0xff]
    %v317 = vld [vmem:[#allocation5 + $0x5a0] sm:$0xff]
    %v318 = vld [vmem:[#allocation5 + $0x5a8] sm:$0xff]
    %v319 = vld [vmem:[#allocation5 + $0x5b0] sm:$0xff]
    %v320 = vld [vmem:[#allocation5 + $0x5b8] sm:$0xff]
    %v321 = vld [vmem:[#allocation5 + $0x5c0] sm:$0xff]
    %v322 = vld [vmem:[#allocation5 + $0x5c8] sm:$0xff]
    %v323 = vld [vmem:[#allocation5 + $0x5d0] sm:$0xff]
    %v324 = vld [vmem:[#allocation5 + $0x5d8] sm:$0xff]
    %v325 = vld [vmem:[#allocation5 + $0x5e0] sm:$0xff]
    %v326 = vld [vmem:[#allocation5 + $0x5e8] sm:$0xff]
    %v327 = vld [vmem:[#allocation5 + $0x5f0] sm:$0xff]
    %v328 = vld [vmem:[#allocation5 + $0x5f8] sm:$0xff]
    %v330 = vlaneseq
    %v331 = vshrl.u32 %v330, 7
    %v332 = vsub.s32 0, %v331
    %v333 = vrot.slane %v120, %v332
    %v334 = vlaneseq
    %v335 = vshrl.u32 %v334, 7
    %v336 = vsub.s32 1, %v335
    %v337 = vrot.slane %v120, %v336
    %v338 = vlaneseq
    %v339 = vshrl.u32 %v338, 7
    %v340 = vsub.s32 2, %v339
    %v341 = vrot.slane %v120, %v340
    %v342 = vlaneseq
    %v343 = vshrl.u32 %v342, 7
    %v344 = vsub.s32 3, %v343
    %v345 = vrot.slane %v120, %v344
    %v542 = vunpack.c.l.b16 %v137
    %v543 = vunpack.c.h.b16 %v137
    %v544 = vunpack.c.l.b16 %v138
    %v545 = vunpack.c.h.b16 %v138
    %v546 = vunpack.c.l.b16 %v139
    %v547 = vunpack.c.h.b16 %v139
    %v548 = vunpack.c.l.b16 %v140
    %v549 = vunpack.c.h.b16 %v140
    %v550 = vunpack.c.l.b16 %v141
    %v551 = vunpack.c.h.b16 %v141
    %v552 = vunpack.c.l.b16 %v142
    %v553 = vunpack.c.h.b16 %v142
    %v554 = vunpack.c.l.b16 %v143
    %v555 = vunpack.c.h.b16 %v143
    %v556 = vunpack.c.l.b16 %v144
    %v557 = vunpack.c.h.b16 %v144
    %v558 = vunpack.c.l.b16 %v145
    %v559 = vunpack.c.h.b16 %v145
    %v560 = vunpack.c.l.b16 %v146
    %v561 = vunpack.c.h.b16 %v146
    %v562 = vunpack.c.l.b16 %v147
    %v563 = vunpack.c.h.b16 %v147
    %v564 = vunpack.c.l.b16 %v148
    %v565 = vunpack.c.h.b16 %v148
    %v566 = vunpack.c.l.b16 %v149
    %v567 = vunpack.c.h.b16 %v149
    %v568 = vunpack.c.l.b16 %v150
    %v569 = vunpack.c.h.b16 %v150
    %v570 = vunpack.c.l.b16 %v151
    %v571 = vunpack.c.h.b16 %v151
    %v572 = vunpack.c.l.b16 %v152
    %v573 = vunpack.c.h.b16 %v152
    %v574 = vunpack.c.l.b16 %v153
    %v575 = vunpack.c.h.b16 %v153
    %v576 = vunpack.c.l.b16 %v154
    %v577 = vunpack.c.h.b16 %v154
    %v578 = vunpack.c.l.b16 %v155
    %v579 = vunpack.c.h.b16 %v155
    %v580 = vunpack.c.l.b16 %v156
    %v581 = vunpack.c.h.b16 %v156
    %v582 = vunpack.c.l.b16 %v157
    %v583 = vunpack.c.h.b16 %v157
    %v584 = vunpack.c.l.b16 %v158
    %v585 = vunpack.c.h.b16 %v158
    %v586 = vunpack.c.l.b16 %v159
    %v587 = vunpack.c.h.b16 %v159
    %v588 = vunpack.c.l.b16 %v160
    %v589 = vunpack.c.h.b16 %v160
    %v590 = vunpack.c.l.b16 %v161
    %v591 = vunpack.c.h.b16 %v161
    %v592 = vunpack.c.l.b16 %v162
    %v593 = vunpack.c.h.b16 %v162
    %v594 = vunpack.c.l.b16 %v163
    %v595 = vunpack.c.h.b16 %v163
    %v596 = vunpack.c.l.b16 %v164
    %v597 = vunpack.c.h.b16 %v164
    %v598 = vunpack.c.l.b16 %v165
    %v599 = vunpack.c.h.b16 %v165
    %v600 = vunpack.c.l.b16 %v166
    %v601 = vunpack.c.h.b16 %v166
    %v602 = vunpack.c.l.b16 %v167
    %v603 = vunpack.c.h.b16 %v167
    %v604 = vunpack.c.l.b16 %v168
    %v605 = vunpack.c.h.b16 %v168
    %v606 = vunpack.c.l.b16 %v169
    %v607 = vunpack.c.h.b16 %v169
    %v608 = vunpack.c.l.b16 %v170
    %v609 = vunpack.c.h.b16 %v170
    %v610 = vunpack.c.l.b16 %v171
    %v611 = vunpack.c.h.b16 %v171
    %v612 = vunpack.c.l.b16 %v172
    %v613 = vunpack.c.h.b16 %v172
    %v614 = vunpack.c.l.b16 %v173
    %v615 = vunpack.c.h.b16 %v173
    %v616 = vunpack.c.l.b16 %v174
    %v617 = vunpack.c.h.b16 %v174
    %v618 = vunpack.c.l.b16 %v175
    %v619 = vunpack.c.h.b16 %v175
    %v620 = vunpack.c.l.b16 %v176
    %v621 = vunpack.c.h.b16 %v176
    %v622 = vunpack.c.l.b16 %v177
    %v623 = vunpack.c.h.b16 %v177
    %v624 = vunpack.c.l.b16 %v178
    %v625 = vunpack.c.h.b16 %v178
    %v626 = vunpack.c.l.b16 %v179
    %v627 = vunpack.c.h.b16 %v179
    %v628 = vunpack.c.l.b16 %v180
    %v629 = vunpack.c.h.b16 %v180
    %v630 = vunpack.c.l.b16 %v181
    %v631 = vunpack.c.h.b16 %v181
    %v632 = vunpack.c.l.b16 %v182
    %v633 = vunpack.c.h.b16 %v182
    %v634 = vunpack.c.l.b16 %v183
    %v635 = vunpack.c.h.b16 %v183
    %v636 = vunpack.c.l.b16 %v184
    %v637 = vunpack.c.h.b16 %v184
    %v638 = vunpack.c.l.b16 %v185
    %v639 = vunpack.c.h.b16 %v185
    %v640 = vunpack.c.l.b16 %v186
    %v641 = vunpack.c.h.b16 %v186
    %v642 = vunpack.c.l.b16 %v187
    %v643 = vunpack.c.h.b16 %v187
    %v644 = vunpack.c.l.b16 %v188
    %v645 = vunpack.c.h.b16 %v188
    %v646 = vunpack.c.l.b16 %v189
    %v647 = vunpack.c.h.b16 %v189
    %v648 = vunpack.c.l.b16 %v190
    %v649 = vunpack.c.h.b16 %v190
    %v650 = vunpack.c.l.b16 %v191
    %v651 = vunpack.c.h.b16 %v191
    %v652 = vunpack.c.l.b16 %v192
    %v653 = vunpack.c.h.b16 %v192
    %v654 = vunpack.c.l.b16 %v193
    %v655 = vunpack.c.h.b16 %v193
    %v656 = vunpack.c.l.b16 %v194
    %v657 = vunpack.c.h.b16 %v194
    %v658 = vunpack.c.l.b16 %v195
    %v659 = vunpack.c.h.b16 %v195
    %v660 = vunpack.c.l.b16 %v196
    %v661 = vunpack.c.h.b16 %v196
    %v662 = vunpack.c.l.b16 %v197
    %v663 = vunpack.c.h.b16 %v197
    %v664 = vunpack.c.l.b16 %v198
    %v665 = vunpack.c.h.b16 %v198
    %v666 = vunpack.c.l.b16 %v199
    %v667 = vunpack.c.h.b16 %v199
    %v668 = vunpack.c.l.b16 %v200
    %v669 = vunpack.c.h.b16 %v200
    %v670 = vunpack.c.l.b16 %v201
    %v671 = vunpack.c.h.b16 %v201
    %v672 = vunpack.c.l.b16 %v202
    %v673 = vunpack.c.h.b16 %v202
    %v674 = vunpack.c.l.b16 %v203
    %v675 = vunpack.c.h.b16 %v203
    %v676 = vunpack.c.l.b16 %v204
    %v677 = vunpack.c.h.b16 %v204
    %v678 = vunpack.c.l.b16 %v205
    %v679 = vunpack.c.h.b16 %v205
    %v680 = vunpack.c.l.b16 %v206
    %v681 = vunpack.c.h.b16 %v206
    %v682 = vunpack.c.l.b16 %v207
    %v683 = vunpack.c.h.b16 %v207
    %v684 = vunpack.c.l.b16 %v208
    %v685 = vunpack.c.h.b16 %v208
    %v686 = vunpack.c.l.b16 %v209
    %v687 = vunpack.c.h.b16 %v209
    %v688 = vunpack.c.l.b16 %v210
    %v689 = vunpack.c.h.b16 %v210
    %v690 = vunpack.c.l.b16 %v211
    %v691 = vunpack.c.h.b16 %v211
    %v692 = vunpack.c.l.b16 %v212
    %v693 = vunpack.c.h.b16 %v212
    %v694 = vunpack.c.l.b16 %v213
    %v695 = vunpack.c.h.b16 %v213
    %v696 = vunpack.c.l.b16 %v214
    %v697 = vunpack.c.h.b16 %v214
    %v698 = vunpack.c.l.b16 %v215
    %v699 = vunpack.c.h.b16 %v215
    %v700 = vunpack.c.l.b16 %v216
    %v701 = vunpack.c.h.b16 %v216
    %v702 = vunpack.c.l.b16 %v217
    %v703 = vunpack.c.h.b16 %v217
    %v704 = vunpack.c.l.b16 %v218
    %v705 = vunpack.c.h.b16 %v218
    %v706 = vunpack.c.l.b16 %v219
    %v707 = vunpack.c.h.b16 %v219
    %v708 = vunpack.c.l.b16 %v220
    %v709 = vunpack.c.h.b16 %v220
    %v710 = vunpack.c.l.b16 %v221
    %v711 = vunpack.c.h.b16 %v221
    %v712 = vunpack.c.l.b16 %v222
    %v713 = vunpack.c.h.b16 %v222
    %v714 = vunpack.c.l.b16 %v223
    %v715 = vunpack.c.h.b16 %v223
    %v716 = vunpack.c.l.b16 %v224
    %v717 = vunpack.c.h.b16 %v224
    %v718 = vunpack.c.l.b16 %v225
    %v719 = vunpack.c.h.b16 %v225
    %v720 = vunpack.c.l.b16 %v226
    %v721 = vunpack.c.h.b16 %v226
    %v722 = vunpack.c.l.b16 %v227
    %v723 = vunpack.c.h.b16 %v227
    %v724 = vunpack.c.l.b16 %v228
    %v725 = vunpack.c.h.b16 %v228
    %v726 = vunpack.c.l.b16 %v229
    %v727 = vunpack.c.h.b16 %v229
    %v728 = vunpack.c.l.b16 %v230
    %v729 = vunpack.c.h.b16 %v230
    %v730 = vunpack.c.l.b16 %v231
    %v731 = vunpack.c.h.b16 %v231
    %v732 = vunpack.c.l.b16 %v232
    %v733 = vunpack.c.h.b16 %v232
    %v734 = vunpack.c.l.b16 %v233
    %v735 = vunpack.c.h.b16 %v233
    %v736 = vunpack.c.l.b16 %v234
    %v737 = vunpack.c.h.b16 %v234
    %v738 = vunpack.c.l.b16 %v235
    %v739 = vunpack.c.h.b16 %v235
    %v740 = vunpack.c.l.b16 %v236
    %v741 = vunpack.c.h.b16 %v236
    %v742 = vunpack.c.l.b16 %v237
    %v743 = vunpack.c.h.b16 %v237
    %v744 = vunpack.c.l.b16 %v238
    %v745 = vunpack.c.h.b16 %v238
    %v746 = vunpack.c.l.b16 %v239
    %v747 = vunpack.c.h.b16 %v239
    %v748 = vunpack.c.l.b16 %v240
    %v749 = vunpack.c.h.b16 %v240
    %v750 = vunpack.c.l.b16 %v241
    %v751 = vunpack.c.h.b16 %v241
    %v752 = vunpack.c.l.b16 %v242
    %v753 = vunpack.c.h.b16 %v242
    %v754 = vunpack.c.l.b16 %v243
    %v755 = vunpack.c.h.b16 %v243
    %v756 = vunpack.c.l.b16 %v244
    %v757 = vunpack.c.h.b16 %v244
    %v758 = vunpack.c.l.b16 %v245
    %v759 = vunpack.c.h.b16 %v245
    %v760 = vunpack.c.l.b16 %v246
    %v761 = vunpack.c.h.b16 %v246
    %v762 = vunpack.c.l.b16 %v247
    %v763 = vunpack.c.h.b16 %v247
    %v764 = vunpack.c.l.b16 %v248
    %v765 = vunpack.c.h.b16 %v248
    %v766 = vunpack.c.l.b16 %v249
    %v767 = vunpack.c.h.b16 %v249
    %v768 = vunpack.c.l.b16 %v250
    %v769 = vunpack.c.h.b16 %v250
    %v770 = vunpack.c.l.b16 %v251
    %v771 = vunpack.c.h.b16 %v251
    %v772 = vunpack.c.l.b16 %v252
    %v773 = vunpack.c.h.b16 %v252
    %v774 = vunpack.c.l.b16 %v253
    %v775 = vunpack.c.h.b16 %v253
    %v776 = vunpack.c.l.b16 %v254
    %v777 = vunpack.c.h.b16 %v254
    %v778 = vunpack.c.l.b16 %v255
    %v779 = vunpack.c.h.b16 %v255
    %v780 = vunpack.c.l.b16 %v256
    %v781 = vunpack.c.h.b16 %v256
    %v782 = vunpack.c.l.b16 %v257
    %v783 = vunpack.c.h.b16 %v257
    %v784 = vunpack.c.l.b16 %v258
    %v785 = vunpack.c.h.b16 %v258
    %v786 = vunpack.c.l.b16 %v259
    %v787 = vunpack.c.h.b16 %v259
    %v788 = vunpack.c.l.b16 %v260
    %v789 = vunpack.c.h.b16 %v260
    %v790 = vunpack.c.l.b16 %v261
    %v791 = vunpack.c.h.b16 %v261
    %v792 = vunpack.c.l.b16 %v262
    %v793 = vunpack.c.h.b16 %v262
    %v794 = vunpack.c.l.b16 %v263
    %v795 = vunpack.c.h.b16 %v263
    %v796 = vunpack.c.l.b16 %v264
    %v797 = vunpack.c.h.b16 %v264
    %v798 = vunpack.c.l.b16 %v265
    %v799 = vunpack.c.h.b16 %v265
    %v800 = vunpack.c.l.b16 %v266
    %v801 = vunpack.c.h.b16 %v266
    %v802 = vunpack.c.l.b16 %v267
    %v803 = vunpack.c.h.b16 %v267
    %v804 = vunpack.c.l.b16 %v268
    %v805 = vunpack.c.h.b16 %v268
    %v806 = vunpack.c.l.b16 %v269
    %v807 = vunpack.c.h.b16 %v269
    %v808 = vunpack.c.l.b16 %v270
    %v809 = vunpack.c.h.b16 %v270
    %v810 = vunpack.c.l.b16 %v271
    %v811 = vunpack.c.h.b16 %v271
    %v812 = vunpack.c.l.b16 %v272
    %v813 = vunpack.c.h.b16 %v272
    %v814 = vunpack.c.l.b16 %v273
    %v815 = vunpack.c.h.b16 %v273
    %v816 = vunpack.c.l.b16 %v274
    %v817 = vunpack.c.h.b16 %v274
    %v818 = vunpack.c.l.b16 %v275
    %v819 = vunpack.c.h.b16 %v275
    %v820 = vunpack.c.l.b16 %v276
    %v821 = vunpack.c.h.b16 %v276
    %v822 = vunpack.c.l.b16 %v277
    %v823 = vunpack.c.h.b16 %v277
    %v824 = vunpack.c.l.b16 %v278
    %v825 = vunpack.c.h.b16 %v278
    %v826 = vunpack.c.l.b16 %v279
    %v827 = vunpack.c.h.b16 %v279
    %v828 = vunpack.c.l.b16 %v280
    %v829 = vunpack.c.h.b16 %v280
    %v830 = vunpack.c.l.b16 %v281
    %v831 = vunpack.c.h.b16 %v281
    %v832 = vunpack.c.l.b16 %v282
    %v833 = vunpack.c.h.b16 %v282
    %v834 = vunpack.c.l.b16 %v283
    %v835 = vunpack.c.h.b16 %v283
    %v836 = vunpack.c.l.b16 %v284
    %v837 = vunpack.c.h.b16 %v284
    %v838 = vunpack.c.l.b16 %v285
    %v839 = vunpack.c.h.b16 %v285
    %v840 = vunpack.c.l.b16 %v286
    %v841 = vunpack.c.h.b16 %v286
    %v842 = vunpack.c.l.b16 %v287
    %v843 = vunpack.c.h.b16 %v287
    %v844 = vunpack.c.l.b16 %v288
    %v845 = vunpack.c.h.b16 %v288
    %v846 = vunpack.c.l.b16 %v289
    %v847 = vunpack.c.h.b16 %v289
    %v848 = vunpack.c.l.b16 %v290
    %v849 = vunpack.c.h.b16 %v290
    %v850 = vunpack.c.l.b16 %v291
    %v851 = vunpack.c.h.b16 %v291
    %v852 = vunpack.c.l.b16 %v292
    %v853 = vunpack.c.h.b16 %v292
    %v854 = vunpack.c.l.b16 %v293
    %v855 = vunpack.c.h.b16 %v293
    %v856 = vunpack.c.l.b16 %v294
    %v857 = vunpack.c.h.b16 %v294
    %v858 = vunpack.c.l.b16 %v295
    %v859 = vunpack.c.h.b16 %v295
    %v860 = vunpack.c.l.b16 %v296
    %v861 = vunpack.c.h.b16 %v296
    %v862 = vunpack.c.l.b16 %v297
    %v863 = vunpack.c.h.b16 %v297
    %v864 = vunpack.c.l.b16 %v298
    %v865 = vunpack.c.h.b16 %v298
    %v866 = vunpack.c.l.b16 %v299
    %v867 = vunpack.c.h.b16 %v299
    %v868 = vunpack.c.l.b16 %v300
    %v869 = vunpack.c.h.b16 %v300
    %v870 = vunpack.c.l.b16 %v301
    %v871 = vunpack.c.h.b16 %v301
    %v872 = vunpack.c.l.b16 %v302
    %v873 = vunpack.c.h.b16 %v302
    %v874 = vunpack.c.l.b16 %v303
    %v875 = vunpack.c.h.b16 %v303
    %v876 = vunpack.c.l.b16 %v304
    %v877 = vunpack.c.h.b16 %v304
    %v878 = vunpack.c.l.b16 %v305
    %v879 = vunpack.c.h.b16 %v305
    %v880 = vunpack.c.l.b16 %v306
    %v881 = vunpack.c.h.b16 %v306
    %v882 = vunpack.c.l.b16 %v307
    %v883 = vunpack.c.h.b16 %v307
    %v884 = vunpack.c.l.b16 %v308
    %v885 = vunpack.c.h.b16 %v308
    %v886 = vunpack.c.l.b16 %v309
    %v887 = vunpack.c.h.b16 %v309
    %v888 = vunpack.c.l.b16 %v310
    %v889 = vunpack.c.h.b16 %v310
    %v890 = vunpack.c.l.b16 %v311
    %v891 = vunpack.c.h.b16 %v311
    %v892 = vunpack.c.l.b16 %v312
    %v893 = vunpack.c.h.b16 %v312
    %v894 = vunpack.c.l.b16 %v313
    %v895 = vunpack.c.h.b16 %v313
    %v896 = vunpack.c.l.b16 %v314
    %v897 = vunpack.c.h.b16 %v314
    %v898 = vunpack.c.l.b16 %v315
    %v899 = vunpack.c.h.b16 %v315
    %v900 = vunpack.c.l.b16 %v316
    %v901 = vunpack.c.h.b16 %v316
    %v902 = vunpack.c.l.b16 %v317
    %v903 = vunpack.c.h.b16 %v317
    %v904 = vunpack.c.l.b16 %v318
    %v905 = vunpack.c.h.b16 %v318
    %v906 = vunpack.c.l.b16 %v319
    %v907 = vunpack.c.h.b16 %v319
    %v908 = vunpack.c.l.b16 %v320
    %v909 = vunpack.c.h.b16 %v320
    %v910 = vunpack.c.l.b16 %v321
    %v911 = vunpack.c.h.b16 %v321
    %v912 = vunpack.c.l.b16 %v322
    %v913 = vunpack.c.h.b16 %v322
    %v914 = vunpack.c.l.b16 %v323
    %v915 = vunpack.c.h.b16 %v323
    %v916 = vunpack.c.l.b16 %v324
    %v917 = vunpack.c.h.b16 %v324
    %v918 = vunpack.c.l.b16 %v325
    %v919 = vunpack.c.h.b16 %v325
    %v920 = vunpack.c.l.b16 %v326
    %v921 = vunpack.c.h.b16 %v326
    %v922 = vunpack.c.l.b16 %v327
    %v923 = vunpack.c.h.b16 %v327
    %v924 = vunpack.c.l.b16 %v328
    %v925 = vunpack.c.h.b16 %v328
    %v926 = vpack.c.b16 %v546, %v542
    %v927 = vpack.c.b16 %v547, %v543
    %v928 = vpack.c.b16 %v548, %v544
    %v929 = vpack.c.b16 %v549, %v545
    %v930 = vpack.c.b16 %v554, %v550
    %v931 = vpack.c.b16 %v555, %v551
    %v932 = vpack.c.b16 %v556, %v552
    %v933 = vpack.c.b16 %v557, %v553
    %v934 = vpack.c.b16 %v562, %v558
    %v935 = vpack.c.b16 %v563, %v559
    %v936 = vpack.c.b16 %v564, %v560
    %v937 = vpack.c.b16 %v565, %v561
    %v938 = vpack.c.b16 %v570, %v566
    %v939 = vpack.c.b16 %v571, %v567
    %v940 = vpack.c.b16 %v572, %v568
    %v941 = vpack.c.b16 %v573, %v569
    %v942 = vpack.c.b16 %v578, %v574
    %v943 = vpack.c.b16 %v579, %v575
    %v944 = vpack.c.b16 %v580, %v576
    %v945 = vpack.c.b16 %v581, %v577
    %v946 = vpack.c.b16 %v586, %v582
    %v947 = vpack.c.b16 %v587, %v583
    %v948 = vpack.c.b16 %v588, %v584
    %v949 = vpack.c.b16 %v589, %v585
    %v950 = vpack.c.b16 %v594, %v590
    %v951 = vpack.c.b16 %v595, %v591
    %v952 = vpack.c.b16 %v596, %v592
    %v953 = vpack.c.b16 %v597, %v593
    %v954 = vpack.c.b16 %v602, %v598
    %v955 = vpack.c.b16 %v603, %v599
    %v956 = vpack.c.b16 %v604, %v600
    %v957 = vpack.c.b16 %v605, %v601
    %v958 = vpack.c.b16 %v610, %v606
    %v959 = vpack.c.b16 %v611, %v607
    %v960 = vpack.c.b16 %v612, %v608
    %v961 = vpack.c.b16 %v613, %v609
    %v962 = vpack.c.b16 %v618, %v614
    %v963 = vpack.c.b16 %v619, %v615
    %v964 = vpack.c.b16 %v620, %v616
    %v965 = vpack.c.b16 %v621, %v617
    %v966 = vpack.c.b16 %v626, %v622
    %v967 = vpack.c.b16 %v627, %v623
    %v968 = vpack.c.b16 %v628, %v624
    %v969 = vpack.c.b16 %v629, %v625
    %v970 = vpack.c.b16 %v634, %v630
    %v971 = vpack.c.b16 %v635, %v631
    %v972 = vpack.c.b16 %v636, %v632
    %v973 = vpack.c.b16 %v637, %v633
    %v974 = vpack.c.b16 %v642, %v638
    %v975 = vpack.c.b16 %v643, %v639
    %v976 = vpack.c.b16 %v644, %v640
    %v977 = vpack.c.b16 %v645, %v641
    %v978 = vpack.c.b16 %v650, %v646
    %v979 = vpack.c.b16 %v651, %v647
    %v980 = vpack.c.b16 %v652, %v648
    %v981 = vpack.c.b16 %v653, %v649
    %v982 = vpack.c.b16 %v658, %v654
    %v983 = vpack.c.b16 %v659, %v655
    %v984 = vpack.c.b16 %v660, %v656
    %v985 = vpack.c.b16 %v661, %v657
    %v986 = vpack.c.b16 %v666, %v662
    %v987 = vpack.c.b16 %v667, %v663
    %v988 = vpack.c.b16 %v668, %v664
    %v989 = vpack.c.b16 %v669, %v665
    %v990 = vpack.c.b16 %v674, %v670
    %v991 = vpack.c.b16 %v675, %v671
    %v992 = vpack.c.b16 %v676, %v672
    %v993 = vpack.c.b16 %v677, %v673
    %v994 = vpack.c.b16 %v682, %v678
    %v995 = vpack.c.b16 %v683, %v679
    %v996 = vpack.c.b16 %v684, %v680
    %v997 = vpack.c.b16 %v685, %v681
    %v998 = vpack.c.b16 %v690, %v686
    %v999 = vpack.c.b16 %v691, %v687
    %v1000 = vpack.c.b16 %v692, %v688
    %v1001 = vpack.c.b16 %v693, %v689
    %v1002 = vpack.c.b16 %v698, %v694
    %v1003 = vpack.c.b16 %v699, %v695
    %v1004 = vpack.c.b16 %v700, %v696
    %v1005 = vpack.c.b16 %v701, %v697
    %v1006 = vpack.c.b16 %v706, %v702
    %v1007 = vpack.c.b16 %v707, %v703
    %v1008 = vpack.c.b16 %v708, %v704
    %v1009 = vpack.c.b16 %v709, %v705
    %v1010 = vpack.c.b16 %v714, %v710
    %v1011 = vpack.c.b16 %v715, %v711
    %v1012 = vpack.c.b16 %v716, %v712
    %v1013 = vpack.c.b16 %v717, %v713
    %v1014 = vpack.c.b16 %v722, %v718
    %v1015 = vpack.c.b16 %v723, %v719
    %v1016 = vpack.c.b16 %v724, %v720
    %v1017 = vpack.c.b16 %v725, %v721
    %v1018 = vpack.c.b16 %v730, %v726
    %v1019 = vpack.c.b16 %v731, %v727
    %v1020 = vpack.c.b16 %v732, %v728
    %v1021 = vpack.c.b16 %v733, %v729
    %v1022 = vpack.c.b16 %v738, %v734
    %v1023 = vpack.c.b16 %v739, %v735
    %v1024 = vpack.c.b16 %v740, %v736
    %v1025 = vpack.c.b16 %v741, %v737
    %v1026 = vpack.c.b16 %v746, %v742
    %v1027 = vpack.c.b16 %v747, %v743
    %v1028 = vpack.c.b16 %v748, %v744
    %v1029 = vpack.c.b16 %v749, %v745
    %v1030 = vpack.c.b16 %v754, %v750
    %v1031 = vpack.c.b16 %v755, %v751
    %v1032 = vpack.c.b16 %v756, %v752
    %v1033 = vpack.c.b16 %v757, %v753
    %v1034 = vpack.c.b16 %v762, %v758
    %v1035 = vpack.c.b16 %v763, %v759
    %v1036 = vpack.c.b16 %v764, %v760
    %v1037 = vpack.c.b16 %v765, %v761
    %v1038 = vpack.c.b16 %v770, %v766
    %v1039 = vpack.c.b16 %v771, %v767
    %v1040 = vpack.c.b16 %v772, %v768
    %v1041 = vpack.c.b16 %v773, %v769
    %v1042 = vpack.c.b16 %v778, %v774
    %v1043 = vpack.c.b16 %v779, %v775
    %v1044 = vpack.c.b16 %v780, %v776
    %v1045 = vpack.c.b16 %v781, %v777
    %v1046 = vpack.c.b16 %v786, %v782
    %v1047 = vpack.c.b16 %v787, %v783
    %v1048 = vpack.c.b16 %v788, %v784
    %v1049 = vpack.c.b16 %v789, %v785
    %v1050 = vpack.c.b16 %v794, %v790
    %v1051 = vpack.c.b16 %v795, %v791
    %v1052 = vpack.c.b16 %v796, %v792
    %v1053 = vpack.c.b16 %v797, %v793
    %v1054 = vpack.c.b16 %v802, %v798
    %v1055 = vpack.c.b16 %v803, %v799
    %v1056 = vpack.c.b16 %v804, %v800
    %v1057 = vpack.c.b16 %v805, %v801
    %v1058 = vpack.c.b16 %v810, %v806
    %v1059 = vpack.c.b16 %v811, %v807
    %v1060 = vpack.c.b16 %v812, %v808
    %v1061 = vpack.c.b16 %v813, %v809
    %v1062 = vpack.c.b16 %v818, %v814
    %v1063 = vpack.c.b16 %v819, %v815
    %v1064 = vpack.c.b16 %v820, %v816
    %v1065 = vpack.c.b16 %v821, %v817
    %v1066 = vpack.c.b16 %v826, %v822
    %v1067 = vpack.c.b16 %v827, %v823
    %v1068 = vpack.c.b16 %v828, %v824
    %v1069 = vpack.c.b16 %v829, %v825
    %v1070 = vpack.c.b16 %v834, %v830
    %v1071 = vpack.c.b16 %v835, %v831
    %v1072 = vpack.c.b16 %v836, %v832
    %v1073 = vpack.c.b16 %v837, %v833
    %v1074 = vpack.c.b16 %v842, %v838
    %v1075 = vpack.c.b16 %v843, %v839
    %v1076 = vpack.c.b16 %v844, %v840
    %v1077 = vpack.c.b16 %v845, %v841
    %v1078 = vpack.c.b16 %v850, %v846
    %v1079 = vpack.c.b16 %v851, %v847
    %v1080 = vpack.c.b16 %v852, %v848
    %v1081 = vpack.c.b16 %v853, %v849
    %v1082 = vpack.c.b16 %v858, %v854
    %v1083 = vpack.c.b16 %v859, %v855
    %v1084 = vpack.c.b16 %v860, %v856
    %v1085 = vpack.c.b16 %v861, %v857
    %v1086 = vpack.c.b16 %v866, %v862
    %v1087 = vpack.c.b16 %v867, %v863
    %v1088 = vpack.c.b16 %v868, %v864
    %v1089 = vpack.c.b16 %v869, %v865
    %v1090 = vpack.c.b16 %v874, %v870
    %v1091 = vpack.c.b16 %v875, %v871
    %v1092 = vpack.c.b16 %v876, %v872
    %v1093 = vpack.c.b16 %v877, %v873
    %v1094 = vpack.c.b16 %v882, %v878
    %v1095 = vpack.c.b16 %v883, %v879
    %v1096 = vpack.c.b16 %v884, %v880
    %v1097 = vpack.c.b16 %v885, %v881
    %v1098 = vpack.c.b16 %v890, %v886
    %v1099 = vpack.c.b16 %v891, %v887
    %v1100 = vpack.c.b16 %v892, %v888
    %v1101 = vpack.c.b16 %v893, %v889
    %v1102 = vpack.c.b16 %v898, %v894
    %v1103 = vpack.c.b16 %v899, %v895
    %v1104 = vpack.c.b16 %v900, %v896
    %v1105 = vpack.c.b16 %v901, %v897
    %v1106 = vpack.c.b16 %v906, %v902
    %v1107 = vpack.c.b16 %v907, %v903
    %v1108 = vpack.c.b16 %v908, %v904
    %v1109 = vpack.c.b16 %v909, %v905
    %v1110 = vpack.c.b16 %v914, %v910
    %v1111 = vpack.c.b16 %v915, %v911
    %v1112 = vpack.c.b16 %v916, %v912
    %v1113 = vpack.c.b16 %v917, %v913
    %v1114 = vpack.c.b16 %v922, %v918
    %v1115 = vpack.c.b16 %v923, %v919
    %v1116 = vpack.c.b16 %v924, %v920
    %v1117 = vpack.c.b16 %v925, %v921
    %1310 = vmatprep.subr.bf16.mxu0 %v927
    %1311 = vmatpush1.bf16.msra.mxu0 %v926
    %1312 = vmatprep.subr.bf16.mxu0 %v931
    %1313 = vmatpush1.bf16.msra.mxu0 %v930
    %1314 = vmatprep.subr.bf16.mxu0 %v935
    %1315 = vmatpush1.bf16.msra.mxu0 %v934
    %1316 = vmatprep.subr.bf16.mxu0 %v939
    %1317 = vmatpush1.bf16.msra.mxu0 %v938
    %1318 = vmatprep.subr.bf16.mxu0 %v943
    %1319 = vmatpush1.bf16.msra.mxu0 %v942
    %1320 = vmatprep.subr.bf16.mxu0 %v947
    %1321 = vmatpush1.bf16.msra.mxu0 %v946
    %1322 = vmatprep.subr.bf16.mxu0 %v951
    %1323 = vmatpush1.bf16.msra.mxu0 %v950
    %1324 = vmatprep.subr.bf16.mxu0 %v955
    %1325 = vmatpush1.bf16.msra.mxu0 %v954
    %1326 = vmatprep.subr.bf16.mxu0 %v959
    %1327 = vmatpush1.bf16.msra.mxu0 %v958
    %1328 = vmatprep.subr.bf16.mxu0 %v963
    %1329 = vmatpush1.bf16.msra.mxu0 %v962
    %1330 = vmatprep.subr.bf16.mxu0 %v967
    %1331 = vmatpush1.bf16.msra.mxu0 %v966
    %1332 = vmatprep.subr.bf16.mxu0 %v971
    %1333 = vmatpush1.bf16.msra.mxu0 %v970
    %1334 = vmatprep.subr.bf16.mxu0 %v975
    %1335 = vmatpush1.bf16.msra.mxu0 %v974
    %1336 = vmatprep.subr.bf16.mxu0 %v979
    %1337 = vmatpush1.bf16.msra.mxu0 %v978
    %1338 = vmatprep.subr.bf16.mxu0 %v983
    %1339 = vmatpush1.bf16.msra.mxu0 %v982
    %1340 = vmatprep.subr.bf16.mxu0 %v987
    %1341 = vmatpush1.bf16.msra.mxu0 %v986
    %1342 = vmatprep.mubr.bf16.mxu0 %v132
    %1343 = vmatmul.mubr.bf16.gmra.mrb[0].mxu0 %v131
    %v1344 = vpop.f32.mrb[0].mxu0
    %v1345 = vadd.f32 %v333, %v1344
    %v1346 = vpop.f32.mrb[0].mxu0
    %v1347 = vadd.f32 %v337, %v1346
    %v1348 = vpop.f32.mrb[0].mxu0
    %v1349 = vpop.f32.mrb[0].mxu0
    %1350 = vdwg.mxu0
    %1351 = vmatprep.subr.bf16.mxu0 %v991
    %1352 = vmatpush1.bf16.msra.mxu0 %v990
    %1353 = vmatprep.subr.bf16.mxu0 %v995
    %1354 = vmatpush1.bf16.msra.mxu0 %v994
    %1355 = vmatprep.subr.bf16.mxu0 %v999
    %1356 = vmatpush1.bf16.msra.mxu0 %v998
    %1357 = vmatprep.subr.bf16.mxu0 %v1003
    %1358 = vmatpush1.bf16.msra.mxu0 %v1002
    %1359 = vmatprep.subr.bf16.mxu0 %v1007
    %1360 = vmatpush1.bf16.msra.mxu0 %v1006
    %1361 = vmatprep.subr.bf16.mxu0 %v1011
    %1362 = vmatpush1.bf16.msra.mxu0 %v1010
    %1363 = vmatprep.subr.bf16.mxu0 %v1015
    %1364 = vmatpush1.bf16.msra.mxu0 %v1014
    %1365 = vmatprep.subr.bf16.mxu0 %v1019
    %1366 = vmatpush1.bf16.msra.mxu0 %v1018
    %1367 = vmatprep.subr.bf16.mxu0 %v1023
    %1368 = vmatpush1.bf16.msra.mxu0 %v1022
    %1369 = vmatprep.subr.bf16.mxu0 %v1027
    %1370 = vmatpush1.bf16.msra.mxu0 %v1026
    %1371 = vmatprep.subr.bf16.mxu0 %v1031
    %1372 = vmatpush1.bf16.msra.mxu0 %v1030
    %1373 = vmatprep.subr.bf16.mxu0 %v1035
    %1374 = vmatpush1.bf16.msra.mxu0 %v1034
    %1375 = vmatprep.subr.bf16.mxu0 %v1039
    %1376 = vmatpush1.bf16.msra.mxu0 %v1038
    %1377 = vmatprep.subr.bf16.mxu0 %v1043
    %1378 = vmatpush1.bf16.msra.mxu0 %v1042
    %1379 = vmatprep.subr.bf16.mxu0 %v1047
    %1380 = vmatpush1.bf16.msra.mxu0 %v1046
    %1381 = vmatprep.subr.bf16.mxu0 %v1051
    %1382 = vmatpush1.bf16.msra.mxu0 %v1050
    %1383 = vmatprep.mubr.bf16.mxu0 %v134
    %1384 = vmatmul.mubr.bf16.gmra.mrb[0].mxu0 %v133
    %v1385 = vpop.f32.mrb[0].mxu0
    %v1386 = vadd.f32 %v1345, %v1385
    %v1387 = vpop.f32.mrb[0].mxu0
    %v1388 = vadd.f32 %v1347, %v1387
    %v1389 = vpop.f32.mrb[0].mxu0
    %v1390 = vpop.f32.mrb[0].mxu0
    %1391 = vdwg.mxu0
    %1392 = vmatprep.subr.bf16.mxu0 %v1055
    %1393 = vmatpush1.bf16.msra.mxu0 %v1054
    %1394 = vmatprep.subr.bf16.mxu0 %v1059
    %1395 = vmatpush1.bf16.msra.mxu0 %v1058
    %1396 = vmatprep.subr.bf16.mxu0 %v1063
    %1397 = vmatpush1.bf16.msra.mxu0 %v1062
    %1398 = vmatprep.subr.bf16.mxu0 %v1067
    %1399 = vmatpush1.bf16.msra.mxu0 %v1066
    %1400 = vmatprep.subr.bf16.mxu0 %v1071
    %1401 = vmatpush1.bf16.msra.mxu0 %v1070
    %1402 = vmatprep.subr.bf16.mxu0 %v1075
    %1403 = vmatpush1.bf16.msra.mxu0 %v1074
    %1404 = vmatprep.subr.bf16.mxu0 %v1079
    %1405 = vmatpush1.bf16.msra.mxu0 %v1078
    %1406 = vmatprep.subr.bf16.mxu0 %v1083
    %1407 = vmatpush1.bf16.msra.mxu0 %v1082
    %1408 = vmatprep.subr.bf16.mxu0 %v1087
    %1409 = vmatpush1.bf16.msra.mxu0 %v1086
    %1410 = vmatprep.subr.bf16.mxu0 %v1091
    %1411 = vmatpush1.bf16.msra.mxu0 %v1090
    %1412 = vmatprep.subr.bf16.mxu0 %v1095
    %1413 = vmatpush1.bf16.msra.mxu0 %v1094
    %1414 = vmatprep.subr.bf16.mxu0 %v1099
    %1415 = vmatpush1.bf16.msra.mxu0 %v1098
    %1416 = vmatprep.subr.bf16.mxu0 %v1103
    %1417 = vmatpush1.bf16.msra.mxu0 %v1102
    %1418 = vmatprep.subr.bf16.mxu0 %v1107
    %1419 = vmatpush1.bf16.msra.mxu0 %v1106
    %1420 = vmatprep.subr.bf16.mxu0 %v1111
    %1421 = vmatpush1.bf16.msra.mxu0 %v1110
    %1422 = vmatprep.subr.bf16.mxu0 %v1115
    %1423 = vmatpush1.bf16.msra.mxu0 %v1114
    %1424 = vmatprep.mubr.bf16.mxu0 %v136
    %1425 = vmatmul.mubr.bf16.gmra.mrb[0].mxu0 %v135
    %v1426 = vpop.f32.mrb[0].mxu0
    %v1427 = vadd.f32 %v1386, %v1426
    %v1428 = vpop.f32.mrb[0].mxu0
    %v1429 = vadd.f32 %v1388, %v1428
    %v1430 = vpop.f32.mrb[0].mxu0
    %v1431 = vpop.f32.mrb[0].mxu0
    %1432 = vdwg.mxu0
    %1433 = vmatprep.subr.bf16.mxu0 %v929
    %1434 = vmatpush1.bf16.msra.mxu0 %v928
    %1435 = vmatprep.subr.bf16.mxu0 %v933
    %1436 = vmatpush1.bf16.msra.mxu0 %v932
    %1437 = vmatprep.subr.bf16.mxu0 %v937
    %1438 = vmatpush1.bf16.msra.mxu0 %v936
    %1439 = vmatprep.subr.bf16.mxu0 %v941
    %1440 = vmatpush1.bf16.msra.mxu0 %v940
    %1441 = vmatprep.subr.bf16.mxu0 %v945
    %1442 = vmatpush1.bf16.msra.mxu0 %v944
    %1443 = vmatprep.subr.bf16.mxu0 %v949
    %1444 = vmatpush1.bf16.msra.mxu0 %v948
    %1445 = vmatprep.subr.bf16.mxu0 %v953
    %1446 = vmatpush1.bf16.msra.mxu0 %v952
    %1447 = vmatprep.subr.bf16.mxu0 %v957
    %1448 = vmatpush1.bf16.msra.mxu0 %v956
    %1449 = vmatprep.subr.bf16.mxu0 %v961
    %1450 = vmatpush1.bf16.msra.mxu0 %v960
    %1451 = vmatprep.subr.bf16.mxu0 %v965
    %1452 = vmatpush1.bf16.msra.mxu0 %v964
    %1453 = vmatprep.subr.bf16.mxu0 %v969
    %1454 = vmatpush1.bf16.msra.mxu0 %v968
    %1455 = vmatprep.subr.bf16.mxu0 %v973
    %1456 = vmatpush1.bf16.msra.mxu0 %v972
    %1457 = vmatprep.subr.bf16.mxu0 %v977
    %1458 = vmatpush1.bf16.msra.mxu0 %v976
    %1459 = vmatprep.subr.bf16.mxu0 %v981
    %1460 = vmatpush1.bf16.msra.mxu0 %v980
    %1461 = vmatprep.subr.bf16.mxu0 %v985
    %1462 = vmatpush1.bf16.msra.mxu0 %v984
    %1463 = vmatprep.subr.bf16.mxu0 %v989
    %1464 = vmatpush1.bf16.msra.mxu0 %v988
    %1465 = vmatprep.mubr.bf16.mxu0 %v132
    %1466 = vmatmul.mubr.bf16.gmra.mrb[0].mxu0 %v131
    %v1467 = vpop.f32.mrb[0].mxu0
    %v1468 = vadd.f32 %v341, %v1467
    %v1469 = vpop.f32.mrb[0].mxu0
    %v1470 = vadd.f32 %v345, %v1469
    %v1471 = vpop.f32.mrb[0].mxu0
    %v1472 = vpop.f32.mrb[0].mxu0
    %1473 = vdwg.mxu0
    %1474 = vmatprep.subr.bf16.mxu0 %v993
    %1475 = vmatpush1.bf16.msra.mxu0 %v992
    %1476 = vmatprep.subr.bf16.mxu0 %v997
    %1477 = vmatpush1.bf16.msra.mxu0 %v996
    %1478 = vmatprep.subr.bf16.mxu0 %v1001
    %1479 = vmatpush1.bf16.msra.mxu0 %v1000
    %1480 = vmatprep.subr.bf16.mxu0 %v1005
    %1481 = vmatpush1.bf16.msra.mxu0 %v1004
    %1482 = vmatprep.subr.bf16.mxu0 %v1009
    %1483 = vmatpush1.bf16.msra.mxu0 %v1008
    %1484 = vmatprep.subr.bf16.mxu0 %v1013
    %1485 = vmatpush1.bf16.msra.mxu0 %v1012
    %1486 = vmatprep.subr.bf16.mxu0 %v1017
    %1487 = vmatpush1.bf16.msra.mxu0 %v1016
    %1488 = vmatprep.subr.bf16.mxu0 %v1021
    %1489 = vmatpush1.bf16.msra.mxu0 %v1020
    %1490 = vmatprep.subr.bf16.mxu0 %v1025
    %1491 = vmatpush1.bf16.msra.mxu0 %v1024
    %1492 = vmatprep.subr.bf16.mxu0 %v1029
    %1493 = vmatpush1.bf16.msra.mxu0 %v1028
    %1494 = vmatprep.subr.bf16.mxu0 %v1033
    %1495 = vmatpush1.bf16.msra.mxu0 %v1032
    %1496 = vmatprep.subr.bf16.mxu0 %v1037
    %1497 = vmatpush1.bf16.msra.mxu0 %v1036
    %1498 = vmatprep.subr.bf16.mxu0 %v1041
    %1499 = vmatpush1.bf16.msra.mxu0 %v1040
    %1500 = vmatprep.subr.bf16.mxu0 %v1045
    %1501 = vmatpush1.bf16.msra.mxu0 %v1044
    %1502 = vmatprep.subr.bf16.mxu0 %v1049
    %1503 = vmatpush1.bf16.msra.mxu0 %v1048
    %1504 = vmatprep.subr.bf16.mxu0 %v1053
    %1505 = vmatpush1.bf16.msra.mxu0 %v1052
    %1506 = vmatprep.mubr.bf16.mxu0 %v134
    %1507 = vmatmul.mubr.bf16.gmra.mrb[0].mxu0 %v133
    %v1508 = vpop.f32.mrb[0].mxu0
    %v1509 = vadd.f32 %v1468, %v1508
    %v1510 = vpop.f32.mrb[0].mxu0
    %v1511 = vadd.f32 %v1470, %v1510
    %v1512 = vpop.f32.mrb[0].mxu0
    %v1513 = vpop.f32.mrb[0].mxu0
    %1514 = vdwg.mxu0
    %1515 = vmatprep.subr.bf16.mxu0 %v1057
    %1516 = vmatpush1.bf16.msra.mxu0 %v1056
    %1517 = vmatprep.subr.bf16.mxu0 %v1061
    %1518 = vmatpush1.bf16.msra.mxu0 %v1060
    %1519 = vmatprep.subr.bf16.mxu0 %v1065
    %1520 = vmatpush1.bf16.msra.mxu0 %v1064
    %1521 = vmatprep.subr.bf16.mxu0 %v1069
    %1522 = vmatpush1.bf16.msra.mxu0 %v1068
    %1523 = vmatprep.subr.bf16.mxu0 %v1073
    %1524 = vmatpush1.bf16.msra.mxu0 %v1072
    %1525 = vmatprep.subr.bf16.mxu0 %v1077
    %1526 = vmatpush1.bf16.msra.mxu0 %v1076
    %1527 = vmatprep.subr.bf16.mxu0 %v1081
    %1528 = vmatpush1.bf16.msra.mxu0 %v1080
    %1529 = vmatprep.subr.bf16.mxu0 %v1085
    %1530 = vmatpush1.bf16.msra.mxu0 %v1084
    %1531 = vmatprep.subr.bf16.mxu0 %v1089
    %1532 = vmatpush1.bf16.msra.mxu0 %v1088
    %1533 = vmatprep.subr.bf16.mxu0 %v1093
    %1534 = vmatpush1.bf16.msra.mxu0 %v1092
    %1535 = vmatprep.subr.bf16.mxu0 %v1097
    %1536 = vmatpush1.bf16.msra.mxu0 %v1096
    %1537 = vmatprep.subr.bf16.mxu0 %v1101
    %1538 = vmatpush1.bf16.msra.mxu0 %v1100
    %1539 = vmatprep.subr.bf16.mxu0 %v1105
    %1540 = vmatpush1.bf16.msra.mxu0 %v1104
    %1541 = vmatprep.subr.bf16.mxu0 %v1109
    %1542 = vmatpush1.bf16.msra.mxu0 %v1108
    %1543 = vmatprep.subr.bf16.mxu0 %v1113
    %1544 = vmatpush1.bf16.msra.mxu0 %v1112
    %1545 = vmatprep.subr.bf16.mxu0 %v1117
    %1546 = vmatpush1.bf16.msra.mxu0 %v1116
    %1547 = vmatprep.mubr.bf16.mxu0 %v136
    %1548 = vmatmul.mubr.bf16.gmra.mrb[0].mxu0 %v135
    %v1549 = vpop.f32.mrb[0].mxu0
    %v1550 = vadd.f32 %v1509, %v1549
    %v1551 = vpop.f32.mrb[0].mxu0
    %v1552 = vadd.f32 %v1511, %v1551
    %v1553 = vpop.f32.mrb[0].mxu0
    %v1554 = vpop.f32.mrb[0].mxu0
    %1555 = vdwg.mxu0
    %v1556 = vmax.f32 %v1427, 0.0
    %v1557 = vmax.f32 %v1429, 0.0
    %v1558 = vmax.f32 %v1550, 0.0
    %v1559 = vmax.f32 %v1552, 0.0
    %v1560 = vpack.c.bf16 %v1556, %v1556
    %v1561 = vpack.c.bf16 %v1557, %v1557
    %v1562 = vpack.c.bf16 %v1558, %v1558
    %v1563 = vpack.c.bf16 %v1559, %v1559
    %v1564 = vld [vmem:[#allocation7] sm:$0xff]
    %v1565 = vld [vmem:[#allocation7 + $0x8] sm:$0xff]
    %v1566 = vld [vmem:[#allocation7 + $0x10] sm:$0xff]
    %v1567 = vld [vmem:[#allocation7 + $0x18] sm:$0xff]
    %v1568 = vld [vmem:[#allocation7 + $0x20] sm:$0xff]
    %v1569 = vld [vmem:[#allocation7 + $0x28] sm:$0xff]
    %v1570 = vld [vmem:[#allocation7 + $0x30] sm:$0xff]
    %v1571 = vld [vmem:[#allocation7 + $0x38] sm:$0xff]
    %v1572 = vld [vmem:[#allocation7 + $0x40] sm:$0xff]
    %v1573 = vld [vmem:[#allocation7 + $0x48] sm:$0xff]
    %v1574 = vld [vmem:[#allocation7 + $0x50] sm:$0xff]
    %v1575 = vld [vmem:[#allocation7 + $0x58] sm:$0xff]
    %v1576 = vld [vmem:[#allocation7 + $0x60] sm:$0xff]
    %v1577 = vld [vmem:[#allocation7 + $0x68] sm:$0xff]
    %v1578 = vld [vmem:[#allocation7 + $0x70] sm:$0xff]
    %v1579 = vld [vmem:[#allocation7 + $0x78] sm:$0xff]
    %v1580 = vld [vmem:[#allocation7 + $0x80] sm:$0xff]
    %v1581 = vld [vmem:[#allocation7 + $0x88] sm:$0xff]
    %v1582 = vld [vmem:[#allocation7 + $0x90] sm:$0xff]
    %v1583 = vld [vmem:[#allocation7 + $0x98] sm:$0xff]
    %v1584 = vld [vmem:[#allocation7 + $0xa0] sm:$0xff]
    %v1585 = vld [vmem:[#allocation7 + $0xa8] sm:$0xff]
    %v1586 = vld [vmem:[#allocation7 + $0xb0] sm:$0xff]
    %v1587 = vld [vmem:[#allocation7 + $0xb8] sm:$0xff]
    %v1588 = vld [vmem:[#allocation7 + $0xc0] sm:$0xff]
    %v1589 = vld [vmem:[#allocation7 + $0xc8] sm:$0xff]
    %v1590 = vld [vmem:[#allocation7 + $0xd0] sm:$0xff]
    %v1591 = vld [vmem:[#allocation7 + $0xd8] sm:$0xff]
    %v1592 = vld [vmem:[#allocation7 + $0xe0] sm:$0xff]
    %v1593 = vld [vmem:[#allocation7 + $0xe8] sm:$0xff]
    %v1594 = vld [vmem:[#allocation7 + $0xf0] sm:$0xff]
    %v1595 = vld [vmem:[#allocation7 + $0xf8] sm:$0xff]
    %v1596 = vld [vmem:[#allocation7 + $0x100] sm:$0xff]
    %v1597 = vld [vmem:[#allocation7 + $0x108] sm:$0xff]
    %v1598 = vld [vmem:[#allocation7 + $0x110] sm:$0xff]
    %v1599 = vld [vmem:[#allocation7 + $0x118] sm:$0xff]
    %v1600 = vld [vmem:[#allocation7 + $0x120] sm:$0xff]
    %v1601 = vld [vmem:[#allocation7 + $0x128] sm:$0xff]
    %v1602 = vld [vmem:[#allocation7 + $0x130] sm:$0xff]
    %v1603 = vld [vmem:[#allocation7 + $0x138] sm:$0xff]
    %v1604 = vld [vmem:[#allocation7 + $0x140] sm:$0xff]
    %v1605 = vld [vmem:[#allocation7 + $0x148] sm:$0xff]
    %v1606 = vld [vmem:[#allocation7 + $0x150] sm:$0xff]
    %v1607 = vld [vmem:[#allocation7 + $0x158] sm:$0xff]
    %v1608 = vld [vmem:[#allocation7 + $0x160] sm:$0xff]
    %v1609 = vld [vmem:[#allocation7 + $0x168] sm:$0xff]
    %v1610 = vld [vmem:[#allocation7 + $0x170] sm:$0xff]
    %v1611 = vld [vmem:[#allocation7 + $0x178] sm:$0xff]
    %v1612 = vld [vmem:[#allocation7 + $0x180] sm:$0xff]
    %v1613 = vld [vmem:[#allocation7 + $0x188] sm:$0xff]
    %v1614 = vld [vmem:[#allocation7 + $0x190] sm:$0xff]
    %v1615 = vld [vmem:[#allocation7 + $0x198] sm:$0xff]
    %v1616 = vld [vmem:[#allocation7 + $0x1a0] sm:$0xff]
    %v1617 = vld [vmem:[#allocation7 + $0x1a8] sm:$0xff]
    %v1618 = vld [vmem:[#allocation7 + $0x1b0] sm:$0xff]
    %v1619 = vld [vmem:[#allocation7 + $0x1b8] sm:$0xff]
    %v1620 = vld [vmem:[#allocation7 + $0x1c0] sm:$0xff]
    %v1621 = vld [vmem:[#allocation7 + $0x1c8] sm:$0xff]
    %v1622 = vld [vmem:[#allocation7 + $0x1d0] sm:$0xff]
    %v1623 = vld [vmem:[#allocation7 + $0x1d8] sm:$0xff]
    %v1624 = vld [vmem:[#allocation7 + $0x1e0] sm:$0xff]
    %v1625 = vld [vmem:[#allocation7 + $0x1e8] sm:$0xff]
    %v1626 = vld [vmem:[#allocation7 + $0x1f0] sm:$0xff]
    %v1627 = vld [vmem:[#allocation7 + $0x1f8] sm:$0xff]
    %v1628 = vld [vmem:[#allocation7 + $0x200] sm:$0xff]
    %v1629 = vld [vmem:[#allocation7 + $0x208] sm:$0xff]
    %v1630 = vld [vmem:[#allocation7 + $0x210] sm:$0xff]
    %v1631 = vld [vmem:[#allocation7 + $0x218] sm:$0xff]
    %v1632 = vld [vmem:[#allocation7 + $0x220] sm:$0xff]
    %v1633 = vld [vmem:[#allocation7 + $0x228] sm:$0xff]
    %v1634 = vld [vmem:[#allocation7 + $0x230] sm:$0xff]
    %v1635 = vld [vmem:[#allocation7 + $0x238] sm:$0xff]
    %v1636 = vld [vmem:[#allocation7 + $0x240] sm:$0xff]
    %v1637 = vld [vmem:[#allocation7 + $0x248] sm:$0xff]
    %v1638 = vld [vmem:[#allocation7 + $0x250] sm:$0xff]
    %v1639 = vld [vmem:[#allocation7 + $0x258] sm:$0xff]
    %v1640 = vld [vmem:[#allocation7 + $0x260] sm:$0xff]
    %v1641 = vld [vmem:[#allocation7 + $0x268] sm:$0xff]
    %v1642 = vld [vmem:[#allocation7 + $0x270] sm:$0xff]
    %v1643 = vld [vmem:[#allocation7 + $0x278] sm:$0xff]
    %v1644 = vld [vmem:[#allocation7 + $0x280] sm:$0xff]
    %v1645 = vld [vmem:[#allocation7 + $0x288] sm:$0xff]
    %v1646 = vld [vmem:[#allocation7 + $0x290] sm:$0xff]
    %v1647 = vld [vmem:[#allocation7 + $0x298] sm:$0xff]
    %v1648 = vld [vmem:[#allocation7 + $0x2a0] sm:$0xff]
    %v1649 = vld [vmem:[#allocation7 + $0x2a8] sm:$0xff]
    %v1650 = vld [vmem:[#allocation7 + $0x2b0] sm:$0xff]
    %v1651 = vld [vmem:[#allocation7 + $0x2b8] sm:$0xff]
    %v1652 = vld [vmem:[#allocation7 + $0x2c0] sm:$0xff]
    %v1653 = vld [vmem:[#allocation7 + $0x2c8] sm:$0xff]
    %v1654 = vld [vmem:[#allocation7 + $0x2d0] sm:$0xff]
    %v1655 = vld [vmem:[#allocation7 + $0x2d8] sm:$0xff]
    %v1656 = vld [vmem:[#allocation7 + $0x2e0] sm:$0xff]
    %v1657 = vld [vmem:[#allocation7 + $0x2e8] sm:$0xff]
    %v1658 = vld [vmem:[#allocation7 + $0x2f0] sm:$0xff]
    %v1659 = vld [vmem:[#allocation7 + $0x2f8] sm:$0xff]
    %v1660 = vld [vmem:[#allocation7 + $0x300] sm:$0xff]
    %v1661 = vld [vmem:[#allocation7 + $0x308] sm:$0xff]
    %v1662 = vld [vmem:[#allocation7 + $0x310] sm:$0xff]
    %v1663 = vld [vmem:[#allocation7 + $0x318] sm:$0xff]
    %v1664 = vld [vmem:[#allocation7 + $0x320] sm:$0xff]
    %v1665 = vld [vmem:[#allocation7 + $0x328] sm:$0xff]
    %v1666 = vld [vmem:[#allocation7 + $0x330] sm:$0xff]
    %v1667 = vld [vmem:[#allocation7 + $0x338] sm:$0xff]
    %v1668 = vld [vmem:[#allocation7 + $0x340] sm:$0xff]
    %v1669 = vld [vmem:[#allocation7 + $0x348] sm:$0xff]
    %v1670 = vld [vmem:[#allocation7 + $0x350] sm:$0xff]
    %v1671 = vld [vmem:[#allocation7 + $0x358] sm:$0xff]
    %v1672 = vld [vmem:[#allocation7 + $0x360] sm:$0xff]
    %v1673 = vld [vmem:[#allocation7 + $0x368] sm:$0xff]
    %v1674 = vld [vmem:[#allocation7 + $0x370] sm:$0xff]
    %v1675 = vld [vmem:[#allocation7 + $0x378] sm:$0xff]
    %v1676 = vld [vmem:[#allocation7 + $0x380] sm:$0xff]
    %v1677 = vld [vmem:[#allocation7 + $0x388] sm:$0xff]
    %v1678 = vld [vmem:[#allocation7 + $0x390] sm:$0xff]
    %v1679 = vld [vmem:[#allocation7 + $0x398] sm:$0xff]
    %v1680 = vld [vmem:[#allocation7 + $0x3a0] sm:$0xff]
    %v1681 = vld [vmem:[#allocation7 + $0x3a8] sm:$0xff]
    %v1682 = vld [vmem:[#allocation7 + $0x3b0] sm:$0xff]
    %v1683 = vld [vmem:[#allocation7 + $0x3b8] sm:$0xff]
    %v1684 = vld [vmem:[#allocation7 + $0x3c0] sm:$0xff]
    %v1685 = vld [vmem:[#allocation7 + $0x3c8] sm:$0xff]
    %v1686 = vld [vmem:[#allocation7 + $0x3d0] sm:$0xff]
    %v1687 = vld [vmem:[#allocation7 + $0x3d8] sm:$0xff]
    %v1688 = vld [vmem:[#allocation7 + $0x3e0] sm:$0xff]
    %v1689 = vld [vmem:[#allocation7 + $0x3e8] sm:$0xff]
    %v1690 = vld [vmem:[#allocation7 + $0x3f0] sm:$0xff]
    %v1691 = vld [vmem:[#allocation7 + $0x3f8] sm:$0xff]
    %v1693 = vlaneseq
    %v1694 = vshrl.u32 %v1693, 7
    %v1695 = vsub.s32 0, %v1694
    %v1696 = vrot.slane %v121, %v1695
    %v1697 = vlaneseq
    %v1698 = vshrl.u32 %v1697, 7
    %v1699 = vsub.s32 1, %v1698
    %v1700 = vrot.slane %v121, %v1699
    %v1701 = vlaneseq
    %v1702 = vshrl.u32 %v1701, 7
    %v1703 = vsub.s32 2, %v1702
    %v1704 = vrot.slane %v121, %v1703
    %v1705 = vlaneseq
    %v1706 = vshrl.u32 %v1705, 7
    %v1707 = vsub.s32 3, %v1706
    %v1708 = vrot.slane %v121, %v1707
    %v1841 = vunpack.c.l.b16 %v1564
    %v1842 = vunpack.c.h.b16 %v1564
    %v1843 = vunpack.c.l.b16 %v1565
    %v1844 = vunpack.c.h.b16 %v1565
    %v1845 = vunpack.c.l.b16 %v1566
    %v1846 = vunpack.c.h.b16 %v1566
    %v1847 = vunpack.c.l.b16 %v1567
    %v1848 = vunpack.c.h.b16 %v1567
    %v1849 = vunpack.c.l.b16 %v1568
    %v1850 = vunpack.c.h.b16 %v1568
    %v1851 = vunpack.c.l.b16 %v1569
    %v1852 = vunpack.c.h.b16 %v1569
    %v1853 = vunpack.c.l.b16 %v1570
    %v1854 = vunpack.c.h.b16 %v1570
    %v1855 = vunpack.c.l.b16 %v1571
    %v1856 = vunpack.c.h.b16 %v1571
    %v1857 = vunpack.c.l.b16 %v1572
    %v1858 = vunpack.c.h.b16 %v1572
    %v1859 = vunpack.c.l.b16 %v1573
    %v1860 = vunpack.c.h.b16 %v1573
    %v1861 = vunpack.c.l.b16 %v1574
    %v1862 = vunpack.c.h.b16 %v1574
    %v1863 = vunpack.c.l.b16 %v1575
    %v1864 = vunpack.c.h.b16 %v1575
    %v1865 = vunpack.c.l.b16 %v1576
    %v1866 = vunpack.c.h.b16 %v1576
    %v1867 = vunpack.c.l.b16 %v1577
    %v1868 = vunpack.c.h.b16 %v1577
    %v1869 = vunpack.c.l.b16 %v1578
    %v1870 = vunpack.c.h.b16 %v1578
    %v1871 = vunpack.c.l.b16 %v1579
    %v1872 = vunpack.c.h.b16 %v1579
    %v1873 = vunpack.c.l.b16 %v1580
    %v1874 = vunpack.c.h.b16 %v1580
    %v1875 = vunpack.c.l.b16 %v1581
    %v1876 = vunpack.c.h.b16 %v1581
    %v1877 = vunpack.c.l.b16 %v1582
    %v1878 = vunpack.c.h.b16 %v1582
    %v1879 = vunpack.c.l.b16 %v1583
    %v1880 = vunpack.c.h.b16 %v1583
    %v1881 = vunpack.c.l.b16 %v1584
    %v1882 = vunpack.c.h.b16 %v1584
    %v1883 = vunpack.c.l.b16 %v1585
    %v1884 = vunpack.c.h.b16 %v1585
    %v1885 = vunpack.c.l.b16 %v1586
    %v1886 = vunpack.c.h.b16 %v1586
    %v1887 = vunpack.c.l.b16 %v1587
    %v1888 = vunpack.c.h.b16 %v1587
    %v1889 = vunpack.c.l.b16 %v1588
    %v1890 = vunpack.c.h.b16 %v1588
    %v1891 = vunpack.c.l.b16 %v1589
    %v1892 = vunpack.c.h.b16 %v1589
    %v1893 = vunpack.c.l.b16 %v1590
    %v1894 = vunpack.c.h.b16 %v1590
    %v1895 = vunpack.c.l.b16 %v1591
    %v1896 = vunpack.c.h.b16 %v1591
    %v1897 = vunpack.c.l.b16 %v1592
    %v1898 = vunpack.c.h.b16 %v1592
    %v1899 = vunpack.c.l.b16 %v1593
    %v1900 = vunpack.c.h.b16 %v1593
    %v1901 = vunpack.c.l.b16 %v1594
    %v1902 = vunpack.c.h.b16 %v1594
    %v1903 = vunpack.c.l.b16 %v1595
    %v1904 = vunpack.c.h.b16 %v1595
    %v1905 = vunpack.c.l.b16 %v1596
    %v1906 = vunpack.c.h.b16 %v1596
    %v1907 = vunpack.c.l.b16 %v1597
    %v1908 = vunpack.c.h.b16 %v1597
    %v1909 = vunpack.c.l.b16 %v1598
    %v1910 = vunpack.c.h.b16 %v1598
    %v1911 = vunpack.c.l.b16 %v1599
    %v1912 = vunpack.c.h.b16 %v1599
    %v1913 = vunpack.c.l.b16 %v1600
    %v1914 = vunpack.c.h.b16 %v1600
    %v1915 = vunpack.c.l.b16 %v1601
    %v1916 = vunpack.c.h.b16 %v1601
    %v1917 = vunpack.c.l.b16 %v1602
    %v1918 = vunpack.c.h.b16 %v1602
    %v1919 = vunpack.c.l.b16 %v1603
    %v1920 = vunpack.c.h.b16 %v1603
    %v1921 = vunpack.c.l.b16 %v1604
    %v1922 = vunpack.c.h.b16 %v1604
    %v1923 = vunpack.c.l.b16 %v1605
    %v1924 = vunpack.c.h.b16 %v1605
    %v1925 = vunpack.c.l.b16 %v1606
    %v1926 = vunpack.c.h.b16 %v1606
    %v1927 = vunpack.c.l.b16 %v1607
    %v1928 = vunpack.c.h.b16 %v1607
    %v1929 = vunpack.c.l.b16 %v1608
    %v1930 = vunpack.c.h.b16 %v1608
    %v1931 = vunpack.c.l.b16 %v1609
    %v1932 = vunpack.c.h.b16 %v1609
    %v1933 = vunpack.c.l.b16 %v1610
    %v1934 = vunpack.c.h.b16 %v1610
    %v1935 = vunpack.c.l.b16 %v1611
    %v1936 = vunpack.c.h.b16 %v1611
    %v1937 = vunpack.c.l.b16 %v1612
    %v1938 = vunpack.c.h.b16 %v1612
    %v1939 = vunpack.c.l.b16 %v1613
    %v1940 = vunpack.c.h.b16 %v1613
    %v1941 = vunpack.c.l.b16 %v1614
    %v1942 = vunpack.c.h.b16 %v1614
    %v1943 = vunpack.c.l.b16 %v1615
    %v1944 = vunpack.c.h.b16 %v1615
    %v1945 = vunpack.c.l.b16 %v1616
    %v1946 = vunpack.c.h.b16 %v1616
    %v1947 = vunpack.c.l.b16 %v1617
    %v1948 = vunpack.c.h.b16 %v1617
    %v1949 = vunpack.c.l.b16 %v1618
    %v1950 = vunpack.c.h.b16 %v1618
    %v1951 = vunpack.c.l.b16 %v1619
    %v1952 = vunpack.c.h.b16 %v1619
    %v1953 = vunpack.c.l.b16 %v1620
    %v1954 = vunpack.c.h.b16 %v1620
    %v1955 = vunpack.c.l.b16 %v1621
    %v1956 = vunpack.c.h.b16 %v1621
    %v1957 = vunpack.c.l.b16 %v1622
    %v1958 = vunpack.c.h.b16 %v1622
    %v1959 = vunpack.c.l.b16 %v1623
    %v1960 = vunpack.c.h.b16 %v1623
    %v1961 = vunpack.c.l.b16 %v1624
    %v1962 = vunpack.c.h.b16 %v1624
    %v1963 = vunpack.c.l.b16 %v1625
    %v1964 = vunpack.c.h.b16 %v1625
    %v1965 = vunpack.c.l.b16 %v1626
    %v1966 = vunpack.c.h.b16 %v1626
    %v1967 = vunpack.c.l.b16 %v1627
    %v1968 = vunpack.c.h.b16 %v1627
    %v1969 = vunpack.c.l.b16 %v1628
    %v1970 = vunpack.c.h.b16 %v1628
    %v1971 = vunpack.c.l.b16 %v1629
    %v1972 = vunpack.c.h.b16 %v1629
    %v1973 = vunpack.c.l.b16 %v1630
    %v1974 = vunpack.c.h.b16 %v1630
    %v1975 = vunpack.c.l.b16 %v1631
    %v1976 = vunpack.c.h.b16 %v1631
    %v1977 = vunpack.c.l.b16 %v1632
    %v1978 = vunpack.c.h.b16 %v1632
    %v1979 = vunpack.c.l.b16 %v1633
    %v1980 = vunpack.c.h.b16 %v1633
    %v1981 = vunpack.c.l.b16 %v1634
    %v1982 = vunpack.c.h.b16 %v1634
    %v1983 = vunpack.c.l.b16 %v1635
    %v1984 = vunpack.c.h.b16 %v1635
    %v1985 = vunpack.c.l.b16 %v1636
    %v1986 = vunpack.c.h.b16 %v1636
    %v1987 = vunpack.c.l.b16 %v1637
    %v1988 = vunpack.c.h.b16 %v1637
    %v1989 = vunpack.c.l.b16 %v1638
    %v1990 = vunpack.c.h.b16 %v1638
    %v1991 = vunpack.c.l.b16 %v1639
    %v1992 = vunpack.c.h.b16 %v1639
    %v1993 = vunpack.c.l.b16 %v1640
    %v1994 = vunpack.c.h.b16 %v1640
    %v1995 = vunpack.c.l.b16 %v1641
    %v1996 = vunpack.c.h.b16 %v1641
    %v1997 = vunpack.c.l.b16 %v1642
    %v1998 = vunpack.c.h.b16 %v1642
    %v1999 = vunpack.c.l.b16 %v1643
    %v2000 = vunpack.c.h.b16 %v1643
    %v2001 = vunpack.c.l.b16 %v1644
    %v2002 = vunpack.c.h.b16 %v1644
    %v2003 = vunpack.c.l.b16 %v1645
    %v2004 = vunpack.c.h.b16 %v1645
    %v2005 = vunpack.c.l.b16 %v1646
    %v2006 = vunpack.c.h.b16 %v1646
    %v2007 = vunpack.c.l.b16 %v1647
    %v2008 = vunpack.c.h.b16 %v1647
    %v2009 = vunpack.c.l.b16 %v1648
    %v2010 = vunpack.c.h.b16 %v1648
    %v2011 = vunpack.c.l.b16 %v1649
    %v2012 = vunpack.c.h.b16 %v1649
    %v2013 = vunpack.c.l.b16 %v1650
    %v2014 = vunpack.c.h.b16 %v1650
    %v2015 = vunpack.c.l.b16 %v1651
    %v2016 = vunpack.c.h.b16 %v1651
    %v2017 = vunpack.c.l.b16 %v1652
    %v2018 = vunpack.c.h.b16 %v1652
    %v2019 = vunpack.c.l.b16 %v1653
    %v2020 = vunpack.c.h.b16 %v1653
    %v2021 = vunpack.c.l.b16 %v1654
    %v2022 = vunpack.c.h.b16 %v1654
    %v2023 = vunpack.c.l.b16 %v1655
    %v2024 = vunpack.c.h.b16 %v1655
    %v2025 = vunpack.c.l.b16 %v1656
    %v2026 = vunpack.c.h.b16 %v1656
    %v2027 = vunpack.c.l.b16 %v1657
    %v2028 = vunpack.c.h.b16 %v1657
    %v2029 = vunpack.c.l.b16 %v1658
    %v2030 = vunpack.c.h.b16 %v1658
    %v2031 = vunpack.c.l.b16 %v1659
    %v2032 = vunpack.c.h.b16 %v1659
    %v2033 = vunpack.c.l.b16 %v1660
    %v2034 = vunpack.c.h.b16 %v1660
    %v2035 = vunpack.c.l.b16 %v1661
    %v2036 = vunpack.c.h.b16 %v1661
    %v2037 = vunpack.c.l.b16 %v1662
    %v2038 = vunpack.c.h.b16 %v1662
    %v2039 = vunpack.c.l.b16 %v1663
    %v2040 = vunpack.c.h.b16 %v1663
    %v2041 = vunpack.c.l.b16 %v1664
    %v2042 = vunpack.c.h.b16 %v1664
    %v2043 = vunpack.c.l.b16 %v1665
    %v2044 = vunpack.c.h.b16 %v1665
    %v2045 = vunpack.c.l.b16 %v1666
    %v2046 = vunpack.c.h.b16 %v1666
    %v2047 = vunpack.c.l.b16 %v1667
    %v2048 = vunpack.c.h.b16 %v1667
    %v2049 = vunpack.c.l.b16 %v1668
    %v2050 = vunpack.c.h.b16 %v1668
    %v2051 = vunpack.c.l.b16 %v1669
    %v2052 = vunpack.c.h.b16 %v1669
    %v2053 = vunpack.c.l.b16 %v1670
    %v2054 = vunpack.c.h.b16 %v1670
    %v2055 = vunpack.c.l.b16 %v1671
    %v2056 = vunpack.c.h.b16 %v1671
    %v2057 = vunpack.c.l.b16 %v1672
    %v2058 = vunpack.c.h.b16 %v1672
    %v2059 = vunpack.c.l.b16 %v1673
    %v2060 = vunpack.c.h.b16 %v1673
    %v2061 = vunpack.c.l.b16 %v1674
    %v2062 = vunpack.c.h.b16 %v1674
    %v2063 = vunpack.c.l.b16 %v1675
    %v2064 = vunpack.c.h.b16 %v1675
    %v2065 = vunpack.c.l.b16 %v1676
    %v2066 = vunpack.c.h.b16 %v1676
    %v2067 = vunpack.c.l.b16 %v1677
    %v2068 = vunpack.c.h.b16 %v1677
    %v2069 = vunpack.c.l.b16 %v1678
    %v2070 = vunpack.c.h.b16 %v1678
    %v2071 = vunpack.c.l.b16 %v1679
    %v2072 = vunpack.c.h.b16 %v1679
    %v2073 = vunpack.c.l.b16 %v1680
    %v2074 = vunpack.c.h.b16 %v1680
    %v2075 = vunpack.c.l.b16 %v1681
    %v2076 = vunpack.c.h.b16 %v1681
    %v2077 = vunpack.c.l.b16 %v1682
    %v2078 = vunpack.c.h.b16 %v1682
    %v2079 = vunpack.c.l.b16 %v1683
    %v2080 = vunpack.c.h.b16 %v1683
    %v2081 = vunpack.c.l.b16 %v1684
    %v2082 = vunpack.c.h.b16 %v1684
    %v2083 = vunpack.c.l.b16 %v1685
    %v2084 = vunpack.c.h.b16 %v1685
    %v2085 = vunpack.c.l.b16 %v1686
    %v2086 = vunpack.c.h.b16 %v1686
    %v2087 = vunpack.c.l.b16 %v1687
    %v2088 = vunpack.c.h.b16 %v1687
    %v2089 = vunpack.c.l.b16 %v1688
    %v2090 = vunpack.c.h.b16 %v1688
    %v2091 = vunpack.c.l.b16 %v1689
    %v2092 = vunpack.c.h.b16 %v1689
    %v2093 = vunpack.c.l.b16 %v1690
    %v2094 = vunpack.c.h.b16 %v1690
    %v2095 = vunpack.c.l.b16 %v1691
    %v2096 = vunpack.c.h.b16 %v1691
    %v2097 = vpack.c.b16 %v1845, %v1841
    %v2098 = vpack.c.b16 %v1846, %v1842
    %v2099 = vpack.c.b16 %v1847, %v1843
    %v2100 = vpack.c.b16 %v1848, %v1844
    %v2101 = vpack.c.b16 %v1853, %v1849
    %v2102 = vpack.c.b16 %v1854, %v1850
    %v2103 = vpack.c.b16 %v1855, %v1851
    %v2104 = vpack.c.b16 %v1856, %v1852
    %v2105 = vpack.c.b16 %v1861, %v1857
    %v2106 = vpack.c.b16 %v1862, %v1858
    %v2107 = vpack.c.b16 %v1863, %v1859
    %v2108 = vpack.c.b16 %v1864, %v1860
    %v2109 = vpack.c.b16 %v1869, %v1865
    %v2110 = vpack.c.b16 %v1870, %v1866
    %v2111 = vpack.c.b16 %v1871, %v1867
    %v2112 = vpack.c.b16 %v1872, %v1868
    %v2113 = vpack.c.b16 %v1877, %v1873
    %v2114 = vpack.c.b16 %v1878, %v1874
    %v2115 = vpack.c.b16 %v1879, %v1875
    %v2116 = vpack.c.b16 %v1880, %v1876
    %v2117 = vpack.c.b16 %v1885, %v1881
    %v2118 = vpack.c.b16 %v1886, %v1882
    %v2119 = vpack.c.b16 %v1887, %v1883
    %v2120 = vpack.c.b16 %v1888, %v1884
    %v2121 = vpack.c.b16 %v1893, %v1889
    %v2122 = vpack.c.b16 %v1894, %v1890
    %v2123 = vpack.c.b16 %v1895, %v1891
    %v2124 = vpack.c.b16 %v1896, %v1892
    %v2125 = vpack.c.b16 %v1901, %v1897
    %v2126 = vpack.c.b16 %v1902, %v1898
    %v2127 = vpack.c.b16 %v1903, %v1899
    %v2128 = vpack.c.b16 %v1904, %v1900
    %v2129 = vpack.c.b16 %v1909, %v1905
    %v2130 = vpack.c.b16 %v1910, %v1906
    %v2131 = vpack.c.b16 %v1911, %v1907
    %v2132 = vpack.c.b16 %v1912, %v1908
    %v2133 = vpack.c.b16 %v1917, %v1913
    %v2134 = vpack.c.b16 %v1918, %v1914
    %v2135 = vpack.c.b16 %v1919, %v1915
    %v2136 = vpack.c.b16 %v1920, %v1916
    %v2137 = vpack.c.b16 %v1925, %v1921
    %v2138 = vpack.c.b16 %v1926, %v1922
    %v2139 = vpack.c.b16 %v1927, %v1923
    %v2140 = vpack.c.b16 %v1928, %v1924
    %v2141 = vpack.c.b16 %v1933, %v1929
    %v2142 = vpack.c.b16 %v1934, %v1930
    %v2143 = vpack.c.b16 %v1935, %v1931
    %v2144 = vpack.c.b16 %v1936, %v1932
    %v2145 = vpack.c.b16 %v1941, %v1937
    %v2146 = vpack.c.b16 %v1942, %v1938
    %v2147 = vpack.c.b16 %v1943, %v1939
    %v2148 = vpack.c.b16 %v1944, %v1940
    %v2149 = vpack.c.b16 %v1949, %v1945
    %v2150 = vpack.c.b16 %v1950, %v1946
    %v2151 = vpack.c.b16 %v1951, %v1947
    %v2152 = vpack.c.b16 %v1952, %v1948
    %v2153 = vpack.c.b16 %v1957, %v1953
    %v2154 = vpack.c.b16 %v1958, %v1954
    %v2155 = vpack.c.b16 %v1959, %v1955
    %v2156 = vpack.c.b16 %v1960, %v1956
    %v2157 = vpack.c.b16 %v1965, %v1961
    %v2158 = vpack.c.b16 %v1966, %v1962
    %v2159 = vpack.c.b16 %v1967, %v1963
    %v2160 = vpack.c.b16 %v1968, %v1964
    %v2161 = vpack.c.b16 %v1973, %v1969
    %v2162 = vpack.c.b16 %v1974, %v1970
    %v2163 = vpack.c.b16 %v1975, %v1971
    %v2164 = vpack.c.b16 %v1976, %v1972
    %v2165 = vpack.c.b16 %v1981, %v1977
    %v2166 = vpack.c.b16 %v1982, %v1978
    %v2167 = vpack.c.b16 %v1983, %v1979
    %v2168 = vpack.c.b16 %v1984, %v1980
    %v2169 = vpack.c.b16 %v1989, %v1985
    %v2170 = vpack.c.b16 %v1990, %v1986
    %v2171 = vpack.c.b16 %v1991, %v1987
    %v2172 = vpack.c.b16 %v1992, %v1988
    %v2173 = vpack.c.b16 %v1997, %v1993
    %v2174 = vpack.c.b16 %v1998, %v1994
    %v2175 = vpack.c.b16 %v1999, %v1995
    %v2176 = vpack.c.b16 %v2000, %v1996
    %v2177 = vpack.c.b16 %v2005, %v2001
    %v2178 = vpack.c.b16 %v2006, %v2002
    %v2179 = vpack.c.b16 %v2007, %v2003
    %v2180 = vpack.c.b16 %v2008, %v2004
    %v2181 = vpack.c.b16 %v2013, %v2009
    %v2182 = vpack.c.b16 %v2014, %v2010
    %v2183 = vpack.c.b16 %v2015, %v2011
    %v2184 = vpack.c.b16 %v2016, %v2012
    %v2185 = vpack.c.b16 %v2021, %v2017
    %v2186 = vpack.c.b16 %v2022, %v2018
    %v2187 = vpack.c.b16 %v2023, %v2019
    %v2188 = vpack.c.b16 %v2024, %v2020
    %v2189 = vpack.c.b16 %v2029, %v2025
    %v2190 = vpack.c.b16 %v2030, %v2026
    %v2191 = vpack.c.b16 %v2031, %v2027
    %v2192 = vpack.c.b16 %v2032, %v2028
    %v2193 = vpack.c.b16 %v2037, %v2033
    %v2194 = vpack.c.b16 %v2038, %v2034
    %v2195 = vpack.c.b16 %v2039, %v2035
    %v2196 = vpack.c.b16 %v2040, %v2036
    %v2197 = vpack.c.b16 %v2045, %v2041
    %v2198 = vpack.c.b16 %v2046, %v2042
    %v2199 = vpack.c.b16 %v2047, %v2043
    %v2200 = vpack.c.b16 %v2048, %v2044
    %v2201 = vpack.c.b16 %v2053, %v2049
    %v2202 = vpack.c.b16 %v2054, %v2050
    %v2203 = vpack.c.b16 %v2055, %v2051
    %v2204 = vpack.c.b16 %v2056, %v2052
    %v2205 = vpack.c.b16 %v2061, %v2057
    %v2206 = vpack.c.b16 %v2062, %v2058
    %v2207 = vpack.c.b16 %v2063, %v2059
    %v2208 = vpack.c.b16 %v2064, %v2060
    %v2209 = vpack.c.b16 %v2069, %v2065
    %v2210 = vpack.c.b16 %v2070, %v2066
    %v2211 = vpack.c.b16 %v2071, %v2067
    %v2212 = vpack.c.b16 %v2072, %v2068
    %v2213 = vpack.c.b16 %v2077, %v2073
    %v2214 = vpack.c.b16 %v2078, %v2074
    %v2215 = vpack.c.b16 %v2079, %v2075
    %v2216 = vpack.c.b16 %v2080, %v2076
    %v2217 = vpack.c.b16 %v2085, %v2081
    %v2218 = vpack.c.b16 %v2086, %v2082
    %v2219 = vpack.c.b16 %v2087, %v2083
    %v2220 = vpack.c.b16 %v2088, %v2084
    %v2221 = vpack.c.b16 %v2093, %v2089
    %v2222 = vpack.c.b16 %v2094, %v2090
    %v2223 = vpack.c.b16 %v2095, %v2091
    %v2224 = vpack.c.b16 %v2096, %v2092
    %2353 = vmatprep.subr.bf16.mxu0 %v2098
    %2354 = vmatpush1.bf16.msra.mxu0 %v2097
    %2355 = vmatprep.subr.bf16.mxu0 %v2102
    %2356 = vmatpush1.bf16.msra.mxu0 %v2101
    %2357 = vmatprep.subr.bf16.mxu0 %v2106
    %2358 = vmatpush1.bf16.msra.mxu0 %v2105
    %2359 = vmatprep.subr.bf16.mxu0 %v2110
    %2360 = vmatpush1.bf16.msra.mxu0 %v2109
    %2361 = vmatprep.subr.bf16.mxu0 %v2114
    %2362 = vmatpush1.bf16.msra.mxu0 %v2113
    %2363 = vmatprep.subr.bf16.mxu0 %v2118
    %2364 = vmatpush1.bf16.msra.mxu0 %v2117
    %2365 = vmatprep.subr.bf16.mxu0 %v2122
    %2366 = vmatpush1.bf16.msra.mxu0 %v2121
    %2367 = vmatprep.subr.bf16.mxu0 %v2126
    %2368 = vmatpush1.bf16.msra.mxu0 %v2125
    %2369 = vmatprep.subr.bf16.mxu0 %v2130
    %2370 = vmatpush1.bf16.msra.mxu0 %v2129
    %2371 = vmatprep.subr.bf16.mxu0 %v2134
    %2372 = vmatpush1.bf16.msra.mxu0 %v2133
    %2373 = vmatprep.subr.bf16.mxu0 %v2138
    %2374 = vmatpush1.bf16.msra.mxu0 %v2137
    %2375 = vmatprep.subr.bf16.mxu0 %v2142
    %2376 = vmatpush1.bf16.msra.mxu0 %v2141
    %2377 = vmatprep.subr.bf16.mxu0 %v2146
    %2378 = vmatpush1.bf16.msra.mxu0 %v2145
    %2379 = vmatprep.subr.bf16.mxu0 %v2150
    %2380 = vmatpush1.bf16.msra.mxu0 %v2149
    %2381 = vmatprep.subr.bf16.mxu0 %v2154
    %2382 = vmatpush1.bf16.msra.mxu0 %v2153
    %2383 = vmatprep.subr.bf16.mxu0 %v2158
    %2384 = vmatpush1.bf16.msra.mxu0 %v2157
    %2385 = vmatprep.mubr.bf16.mxu0 %v1561
    %2386 = vmatmul.mubr.bf16.gmra.mrb[0].mxu0 %v1560
    %v2387 = vpop.f32.mrb[0].mxu0
    %v2388 = vadd.f32 %v1696, %v2387
    %v2389 = vpop.f32.mrb[0].mxu0
    %v2390 = vadd.f32 %v1700, %v2389
    %v2391 = vpop.f32.mrb[0].mxu0
    %v2392 = vpop.f32.mrb[0].mxu0
    %2393 = vdwg.mxu0
    %2394 = vmatprep.subr.bf16.mxu0 %v2162
    %2395 = vmatpush1.bf16.msra.mxu0 %v2161
    %2396 = vmatprep.subr.bf16.mxu0 %v2166
    %2397 = vmatpush1.bf16.msra.mxu0 %v2165
    %2398 = vmatprep.subr.bf16.mxu0 %v2170
    %2399 = vmatpush1.bf16.msra.mxu0 %v2169
    %2400 = vmatprep.subr.bf16.mxu0 %v2174
    %2401 = vmatpush1.bf16.msra.mxu0 %v2173
    %2402 = vmatprep.subr.bf16.mxu0 %v2178
    %2403 = vmatpush1.bf16.msra.mxu0 %v2177
    %2404 = vmatprep.subr.bf16.mxu0 %v2182
    %2405 = vmatpush1.bf16.msra.mxu0 %v2181
    %2406 = vmatprep.subr.bf16.mxu0 %v2186
    %2407 = vmatpush1.bf16.msra.mxu0 %v2185
    %2408 = vmatprep.subr.bf16.mxu0 %v2190
    %2409 = vmatpush1.bf16.msra.mxu0 %v2189
    %2410 = vmatprep.subr.bf16.mxu0 %v2194
    %2411 = vmatpush1.bf16.msra.mxu0 %v2193
    %2412 = vmatprep.subr.bf16.mxu0 %v2198
    %2413 = vmatpush1.bf16.msra.mxu0 %v2197
    %2414 = vmatprep.subr.bf16.mxu0 %v2202
    %2415 = vmatpush1.bf16.msra.mxu0 %v2201
    %2416 = vmatprep.subr.bf16.mxu0 %v2206
    %2417 = vmatpush1.bf16.msra.mxu0 %v2205
    %2418 = vmatprep.subr.bf16.mxu0 %v2210
    %2419 = vmatpush1.bf16.msra.mxu0 %v2209
    %2420 = vmatprep.subr.bf16.mxu0 %v2214
    %2421 = vmatpush1.bf16.msra.mxu0 %v2213
    %2422 = vmatprep.subr.bf16.mxu0 %v2218
    %2423 = vmatpush1.bf16.msra.mxu0 %v2217
    %2424 = vmatprep.subr.bf16.mxu0 %v2222
    %2425 = vmatpush1.bf16.msra.mxu0 %v2221
    %2426 = vmatprep.mubr.bf16.mxu0 %v1563
    %2427 = vmatmul.mubr.bf16.gmra.mrb[0].mxu0 %v1562
    %v2428 = vpop.f32.mrb[0].mxu0
    %v2429 = vadd.f32 %v2388, %v2428
    %v2430 = vpop.f32.mrb[0].mxu0
    %v2431 = vadd.f32 %v2390, %v2430
    %v2432 = vpop.f32.mrb[0].mxu0
    %v2433 = vpop.f32.mrb[0].mxu0
    %2434 = vdwg.mxu0
    %2435 = vmatprep.subr.bf16.mxu0 %v2100
    %2436 = vmatpush1.bf16.msra.mxu0 %v2099
    %2437 = vmatprep.subr.bf16.mxu0 %v2104
    %2438 = vmatpush1.bf16.msra.mxu0 %v2103
    %2439 = vmatprep.subr.bf16.mxu0 %v2108
    %2440 = vmatpush1.bf16.msra.mxu0 %v2107
    %2441 = vmatprep.subr.bf16.mxu0 %v2112
    %2442 = vmatpush1.bf16.msra.mxu0 %v2111
    %2443 = vmatprep.subr.bf16.mxu0 %v2116
    %2444 = vmatpush1.bf16.msra.mxu0 %v2115
    %2445 = vmatprep.subr.bf16.mxu0 %v2120
    %2446 = vmatpush1.bf16.msra.mxu0 %v2119
    %2447 = vmatprep.subr.bf16.mxu0 %v2124
    %2448 = vmatpush1.bf16.msra.mxu0 %v2123
    %2449 = vmatprep.subr.bf16.mxu0 %v2128
    %2450 = vmatpush1.bf16.msra.mxu0 %v2127
    %2451 = vmatprep.subr.bf16.mxu0 %v2132
    %2452 = vmatpush1.bf16.msra.mxu0 %v2131
    %2453 = vmatprep.subr.bf16.mxu0 %v2136
    %2454 = vmatpush1.bf16.msra.mxu0 %v2135
    %2455 = vmatprep.subr.bf16.mxu0 %v2140
    %2456 = vmatpush1.bf16.msra.mxu0 %v2139
    %2457 = vmatprep.subr.bf16.mxu0 %v2144
    %2458 = vmatpush1.bf16.msra.mxu0 %v2143
    %2459 = vmatprep.subr.bf16.mxu0 %v2148
    %2460 = vmatpush1.bf16.msra.mxu0 %v2147
    %2461 = vmatprep.subr.bf16.mxu0 %v2152
    %2462 = vmatpush1.bf16.msra.mxu0 %v2151
    %2463 = vmatprep.subr.bf16.mxu0 %v2156
    %2464 = vmatpush1.bf16.msra.mxu0 %v2155
    %2465 = vmatprep.subr.bf16.mxu0 %v2160
    %2466 = vmatpush1.bf16.msra.mxu0 %v2159
    %2467 = vmatprep.mubr.bf16.mxu0 %v1561
    %2468 = vmatmul.mubr.bf16.gmra.mrb[0].mxu0 %v1560
    %v2469 = vpop.f32.mrb[0].mxu0
    %v2470 = vadd.f32 %v1704, %v2469
    %v2471 = vpop.f32.mrb[0].mxu0
    %v2472 = vadd.f32 %v1708, %v2471
    %v2473 = vpop.f32.mrb[0].mxu0
    %v2474 = vpop.f32.mrb[0].mxu0
    %2475 = vdwg.mxu0
    %2476 = vmatprep.subr.bf16.mxu0 %v2164
    %2477 = vmatpush1.bf16.msra.mxu0 %v2163
    %2478 = vmatprep.subr.bf16.mxu0 %v2168
    %2479 = vmatpush1.bf16.msra.mxu0 %v2167
    %2480 = vmatprep.subr.bf16.mxu0 %v2172
    %2481 = vmatpush1.bf16.msra.mxu0 %v2171
    %2482 = vmatprep.subr.bf16.mxu0 %v2176
    %2483 = vmatpush1.bf16.msra.mxu0 %v2175
    %2484 = vmatprep.subr.bf16.mxu0 %v2180
    %2485 = vmatpush1.bf16.msra.mxu0 %v2179
    %2486 = vmatprep.subr.bf16.mxu0 %v2184
    %2487 = vmatpush1.bf16.msra.mxu0 %v2183
    %2488 = vmatprep.subr.bf16.mxu0 %v2188
    %2489 = vmatpush1.bf16.msra.mxu0 %v2187
    %2490 = vmatprep.subr.bf16.mxu0 %v2192
    %2491 = vmatpush1.bf16.msra.mxu0 %v2191
    %2492 = vmatprep.subr.bf16.mxu0 %v2196
    %2493 = vmatpush1.bf16.msra.mxu0 %v2195
    %2494 = vmatprep.subr.bf16.mxu0 %v2200
    %2495 = vmatpush1.bf16.msra.mxu0 %v2199
    %2496 = vmatprep.subr.bf16.mxu0 %v2204
    %2497 = vmatpush1.bf16.msra.mxu0 %v2203
    %2498 = vmatprep.subr.bf16.mxu0 %v2208
    %2499 = vmatpush1.bf16.msra.mxu0 %v2207
    %2500 = vmatprep.subr.bf16.mxu0 %v2212
    %2501 = vmatpush1.bf16.msra.mxu0 %v2211
    %2502 = vmatprep.subr.bf16.mxu0 %v2216
    %2503 = vmatpush1.bf16.msra.mxu0 %v2215
    %2504 = vmatprep.subr.bf16.mxu0 %v2220
    %2505 = vmatpush1.bf16.msra.mxu0 %v2219
    %2506 = vmatprep.subr.bf16.mxu0 %v2224
    %2507 = vmatpush1.bf16.msra.mxu0 %v2223
    %2508 = vmatprep.mubr.bf16.mxu0 %v1563
    %2509 = vmatmul.mubr.bf16.gmra.mrb[0].mxu0 %v1562
    %v2510 = vpop.f32.mrb[0].mxu0
    %v2511 = vadd.f32 %v2470, %v2510
    %v2512 = vpop.f32.mrb[0].mxu0
    %v2513 = vadd.f32 %v2472, %v2512
    %v2514 = vpop.f32.mrb[0].mxu0
    %v2515 = vpop.f32.mrb[0].mxu0
    %2516 = vdwg.mxu0
    %v2517 = vmax.f32 %v2429, 0.0
    %v2518 = vmax.f32 %v2431, 0.0
    %v2519 = vmax.f32 %v2511, 0.0
    %v2520 = vmax.f32 %v2513, 0.0
    %v2521 = vpack.c.bf16 %v2517, %v2517
    %v2522 = vpack.c.bf16 %v2518, %v2518
    %v2523 = vpack.c.bf16 %v2519, %v2519
    %v2524 = vpack.c.bf16 %v2520, %v2520
    %2525 = vmatprep.subr.bf16.mxu0 %v2098
    %2526 = vmatpush1.bf16.msra.mxu0 %v2097
    %2527 = vmatprep.subr.bf16.mxu0 %v2102
    %2528 = vmatpush1.bf16.msra.mxu0 %v2101
    %2529 = vmatprep.subr.bf16.mxu0 %v2106
    %2530 = vmatpush1.bf16.msra.mxu0 %v2105
    %2531 = vmatprep.subr.bf16.mxu0 %v2110
    %2532 = vmatpush1.bf16.msra.mxu0 %v2109
    %2533 = vmatprep.subr.bf16.mxu0 %v2114
    %2534 = vmatpush1.bf16.msra.mxu0 %v2113
    %2535 = vmatprep.subr.bf16.mxu0 %v2118
    %2536 = vmatpush1.bf16.msra.mxu0 %v2117
    %2537 = vmatprep.subr.bf16.mxu0 %v2122
    %2538 = vmatpush1.bf16.msra.mxu0 %v2121
    %2539 = vmatprep.subr.bf16.mxu0 %v2126
    %2540 = vmatpush1.bf16.msra.mxu0 %v2125
    %2541 = vmatprep.subr.bf16.mxu0 %v2130
    %2542 = vmatpush1.bf16.msra.mxu0 %v2129
    %2543 = vmatprep.subr.bf16.mxu0 %v2134
    %2544 = vmatpush1.bf16.msra.mxu0 %v2133
    %2545 = vmatprep.subr.bf16.mxu0 %v2138
    %2546 = vmatpush1.bf16.msra.mxu0 %v2137
    %2547 = vmatprep.subr.bf16.mxu0 %v2142
    %2548 = vmatpush1.bf16.msra.mxu0 %v2141
    %2549 = vmatprep.subr.bf16.mxu0 %v2146
    %2550 = vmatpush1.bf16.msra.mxu0 %v2145
    %2551 = vmatprep.subr.bf16.mxu0 %v2150
    %2552 = vmatpush1.bf16.msra.mxu0 %v2149
    %2553 = vmatprep.subr.bf16.mxu0 %v2154
    %2554 = vmatpush1.bf16.msra.mxu0 %v2153
    %2555 = vmatprep.subr.bf16.mxu0 %v2158
    %2556 = vmatpush1.bf16.msra.mxu0 %v2157
    %2557 = vmatprep.mubr.bf16.mxu0 %v2522
    %2558 = vmatmul.mubr.bf16.gmra.mrb[0].mxu0 %v2521
    %v2559 = vpop.f32.mrb[0].mxu0
    %v2560 = vadd.f32 %v1696, %v2559
    %v2561 = vpop.f32.mrb[0].mxu0
    %v2562 = vadd.f32 %v1700, %v2561
    %v2563 = vpop.f32.mrb[0].mxu0
    %v2564 = vpop.f32.mrb[0].mxu0
    %2565 = vdwg.mxu0
    %2566 = vmatprep.subr.bf16.mxu0 %v2162
    %2567 = vmatpush1.bf16.msra.mxu0 %v2161
    %2568 = vmatprep.subr.bf16.mxu0 %v2166
    %2569 = vmatpush1.bf16.msra.mxu0 %v2165
    %2570 = vmatprep.subr.bf16.mxu0 %v2170
    %2571 = vmatpush1.bf16.msra.mxu0 %v2169
    %2572 = vmatprep.subr.bf16.mxu0 %v2174
    %2573 = vmatpush1.bf16.msra.mxu0 %v2173
    %2574 = vmatprep.subr.bf16.mxu0 %v2178
    %2575 = vmatpush1.bf16.msra.mxu0 %v2177
    %2576 = vmatprep.subr.bf16.mxu0 %v2182
    %2577 = vmatpush1.bf16.msra.mxu0 %v2181
    %2578 = vmatprep.subr.bf16.mxu0 %v2186
    %2579 = vmatpush1.bf16.msra.mxu0 %v2185
    %2580 = vmatprep.subr.bf16.mxu0 %v2190
    %2581 = vmatpush1.bf16.msra.mxu0 %v2189
    %2582 = vmatprep.subr.bf16.mxu0 %v2194
    %2583 = vmatpush1.bf16.msra.mxu0 %v2193
    %2584 = vmatprep.subr.bf16.mxu0 %v2198
    %2585 = vmatpush1.bf16.msra.mxu0 %v2197
    %2586 = vmatprep.subr.bf16.mxu0 %v2202
    %2587 = vmatpush1.bf16.msra.mxu0 %v2201
    %2588 = vmatprep.subr.bf16.mxu0 %v2206
    %2589 = vmatpush1.bf16.msra.mxu0 %v2205
    %2590 = vmatprep.subr.bf16.mxu0 %v2210
    %2591 = vmatpush1.bf16.msra.mxu0 %v2209
    %2592 = vmatprep.subr.bf16.mxu0 %v2214
    %2593 = vmatpush1.bf16.msra.mxu0 %v2213
    %2594 = vmatprep.subr.bf16.mxu0 %v2218
    %2595 = vmatpush1.bf16.msra.mxu0 %v2217
    %2596 = vmatprep.subr.bf16.mxu0 %v2222
    %2597 = vmatpush1.bf16.msra.mxu0 %v2221
    %2598 = vmatprep.mubr.bf16.mxu0 %v2524
    %2599 = vmatmul.mubr.bf16.gmra.mrb[0].mxu0 %v2523
    %v2600 = vpop.f32.mrb[0].mxu0
    %v2601 = vadd.f32 %v2560, %v2600
    %v2602 = vpop.f32.mrb[0].mxu0
    %v2603 = vadd.f32 %v2562, %v2602
    %v2604 = vpop.f32.mrb[0].mxu0
    %v2605 = vpop.f32.mrb[0].mxu0
    %2606 = vdwg.mxu0
    %2607 = vmatprep.subr.bf16.mxu0 %v2100
    %2608 = vmatpush1.bf16.msra.mxu0 %v2099
    %2609 = vmatprep.subr.bf16.mxu0 %v2104
    %2610 = vmatpush1.bf16.msra.mxu0 %v2103
    %2611 = vmatprep.subr.bf16.mxu0 %v2108
    %2612 = vmatpush1.bf16.msra.mxu0 %v2107
    %2613 = vmatprep.subr.bf16.mxu0 %v2112
    %2614 = vmatpush1.bf16.msra.mxu0 %v2111
    %2615 = vmatprep.subr.bf16.mxu0 %v2116
    %2616 = vmatpush1.bf16.msra.mxu0 %v2115
    %2617 = vmatprep.subr.bf16.mxu0 %v2120
    %2618 = vmatpush1.bf16.msra.mxu0 %v2119
    %2619 = vmatprep.subr.bf16.mxu0 %v2124
    %2620 = vmatpush1.bf16.msra.mxu0 %v2123
    %2621 = vmatprep.subr.bf16.mxu0 %v2128
    %2622 = vmatpush1.bf16.msra.mxu0 %v2127
    %2623 = vmatprep.subr.bf16.mxu0 %v2132
    %2624 = vmatpush1.bf16.msra.mxu0 %v2131
    %2625 = vmatprep.subr.bf16.mxu0 %v2136
    %2626 = vmatpush1.bf16.msra.mxu0 %v2135
    %2627 = vmatprep.subr.bf16.mxu0 %v2140
    %2628 = vmatpush1.bf16.msra.mxu0 %v2139
    %2629 = vmatprep.subr.bf16.mxu0 %v2144
    %2630 = vmatpush1.bf16.msra.mxu0 %v2143
    %2631 = vmatprep.subr.bf16.mxu0 %v2148
    %2632 = vmatpush1.bf16.msra.mxu0 %v2147
    %2633 = vmatprep.subr.bf16.mxu0 %v2152
    %2634 = vmatpush1.bf16.msra.mxu0 %v2151
    %2635 = vmatprep.subr.bf16.mxu0 %v2156
    %2636 = vmatpush1.bf16.msra.mxu0 %v2155
    %2637 = vmatprep.subr.bf16.mxu0 %v2160
    %2638 = vmatpush1.bf16.msra.mxu0 %v2159
    %2639 = vmatprep.mubr.bf16.mxu0 %v2522
    %2640 = vmatmul.mubr.bf16.gmra.mrb[0].mxu0 %v2521
    %v2641 = vpop.f32.mrb[0].mxu0
    %v2642 = vadd.f32 %v1704, %v2641
    %v2643 = vpop.f32.mrb[0].mxu0
    %v2644 = vadd.f32 %v1708, %v2643
    %v2645 = vpop.f32.mrb[0].mxu0
    %v2646 = vpop.f32.mrb[0].mxu0
    %2647 = vdwg.mxu0
    %2648 = vmatprep.subr.bf16.mxu0 %v2164
    %2649 = vmatpush1.bf16.msra.mxu0 %v2163
    %2650 = vmatprep.subr.bf16.mxu0 %v2168
    %2651 = vmatpush1.bf16.msra.mxu0 %v2167
    %2652 = vmatprep.subr.bf16.mxu0 %v2172
    %2653 = vmatpush1.bf16.msra.mxu0 %v2171
    %2654 = vmatprep.subr.bf16.mxu0 %v2176
    %2655 = vmatpush1.bf16.msra.mxu0 %v2175
    %2656 = vmatprep.subr.bf16.mxu0 %v2180
    %2657 = vmatpush1.bf16.msra.mxu0 %v2179
    %2658 = vmatprep.subr.bf16.mxu0 %v2184
    %2659 = vmatpush1.bf16.msra.mxu0 %v2183
    %2660 = vmatprep.subr.bf16.mxu0 %v2188
    %2661 = vmatpush1.bf16.msra.mxu0 %v2187
    %2662 = vmatprep.subr.bf16.mxu0 %v2192
    %2663 = vmatpush1.bf16.msra.mxu0 %v2191
    %2664 = vmatprep.subr.bf16.mxu0 %v2196
    %2665 = vmatpush1.bf16.msra.mxu0 %v2195
    %2666 = vmatprep.subr.bf16.mxu0 %v2200
    %2667 = vmatpush1.bf16.msra.mxu0 %v2199
    %2668 = vmatprep.subr.bf16.mxu0 %v2204
    %2669 = vmatpush1.bf16.msra.mxu0 %v2203
    %2670 = vmatprep.subr.bf16.mxu0 %v2208
    %2671 = vmatpush1.bf16.msra.mxu0 %v2207
    %2672 = vmatprep.subr.bf16.mxu0 %v2212
    %2673 = vmatpush1.bf16.msra.mxu0 %v2211
    %2674 = vmatprep.subr.bf16.mxu0 %v2216
    %2675 = vmatpush1.bf16.msra.mxu0 %v2215
    %2676 = vmatprep.subr.bf16.mxu0 %v2220
    %2677 = vmatpush1.bf16.msra.mxu0 %v2219
    %2678 = vmatprep.subr.bf16.mxu0 %v2224
    %2679 = vmatpush1.bf16.msra.mxu0 %v2223
    %2680 = vmatprep.mubr.bf16.mxu0 %v2524
    %2681 = vmatmul.mubr.bf16.gmra.mrb[0].mxu0 %v2523
    %v2682 = vpop.f32.mrb[0].mxu0
    %v2683 = vadd.f32 %v2642, %v2682
    %v2684 = vpop.f32.mrb[0].mxu0
    %v2685 = vadd.f32 %v2644, %v2684
    %v2686 = vpop.f32.mrb[0].mxu0
    %v2687 = vpop.f32.mrb[0].mxu0
    %2688 = vdwg.mxu0
    %v2689 = vmax.f32 %v2601, 0.0
    %v2690 = vmax.f32 %v2603, 0.0
    %v2691 = vmax.f32 %v2683, 0.0
    %v2692 = vmax.f32 %v2685, 0.0
    %v2693 = vpack.c.bf16 %v2689, %v2689
    %v2694 = vpack.c.bf16 %v2690, %v2690
    %v2695 = vpack.c.bf16 %v2691, %v2691
    %v2696 = vpack.c.bf16 %v2692, %v2692
    %v2697 = vld [vmem:[#allocation8] sm:$0xf]
    %v2698 = vld [vmem:[#allocation8 + $0x4] sm:$0xf]
    %v2699 = vld [vmem:[#allocation8 + $0x8] sm:$0xf]
    %v2700 = vld [vmem:[#allocation8 + $0xc] sm:$0xf]
    %v2701 = vld [vmem:[#allocation8 + $0x10] sm:$0xf]
    %v2702 = vld [vmem:[#allocation8 + $0x14] sm:$0xf]
    %v2703 = vld [vmem:[#allocation8 + $0x18] sm:$0xf]
    %v2704 = vld [vmem:[#allocation8 + $0x1c] sm:$0xf]
    %v2705 = vld [vmem:[#allocation8 + $0x20] sm:$0xf]
    %v2706 = vld [vmem:[#allocation8 + $0x24] sm:$0xf]
    %v2707 = vld [vmem:[#allocation8 + $0x28] sm:$0xf]
    %v2708 = vld [vmem:[#allocation8 + $0x2c] sm:$0xf]
    %v2709 = vld [vmem:[#allocation8 + $0x30] sm:$0xf]
    %v2710 = vld [vmem:[#allocation8 + $0x34] sm:$0xf]
    %v2711 = vld [vmem:[#allocation8 + $0x38] sm:$0xf]
    %v2712 = vld [vmem:[#allocation8 + $0x3c] sm:$0xf]
    %v2713 = vld [vmem:[#allocation8 + $0x40] sm:$0xf]
    %v2714 = vld [vmem:[#allocation8 + $0x44] sm:$0xf]
    %v2715 = vld [vmem:[#allocation8 + $0x48] sm:$0xf]
    %v2716 = vld [vmem:[#allocation8 + $0x4c] sm:$0xf]
    %v2717 = vld [vmem:[#allocation8 + $0x50] sm:$0xf]
    %v2718 = vld [vmem:[#allocation8 + $0x54] sm:$0xf]
    %v2719 = vld [vmem:[#allocation8 + $0x58] sm:$0xf]
    %v2720 = vld [vmem:[#allocation8 + $0x5c] sm:$0xf]
    %v2721 = vld [vmem:[#allocation8 + $0x60] sm:$0xf]
    %v2722 = vld [vmem:[#allocation8 + $0x64] sm:$0xf]
    %v2723 = vld [vmem:[#allocation8 + $0x68] sm:$0xf]
    %v2724 = vld [vmem:[#allocation8 + $0x6c] sm:$0xf]
    %v2725 = vld [vmem:[#allocation8 + $0x70] sm:$0xf]
    %v2726 = vld [vmem:[#allocation8 + $0x74] sm:$0xf]
    %v2727 = vld [vmem:[#allocation8 + $0x78] sm:$0xf]
    %v2728 = vld [vmem:[#allocation8 + $0x7c] sm:$0xf]
    %v2729 = vld [vmem:[#allocation8 + $0x80] sm:$0xf]
    %v2730 = vld [vmem:[#allocation8 + $0x84] sm:$0xf]
    %v2731 = vld [vmem:[#allocation8 + $0x88] sm:$0xf]
    %v2732 = vld [vmem:[#allocation8 + $0x8c] sm:$0xf]
    %v2733 = vld [vmem:[#allocation8 + $0x90] sm:$0xf]
    %v2734 = vld [vmem:[#allocation8 + $0x94] sm:$0xf]
    %v2735 = vld [vmem:[#allocation8 + $0x98] sm:$0xf]
    %v2736 = vld [vmem:[#allocation8 + $0x9c] sm:$0xf]
    %v2737 = vld [vmem:[#allocation8 + $0xa0] sm:$0xf]
    %v2738 = vld [vmem:[#allocation8 + $0xa4] sm:$0xf]
    %v2739 = vld [vmem:[#allocation8 + $0xa8] sm:$0xf]
    %v2740 = vld [vmem:[#allocation8 + $0xac] sm:$0xf]
    %v2741 = vld [vmem:[#allocation8 + $0xb0] sm:$0xf]
    %v2742 = vld [vmem:[#allocation8 + $0xb4] sm:$0xf]
    %v2743 = vld [vmem:[#allocation8 + $0xb8] sm:$0xf]
    %v2744 = vld [vmem:[#allocation8 + $0xbc] sm:$0xf]
    %v2745 = vld [vmem:[#allocation8 + $0xc0] sm:$0xf]
    %v2746 = vld [vmem:[#allocation8 + $0xc4] sm:$0xf]
    %v2747 = vld [vmem:[#allocation8 + $0xc8] sm:$0xf]
    %v2748 = vld [vmem:[#allocation8 + $0xcc] sm:$0xf]
    %v2749 = vld [vmem:[#allocation8 + $0xd0] sm:$0xf]
    %v2750 = vld [vmem:[#allocation8 + $0xd4] sm:$0xf]
    %v2751 = vld [vmem:[#allocation8 + $0xd8] sm:$0xf]
    %v2752 = vld [vmem:[#allocation8 + $0xdc] sm:$0xf]
    %v2753 = vld [vmem:[#allocation8 + $0xe0] sm:$0xf]
    %v2754 = vld [vmem:[#allocation8 + $0xe4] sm:$0xf]
    %v2755 = vld [vmem:[#allocation8 + $0xe8] sm:$0xf]
    %v2756 = vld [vmem:[#allocation8 + $0xec] sm:$0xf]
    %v2757 = vld [vmem:[#allocation8 + $0xf0] sm:$0xf]
    %v2758 = vld [vmem:[#allocation8 + $0xf4] sm:$0xf]
    %v2759 = vld [vmem:[#allocation8 + $0xf8] sm:$0xf]
    %v2760 = vld [vmem:[#allocation8 + $0xfc] sm:$0xf]
    %v2762 = vlaneseq
    %v2763 = vshrl.u32 %v2762, 7
    %v2764 = vsub.s32 0, %v2763
    %v2765 = vrot.slane %v122, %v2764
    %v2831 = vunpack.c.l.b16 %v2697
    %v2832 = vunpack.c.l.b16 %v2698
    %v2833 = vunpack.c.l.b16 %v2699
    %v2834 = vunpack.c.l.b16 %v2700
    %v2835 = vunpack.c.l.b16 %v2701
    %v2836 = vunpack.c.l.b16 %v2702
    %v2837 = vunpack.c.l.b16 %v2703
    %v2838 = vunpack.c.l.b16 %v2704
    %v2839 = vunpack.c.l.b16 %v2705
    %v2840 = vunpack.c.l.b16 %v2706
    %v2841 = vunpack.c.l.b16 %v2707
    %v2842 = vunpack.c.l.b16 %v2708
    %v2843 = vunpack.c.l.b16 %v2709
    %v2844 = vunpack.c.l.b16 %v2710
    %v2845 = vunpack.c.l.b16 %v2711
    %v2846 = vunpack.c.l.b16 %v2712
    %v2847 = vunpack.c.l.b16 %v2713
    %v2848 = vunpack.c.l.b16 %v2714
    %v2849 = vunpack.c.l.b16 %v2715
    %v2850 = vunpack.c.l.b16 %v2716
    %v2851 = vunpack.c.l.b16 %v2717
    %v2852 = vunpack.c.l.b16 %v2718
    %v2853 = vunpack.c.l.b16 %v2719
    %v2854 = vunpack.c.l.b16 %v2720
    %v2855 = vunpack.c.l.b16 %v2721
    %v2856 = vunpack.c.l.b16 %v2722
    %v2857 = vunpack.c.l.b16 %v2723
    %v2858 = vunpack.c.l.b16 %v2724
    %v2859 = vunpack.c.l.b16 %v2725
    %v2860 = vunpack.c.l.b16 %v2726
    %v2861 = vunpack.c.l.b16 %v2727
    %v2862 = vunpack.c.l.b16 %v2728
    %v2863 = vunpack.c.l.b16 %v2729
    %v2864 = vunpack.c.l.b16 %v2730
    %v2865 = vunpack.c.l.b16 %v2731
    %v2866 = vunpack.c.l.b16 %v2732
    %v2867 = vunpack.c.l.b16 %v2733
    %v2868 = vunpack.c.l.b16 %v2734
    %v2869 = vunpack.c.l.b16 %v2735
    %v2870 = vunpack.c.l.b16 %v2736
    %v2871 = vunpack.c.l.b16 %v2737
    %v2872 = vunpack.c.l.b16 %v2738
    %v2873 = vunpack.c.l.b16 %v2739
    %v2874 = vunpack.c.l.b16 %v2740
    %v2875 = vunpack.c.l.b16 %v2741
    %v2876 = vunpack.c.l.b16 %v2742
    %v2877 = vunpack.c.l.b16 %v2743
    %v2878 = vunpack.c.l.b16 %v2744
    %v2879 = vunpack.c.l.b16 %v2745
    %v2880 = vunpack.c.l.b16 %v2746
    %v2881 = vunpack.c.l.b16 %v2747
    %v2882 = vunpack.c.l.b16 %v2748
    %v2883 = vunpack.c.l.b16 %v2749
    %v2884 = vunpack.c.l.b16 %v2750
    %v2885 = vunpack.c.l.b16 %v2751
    %v2886 = vunpack.c.l.b16 %v2752
    %v2887 = vunpack.c.l.b16 %v2753
    %v2888 = vunpack.c.l.b16 %v2754
    %v2889 = vunpack.c.l.b16 %v2755
    %v2890 = vunpack.c.l.b16 %v2756
    %v2891 = vunpack.c.l.b16 %v2757
    %v2892 = vunpack.c.l.b16 %v2758
    %v2893 = vunpack.c.l.b16 %v2759
    %v2894 = vunpack.c.l.b16 %v2760
    %v2895 = vpack.c.b16 %v2832, %v2831
    %v2896 = vpack.c.b16 %v2834, %v2833
    %v2897 = vpack.c.b16 %v2836, %v2835
    %v2898 = vpack.c.b16 %v2838, %v2837
    %v2899 = vpack.c.b16 %v2840, %v2839
    %v2900 = vpack.c.b16 %v2842, %v2841
    %v2901 = vpack.c.b16 %v2844, %v2843
    %v2902 = vpack.c.b16 %v2846, %v2845
    %v2903 = vpack.c.b16 %v2848, %v2847
    %v2904 = vpack.c.b16 %v2850, %v2849
    %v2905 = vpack.c.b16 %v2852, %v2851
    %v2906 = vpack.c.b16 %v2854, %v2853
    %v2907 = vpack.c.b16 %v2856, %v2855
    %v2908 = vpack.c.b16 %v2858, %v2857
    %v2909 = vpack.c.b16 %v2860, %v2859
    %v2910 = vpack.c.b16 %v2862, %v2861
    %v2911 = vpack.c.b16 %v2864, %v2863
    %v2912 = vpack.c.b16 %v2866, %v2865
    %v2913 = vpack.c.b16 %v2868, %v2867
    %v2914 = vpack.c.b16 %v2870, %v2869
    %v2915 = vpack.c.b16 %v2872, %v2871
    %v2916 = vpack.c.b16 %v2874, %v2873
    %v2917 = vpack.c.b16 %v2876, %v2875
    %v2918 = vpack.c.b16 %v2878, %v2877
    %v2919 = vpack.c.b16 %v2880, %v2879
    %v2920 = vpack.c.b16 %v2882, %v2881
    %v2921 = vpack.c.b16 %v2884, %v2883
    %v2922 = vpack.c.b16 %v2886, %v2885
    %v2923 = vpack.c.b16 %v2888, %v2887
    %v2924 = vpack.c.b16 %v2890, %v2889
    %v2925 = vpack.c.b16 %v2892, %v2891
    %v2926 = vpack.c.b16 %v2894, %v2893
    %2959 = vmatprep.subr.bf16.mxu0 0
    %2960 = vmatpush1.bf16.msra.mxu0 %v2895
    %2961 = vmatprep.subr.bf16.mxu0 0
    %2962 = vmatpush1.bf16.msra.mxu0 %v2896
    %2963 = vmatprep.subr.bf16.mxu0 0
    %2964 = vmatpush1.bf16.msra.mxu0 %v2897
    %2965 = vmatprep.subr.bf16.mxu0 0
    %2966 = vmatpush1.bf16.msra.mxu0 %v2898
    %2967 = vmatprep.subr.bf16.mxu0 0
    %2968 = vmatpush1.bf16.msra.mxu0 %v2899
    %2969 = vmatprep.subr.bf16.mxu0 0
    %2970 = vmatpush1.bf16.msra.mxu0 %v2900
    %2971 = vmatprep.subr.bf16.mxu0 0
    %2972 = vmatpush1.bf16.msra.mxu0 %v2901
    %2973 = vmatprep.subr.bf16.mxu0 0
    %2974 = vmatpush1.bf16.msra.mxu0 %v2902
    %2975 = vmatprep.subr.bf16.mxu0 0
    %2976 = vmatpush1.bf16.msra.mxu0 %v2903
    %2977 = vmatprep.subr.bf16.mxu0 0
    %2978 = vmatpush1.bf16.msra.mxu0 %v2904
    %2979 = vmatprep.subr.bf16.mxu0 0
    %2980 = vmatpush1.bf16.msra.mxu0 %v2905
    %2981 = vmatprep.subr.bf16.mxu0 0
    %2982 = vmatpush1.bf16.msra.mxu0 %v2906
    %2983 = vmatprep.subr.bf16.mxu0 0
    %2984 = vmatpush1.bf16.msra.mxu0 %v2907
    %2985 = vmatprep.subr.bf16.mxu0 0
    %2986 = vmatpush1.bf16.msra.mxu0 %v2908
    %2987 = vmatprep.subr.bf16.mxu0 0
    %2988 = vmatpush1.bf16.msra.mxu0 %v2909
    %2989 = vmatprep.subr.bf16.mxu0 0
    %2990 = vmatpush1.bf16.msra.mxu0 %v2910
    %2991 = vmatprep.mubr.bf16.mxu0 %v2694
    %2992 = vmatmul.mubr.bf16.gmra.mrb[0].mxu0 %v2693
    %v2993 = vpop.f32.mrb[0].mxu0
    %v2994 = vadd.f32 %v2765, %v2993
    %v2995 = vpop.f32.mrb[0].mxu0
    %v2996 = vpop.f32.mrb[0].mxu0
    %v2997 = vpop.f32.mrb[0].mxu0
    %2998 = vdwg.mxu0
    %2999 = vmatprep.subr.bf16.mxu0 0
    %3000 = vmatpush1.bf16.msra.mxu0 %v2911
    %3001 = vmatprep.subr.bf16.mxu0 0
    %3002 = vmatpush1.bf16.msra.mxu0 %v2912
    %3003 = vmatprep.subr.bf16.mxu0 0
    %3004 = vmatpush1.bf16.msra.mxu0 %v2913
    %3005 = vmatprep.subr.bf16.mxu0 0
    %3006 = vmatpush1.bf16.msra.mxu0 %v2914
    %3007 = vmatprep.subr.bf16.mxu0 0
    %3008 = vmatpush1.bf16.msra.mxu0 %v2915
    %3009 = vmatprep.subr.bf16.mxu0 0
    %3010 = vmatpush1.bf16.msra.mxu0 %v2916
    %3011 = vmatprep.subr.bf16.mxu0 0
    %3012 = vmatpush1.bf16.msra.mxu0 %v2917
    %3013 = vmatprep.subr.bf16.mxu0 0
    %3014 = vmatpush1.bf16.msra.mxu0 %v2918
    %3015 = vmatprep.subr.bf16.mxu0 0
    %3016 = vmatpush1.bf16.msra.mxu0 %v2919
    %3017 = vmatprep.subr.bf16.mxu0 0
    %3018 = vmatpush1.bf16.msra.mxu0 %v2920
    %3019 = vmatprep.subr.bf16.mxu0 0
    %3020 = vmatpush1.bf16.msra.mxu0 %v2921
    %3021 = vmatprep.subr.bf16.mxu0 0
    %3022 = vmatpush1.bf16.msra.mxu0 %v2922
    %3023 = vmatprep.subr.bf16.mxu0 0
    %3024 = vmatpush1.bf16.msra.mxu0 %v2923
    %3025 = vmatprep.subr.bf16.mxu0 0
    %3026 = vmatpush1.bf16.msra.mxu0 %v2924
    %3027 = vmatprep.subr.bf16.mxu0 0
    %3028 = vmatpush1.bf16.msra.mxu0 %v2925
    %3029 = vmatprep.subr.bf16.mxu0 0
    %3030 = vmatpush1.bf16.msra.mxu0 %v2926
    %3031 = vmatprep.mubr.bf16.mxu0 %v2696
    %3032 = vmatmul.mubr.bf16.gmra.mrb[0].mxu0 %v2695
    %v3033 = vpop.f32.mrb[0].mxu0
    %v3034 = vadd.f32 %v2994, %v3033
    %v3035 = vpop.f32.mrb[0].mxu0
    %v3036 = vpop.f32.mrb[0].mxu0
    %v3037 = vpop.f32.mrb[0].mxu0
    %3038 = vdwg.mxu0
    %v3039 = vmax.f32 %v3034, 0.0
    %v3040 = vpack.c.bf16 %v3039, %v3039
    %v3041 = vld [vmem:[#allocation10] sm:$0xf]
    %v3042 = vld [vmem:[#allocation10 + $0x4] sm:$0xf]
    %v3043 = vld [vmem:[#allocation10 + $0x8] sm:$0xf]
    %v3044 = vld [vmem:[#allocation10 + $0xc] sm:$0xf]
    %v3045 = vld [vmem:[#allocation10 + $0x10] sm:$0xf]
    %v3046 = vld [vmem:[#allocation10 + $0x14] sm:$0xf]
    %v3047 = vld [vmem:[#allocation10 + $0x18] sm:$0xf]
    %v3048 = vld [vmem:[#allocation10 + $0x1c] sm:$0xf]
    %v3049 = vld [vmem:[#allocation10 + $0x20] sm:$0xf]
    %v3050 = vld [vmem:[#allocation10 + $0x24] sm:$0xf]
    %v3051 = vld [vmem:[#allocation10 + $0x28] sm:$0xf]
    %v3052 = vld [vmem:[#allocation10 + $0x2c] sm:$0xf]
    %v3053 = vld [vmem:[#allocation10 + $0x30] sm:$0xf]
    %v3054 = vld [vmem:[#allocation10 + $0x34] sm:$0xf]
    %v3055 = vld [vmem:[#allocation10 + $0x38] sm:$0xf]
    %v3056 = vld [vmem:[#allocation10 + $0x3c] sm:$0xf]
    %v3058 = vlaneseq
    %v3059 = vshrl.u32 %v3058, 7
    %v3060 = vsub.s32 0, %v3059
    %v3061 = vrot.slane %v123, %v3060
    %v3079 = vunpack.c.l.b16 %v3041
    %v3080 = vunpack.c.l.b16 %v3042
    %v3081 = vunpack.c.l.b16 %v3043
    %v3082 = vunpack.c.l.b16 %v3044
    %v3083 = vunpack.c.l.b16 %v3045
    %v3084 = vunpack.c.l.b16 %v3046
    %v3085 = vunpack.c.l.b16 %v3047
    %v3086 = vunpack.c.l.b16 %v3048
    %v3087 = vunpack.c.l.b16 %v3049
    %v3088 = vunpack.c.l.b16 %v3050
    %v3089 = vunpack.c.l.b16 %v3051
    %v3090 = vunpack.c.l.b16 %v3052
    %v3091 = vunpack.c.l.b16 %v3053
    %v3092 = vunpack.c.l.b16 %v3054
    %v3093 = vunpack.c.l.b16 %v3055
    %v3094 = vunpack.c.l.b16 %v3056
    %v3095 = vpack.c.b16 %v3080, %v3079
    %v3096 = vpack.c.b16 %v3082, %v3081
    %v3097 = vpack.c.b16 %v3084, %v3083
    %v3098 = vpack.c.b16 %v3086, %v3085
    %v3099 = vpack.c.b16 %v3088, %v3087
    %v3100 = vpack.c.b16 %v3090, %v3089
    %v3101 = vpack.c.b16 %v3092, %v3091
    %v3102 = vpack.c.b16 %v3094, %v3093
    %3111 = vmatprep.subr.bf16.mxu0 0
    %3112 = vmatpush1.bf16.msra.mxu0 %v3095
    %3113 = vmatprep.subr.bf16.mxu0 0
    %3114 = vmatpush1.bf16.msra.mxu0 %v3096
    %3115 = vmatprep.subr.bf16.mxu0 0
    %3116 = vmatpush1.bf16.msra.mxu0 %v3097
    %3117 = vmatprep.subr.bf16.mxu0 0
    %3118 = vmatpush1.bf16.msra.mxu0 %v3098
    %3119 = vmatprep.subr.bf16.mxu0 0
    %3120 = vmatpush1.bf16.msra.mxu0 %v3099
    %3121 = vmatprep.subr.bf16.mxu0 0
    %3122 = vmatpush1.bf16.msra.mxu0 %v3100
    %3123 = vmatprep.subr.bf16.mxu0 0
    %3124 = vmatpush1.bf16.msra.mxu0 %v3101
    %3125 = vmatprep.subr.bf16.mxu0 0
    %3126 = vmatpush1.bf16.msra.mxu0 %v3102
    %3127 = vmatprep.subr.bf16.mxu0 0
    %3128 = vmatpush1.bf16.msra.mxu0 0
    %3129 = vmatprep.subr.bf16.mxu0 0
    %3130 = vmatpush1.bf16.msra.mxu0 0
    %3131 = vmatprep.subr.bf16.mxu0 0
    %3132 = vmatpush1.bf16.msra.mxu0 0
    %3133 = vmatprep.subr.bf16.mxu0 0
    %3134 = vmatpush1.bf16.msra.mxu0 0
    %3135 = vmatprep.subr.bf16.mxu0 0
    %3136 = vmatpush1.bf16.msra.mxu0 0
    %3137 = vmatprep.subr.bf16.mxu0 0
    %3138 = vmatpush1.bf16.msra.mxu0 0
    %3139 = vmatprep.subr.bf16.mxu0 0
    %3140 = vmatpush1.bf16.msra.mxu0 0
    %3141 = vmatprep.subr.bf16.mxu0 0
    %3142 = vmatpush1.bf16.msra.mxu0 0
    %3143 = vmatprep.mubr.bf16.mxu0 0
    %3144 = vmatmul.mubr.bf16.gmra.mrb[0].mxu0 %v3040
    %v3145 = vpop.f32.mrb[0].mxu0
    %v3146 = vadd.f32 %v3061, %v3145
    %v3147 = vpop.f32.mrb[0].mxu0
    %v3148 = vpop.f32.mrb[0].mxu0
    %v3149 = vpop.f32.mrb[0].mxu0
    %3150 = vdwg.mxu0
    %v3151 = vmax.f32 %v3146, 0.0
    %v3152 = vpack.c.bf16 %v3151, %v3151
    %3153 = vmatprep.subr.bf16.mxu0 0
    %3154 = vmatpush1.bf16.msra.mxu0 %v3095
    %3155 = vmatprep.subr.bf16.mxu0 0
    %3156 = vmatpush1.bf16.msra.mxu0 %v3096
    %3157 = vmatprep.subr.bf16.mxu0 0
    %3158 = vmatpush1.bf16.msra.mxu0 %v3097
    %3159 = vmatprep.subr.bf16.mxu0 0
    %3160 = vmatpush1.bf16.msra.mxu0 %v3098
    %3161 = vmatprep.subr.bf16.mxu0 0
    %3162 = vmatpush1.bf16.msra.mxu0 %v3099
    %3163 = vmatprep.subr.bf16.mxu0 0
    %3164 = vmatpush1.bf16.msra.mxu0 %v3100
    %3165 = vmatprep.subr.bf16.mxu0 0
    %3166 = vmatpush1.bf16.msra.mxu0 %v3101
    %3167 = vmatprep.subr.bf16.mxu0 0
    %3168 = vmatpush1.bf16.msra.mxu0 %v3102
    %3169 = vmatprep.subr.bf16.mxu0 0
    %3170 = vmatpush1.bf16.msra.mxu0 0
    %3171 = vmatprep.subr.bf16.mxu0 0
    %3172 = vmatpush1.bf16.msra.mxu0 0
    %3173 = vmatprep.subr.bf16.mxu0 0
    %3174 = vmatpush1.bf16.msra.mxu0 0
    %3175 = vmatprep.subr.bf16.mxu0 0
    %3176 = vmatpush1.bf16.msra.mxu0 0
    %3177 = vmatprep.subr.bf16.mxu0 0
    %3178 = vmatpush1.bf16.msra.mxu0 0
    %3179 = vmatprep.subr.bf16.mxu0 0
    %3180 = vmatpush1.bf16.msra.mxu0 0
    %3181 = vmatprep.subr.bf16.mxu0 0
    %3182 = vmatpush1.bf16.msra.mxu0 0
    %3183 = vmatprep.subr.bf16.mxu0 0
    %3184 = vmatpush1.bf16.msra.mxu0 0
    %3185 = vmatprep.mubr.bf16.mxu0 0
    %3186 = vmatmul.mubr.bf16.gmra.mrb[0].mxu0 %v3152
    %v3187 = vpop.f32.mrb[0].mxu0
    %v3188 = vadd.f32 %v3061, %v3187
    %v3189 = vpop.f32.mrb[0].mxu0
    %v3190 = vpop.f32.mrb[0].mxu0
    %v3191 = vpop.f32.mrb[0].mxu0
    %3192 = vdwg.mxu0
    %v3193 = vmax.f32 %v3188, 0.0
    %v3194 = vpack.c.bf16 %v3193, %v3193
    %v3195 = vld [vmem:[#allocation11] sm:$0xf]
    %v3196 = vld [vmem:[#allocation11 + $0x4] sm:$0xf]
    %v3197 = vld [vmem:[#allocation11 + $0x8] sm:$0xf]
    %v3198 = vld [vmem:[#allocation11 + $0xc] sm:$0xf]
    %v3199 = vld [vmem:[#allocation11 + $0x10] sm:$0xf]
    %v3200 = vld [vmem:[#allocation11 + $0x14] sm:$0xf]
    %v3201 = vld [vmem:[#allocation11 + $0x18] sm:$0xf]
    %v3202 = vld [vmem:[#allocation11 + $0x1c] sm:$0xf]
    %v3203 = vld [vmem:[#allocation11 + $0x20] sm:$0xf]
    %v3204 = vld [vmem:[#allocation11 + $0x24] sm:$0xf]
    %v3205 = vld [vmem:[#allocation11 + $0x28] sm:$0xf]
    %v3206 = vld [vmem:[#allocation11 + $0x2c] sm:$0xf]
    %v3207 = vld [vmem:[#allocation11 + $0x30] sm:$0xf]
    %v3208 = vld [vmem:[#allocation11 + $0x34] sm:$0xf]
    %v3209 = vld [vmem:[#allocation11 + $0x38] sm:$0xf]
    %v3210 = vld [vmem:[#allocation11 + $0x3c] sm:$0xf]
    %v3212 = vlaneseq
    %v3213 = vshrl.u32 %v3212, 7
    %v3214 = vsub.s32 0, %v3213
    %v3215 = vrot.slane %v124, %v3214
    %v3233 = vunpack.c.l.b16 %v3195
    %v3234 = vunpack.c.l.b16 %v3196
    %v3235 = vunpack.c.l.b16 %v3197
    %v3236 = vunpack.c.l.b16 %v3198
    %v3237 = vunpack.c.l.b16 %v3199
    %v3238 = vunpack.c.l.b16 %v3200
    %v3239 = vunpack.c.l.b16 %v3201
    %v3240 = vunpack.c.l.b16 %v3202
    %v3241 = vunpack.c.l.b16 %v3203
    %v3242 = vunpack.c.l.b16 %v3204
    %v3243 = vunpack.c.l.b16 %v3205
    %v3244 = vunpack.c.l.b16 %v3206
    %v3245 = vunpack.c.l.b16 %v3207
    %v3246 = vunpack.c.l.b16 %v3208
    %v3247 = vunpack.c.l.b16 %v3209
    %v3248 = vunpack.c.l.b16 %v3210
    %v3249 = vpack.c.b16 %v3234, %v3233
    %v3250 = vpack.c.b16 %v3236, %v3235
    %v3251 = vpack.c.b16 %v3238, %v3237
    %v3252 = vpack.c.b16 %v3240, %v3239
    %v3253 = vpack.c.b16 %v3242, %v3241
    %v3254 = vpack.c.b16 %v3244, %v3243
    %v3255 = vpack.c.b16 %v3246, %v3245
    %v3256 = vpack.c.b16 %v3248, %v3247
    %3265 = vmatprep.subr.bf16.mxu0 0
    %3266 = vmatpush1.bf16.msra.mxu0 %v3249
    %3267 = vmatprep.subr.bf16.mxu0 0
    %3268 = vmatpush1.bf16.msra.mxu0 %v3250
    %3269 = vmatprep.subr.bf16.mxu0 0
    %3270 = vmatpush1.bf16.msra.mxu0 %v3251
    %3271 = vmatprep.subr.bf16.mxu0 0
    %3272 = vmatpush1.bf16.msra.mxu0 %v3252
    %3273 = vmatprep.subr.bf16.mxu0 0
    %3274 = vmatpush1.bf16.msra.mxu0 %v3253
    %3275 = vmatprep.subr.bf16.mxu0 0
    %3276 = vmatpush1.bf16.msra.mxu0 %v3254
    %3277 = vmatprep.subr.bf16.mxu0 0
    %3278 = vmatpush1.bf16.msra.mxu0 %v3255
    %3279 = vmatprep.subr.bf16.mxu0 0
    %3280 = vmatpush1.bf16.msra.mxu0 %v3256
    %3281 = vmatprep.subr.bf16.mxu0 0
    %3282 = vmatpush1.bf16.msra.mxu0 0
    %3283 = vmatprep.subr.bf16.mxu0 0
    %3284 = vmatpush1.bf16.msra.mxu0 0
    %3285 = vmatprep.subr.bf16.mxu0 0
    %3286 = vmatpush1.bf16.msra.mxu0 0
    %3287 = vmatprep.subr.bf16.mxu0 0
    %3288 = vmatpush1.bf16.msra.mxu0 0
    %3289 = vmatprep.subr.bf16.mxu0 0
    %3290 = vmatpush1.bf16.msra.mxu0 0
    %3291 = vmatprep.subr.bf16.mxu0 0
    %3292 = vmatpush1.bf16.msra.mxu0 0
    %3293 = vmatprep.subr.bf16.mxu0 0
    %3294 = vmatpush1.bf16.msra.mxu0 0
    %3295 = vmatprep.subr.bf16.mxu0 0
    %3296 = vmatpush1.bf16.msra.mxu0 0
    %3297 = vmatprep.mubr.bf16.mxu0 0
    %3298 = vmatmul.mubr.bf16.gmra.mrb[0].mxu0 %v3194
    %v3299 = vpop.f32.mrb[0].mxu0
    %v3300 = vadd.f32 %v3215, %v3299
    %v3301 = vpop.f32.mrb[0].mxu0
    %v3302 = vpop.f32.mrb[0].mxu0
    %v3303 = vpop.f32.mrb[0].mxu0
    %3304 = vdwg.mxu0
    %3305 = vst [vmem:[#allocation13] sm:$0xff] %v3300
    // Predicated region
    $region70: #{tpu_custom_call.1} parent=1 // pred_check
      _
    $region71: #{tpu_custom_call.1} parent=1 // pred_check_branch
      %3307 = sbr.rel (0) target = $region73
    $region72: #{tpu_custom_call.1} parent=1 // pred_region
      %s3309 = ssub.s32 128, 128
      %3310 = vsyncadd [#allocation4], %s3309
      %s3312 = sshll.u32 [#allocation13], 4
      %s3313 = int_to_ptr.vmem [resolvable:$true] %s3312
      %3315 = dma.vmem_to_hbm [thread:$0]  %s3313, 128, %s11, [#allocation4]
    $region73: #{tpu_custom_call.1} parent=1 // pred_fallthru
      _
    // Predicated region
    $region74: #{tpu_custom_call.1} parent=1 // pred_check
      _
    $region75: #{tpu_custom_call.1} parent=1 // pred_check_branch
      %3317 = sbr.rel (0) target = $region77
    $region76: #{tpu_custom_call.1} parent=1 // pred_region
      %3318 = dma.done [#allocation4], 128
    $region77: #{tpu_custom_call.1} parent=1 // pred_fallthru
      _
    %3319 = vsyncpa [#allocation3], 1
    %3320 = vsyncpa [#allocation6], 1
    %3321 = vsyncpa [#allocation9], 1
    %3322 = vsyncpa [#allocation12], 1
    %3323 = vsyncpa [#allocation4], 1

</llo_original>
